<compile_context>
chip_gen: v7x
topology: tpu7x:2x2x1
jax: 0.10.0
libtpu: 0.0.40
codegen_flags: <defaults>
</compile_context>

<pallas_src>
import functools
import math

import numpy as np
import jax
import jax.numpy as jnp
from jax.experimental import pallas as pl

# ----------------------------- model config ---------------------------------
VOCAB = 64
MAX_POS = 16
N_LANG_IDS = 4            # lang ids act as BERT token-type ids
HIDDEN = 32
NUM_HEADS = 2
HEAD_DIM = HIDDEN // NUM_HEADS
FFN = 64
NUM_LAYERS = 2
OUT_DIM = 3
LN_EPS = 1e-12

BATCH = 2
SEQ = 8
MAX_WORDS = 8             # whole-word rows (extra rows are zero, like pad_sequence)


# ----------------------------- kernel helpers --------------------------------
def _layer_norm(x, gamma, beta):
    # x: (R, H), gamma/beta: (1, H)
    mu = jnp.mean(x, axis=-1, keepdims=True)
    var = jnp.mean((x - mu) * (x - mu), axis=-1, keepdims=True)
    return (x - mu) * jax.lax.rsqrt(var + LN_EPS) * gamma + beta


# ----------------------------- fused Pallas kernel ---------------------------
def fused_bert_kernel(emb_ref, bias_ref, merge_ref, onehot_ref,
                      emb_g_ref, emb_b_ref,
                      wqkv_ref, bqkv_ref, wo_ref, bo_ref, g1_ref, be1_ref,
                      wi_ref, bi_ref, wo2_ref, bo2_ref, g2_ref, be2_ref,
                      wp_ref, bp_ref, wc_ref, bc_ref,
                      merged_ref, pooled_ref, logits_ref, loss_ref,
                      *, num_layers, num_heads, head_dim, batch, seq):
    hidden = num_heads * head_dim
    rows = batch * seq

    # ---- embedding LayerNorm on flattened (B*S, H) rows ----------------------
    x = emb_ref[...].reshape(rows, hidden)
    h = _layer_norm(x, emb_g_ref[...], emb_b_ref[...])

    # additive attention mask bias (B, 1, S), computed once, reused every layer
    attn_bias = bias_ref[...]

    # ---- encoder layers (static unrolled loop, all weights resident in VMEM) -
    for l in range(num_layers):
        # fused QKV projection; Q slice already carries the 1/sqrt(dh) scale
        qkv = (jnp.dot(h, wqkv_ref[l], preferred_element_type=jnp.float32)
               + bqkv_ref[l])                                    # (B*S, 3H)

        ctx_heads = []
        for hd in range(num_heads):                              # static, tiny
            lo = hd * head_dim
            qh = qkv[:, lo:lo + head_dim].reshape(batch, seq, head_dim)
            kh = qkv[:, hidden + lo:hidden + lo + head_dim].reshape(
                batch, seq, head_dim)
            vh = qkv[:, 2 * hidden + lo:2 * hidden + lo + head_dim].reshape(
                batch, seq, head_dim)

            s = jnp.einsum('bqd,bkd->bqk', qh, kh,
                           preferred_element_type=jnp.float32)   # (B, S, S)
            s = s + attn_bias                                    # (B,1,S) bcast
            s = s - jnp.max(s, axis=-1, keepdims=True)
            p = jnp.exp(s)
            p = p * pl.reciprocal(jnp.sum(p, axis=-1, keepdims=True),
                                  approx=True)
            ctx_heads.append(jnp.einsum('bqk,bkd->bqd', p, vh,
                                        preferred_element_type=jnp.float32))
        ctx = jnp.concatenate(ctx_heads, axis=-1).reshape(rows, hidden)

        attn_out = (jnp.dot(ctx, wo_ref[l], preferred_element_type=jnp.float32)
                    + bo_ref[l])
        h1 = _layer_norm(h + attn_out, g1_ref[l], be1_ref[l])

        # TODO(synk): HF BERT uses exact erf-GELU; tanh approximation used here.
        inter = jax.nn.gelu(
            jnp.dot(h1, wi_ref[l], preferred_element_type=jnp.float32)
            + bi_ref[l], approximate=True)
        ffn_out = (jnp.dot(inter, wo2_ref[l], preferred_element_type=jnp.float32)
                   + bo2_ref[l])
        h = _layer_norm(h1 + ffn_out, g2_ref[l], be2_ref[l])

    h_bsh = h.reshape(batch, seq, hidden)

    # ---- whole-word merge: average subword encodings per word ---------------
    # (nn.Dropout(p=0.25) on bert_encodings is identity in eval mode.)
    merged_ref[...] = jnp.einsum('bws,bsh->bwh', merge_ref[...], h_bsh,
                                 preferred_element_type=jnp.float32)

    # ---- pooler (tanh on [CLS]) + classifier ---------------------------------
    cls = h_bsh[:, 0, :]                                         # (B, H)
    pooled = jnp.tanh(
        jnp.dot(cls, wp_ref[...], preferred_element_type=jnp.float32)
        + bp_ref[...])
    pooled_ref[...] = pooled        # pooler_output (dropout = identity in eval)
    logits = (jnp.dot(pooled, wc_ref[...], preferred_element_type=jnp.float32)
              + bc_ref[...])
    logits_ref[...] = logits

    # ---- mean cross-entropy ---------------------------------------------------
    m = jnp.max(logits, axis=-1, keepdims=True)
    lse = m + jnp.log(jnp.sum(jnp.exp(logits - m), axis=-1, keepdims=True))
    picked = jnp.sum(logits * onehot_ref[...], axis=-1, keepdims=True)
    loss_ref[...] = jnp.sum(lse - picked, axis=0, keepdims=True) / batch


# ----------------------------- parameters ------------------------------------
def init_params(key):
    ks = iter(jax.random.split(key, 16))
    std = 0.02

    def dense(k, shp):
        return jax.random.normal(k, shp, jnp.float32) * std

    # fused QKV weights, with the attention scale folded into the Q slice
    scale = 1.0 / math.sqrt(HEAD_DIM)
    wqkv = dense(next(ks), (NUM_LAYERS, HIDDEN, 3 * HIDDEN))
    wqkv = wqkv.at[:, :, :HIDDEN].multiply(scale)
    # (biases are zero; if nonzero, the Q bias slice would be scaled the same way)
    bqkv = jnp.zeros((NUM_LAYERS, 1, 3 * HIDDEN), jnp.float32)

    return {
        "word_emb": dense(next(ks), (VOCAB, HIDDEN)),
        "pos_emb": dense(next(ks), (MAX_POS, HIDDEN)),
        "type_emb": dense(next(ks), (N_LANG_IDS, HIDDEN)),
        "emb_g": jnp.ones((1, HIDDEN), jnp.float32),
        "emb_b": jnp.zeros((1, HIDDEN), jnp.float32),
        "wqkv": wqkv, "bqkv": bqkv,
        "wo": dense(next(ks), (NUM_LAYERS, HIDDEN, HIDDEN)),
        "bo": jnp.zeros((NUM_LAYERS, 1, HIDDEN), jnp.float32),
        "g1": jnp.ones((NUM_LAYERS, 1, HIDDEN), jnp.float32),
        "be1": jnp.zeros((NUM_LAYERS, 1, HIDDEN), jnp.float32),
        "wi": dense(next(ks), (NUM_LAYERS, HIDDEN, FFN)),
        "bi": jnp.zeros((NUM_LAYERS, 1, FFN), jnp.float32),
        "wo2": dense(next(ks), (NUM_LAYERS, FFN, HIDDEN)),
        "bo2": jnp.zeros((NUM_LAYERS, 1, HIDDEN), jnp.float32),
        "g2": jnp.ones((NUM_LAYERS, 1, HIDDEN), jnp.float32),
        "be2": jnp.zeros((NUM_LAYERS, 1, HIDDEN), jnp.float32),
        "wp": dense(next(ks), (HIDDEN, HIDDEN)),
        "bp": jnp.zeros((1, HIDDEN), jnp.float32),
        "wc": dense(next(ks), (HIDDEN, OUT_DIM)),
        "bc": jnp.zeros((1, OUT_DIM), jnp.float32),
    }


def build_merge_matrix(batch_splits, seq_len, max_words):
    """Averaging matrix implementing merge_subword_encodings_for_words(mode='avg')
    + pad_sequence(padding_value=0): word w of batch b averages its subword
    positions (skipping [CLS] at 0); unused word rows stay zero."""
    mat = np.zeros((len(batch_splits), max_words, seq_len), dtype=np.float32)
    for b, splits in enumerate(batch_splits):
        pos = 1  # skip [CLS]
        for w, n in enumerate(splits):
            mat[b, w, pos:pos + n] = 1.0 / n
            pos += n
    return jnp.asarray(mat)


# ----------------------------- forward ----------------------------------------
def whole_word_bert_forward(params, input_ids, attention_mask, token_type_ids,
                            merge_matrix, targets=None):
    """Mirrors WholeWordBertXXXInformedMLP.custom_forward:
       returns {'bert_merged_encodings', 'pooler_output', 'logits'[, 'loss']}."""
    B, S = input_ids.shape
    # TODO(synk): bert_subword_tokenize / checkpoint loading have no Pallas
    # equivalent; subword ids, lang-id token types and word splits are inputs.
    # Embedding gathers stay in plain JAX glue; everything after runs in ONE
    # fused Pallas kernel with all tensors resident in VMEM.
    emb = (params["word_emb"][input_ids]
           + params["pos_emb"][jnp.arange(S)][None, :, :]
           + params["type_emb"][token_type_ids]).astype(jnp.float32)
    attn_bias = ((1.0 - attention_mask.astype(jnp.float32)) * -1e9).reshape(B, 1, S)
    if targets is None:
        onehot = jnp.zeros((B, OUT_DIM), jnp.float32)
    else:
        onehot = jax.nn.one_hot(targets, OUT_DIM, dtype=jnp.float32)

    kernel = functools.partial(
        fused_bert_kernel, num_layers=NUM_LAYERS, num_heads=NUM_HEADS,
        head_dim=HEAD_DIM, batch=B, seq=S)

    out_shapes = (
        jax.ShapeDtypeStruct((B, merge_matrix.shape[1], HIDDEN), jnp.float32),
        jax.ShapeDtypeStruct((B, HIDDEN), jnp.float32),
        jax.ShapeDtypeStruct((B, OUT_DIM), jnp.float32),
        jax.ShapeDtypeStruct((1, 1), jnp.float32),
    )
    merged, pooled, logits, loss = pl.pallas_call(
        kernel, out_shape=out_shapes,
    )(emb, attn_bias, merge_matrix, onehot,
      params["emb_g"], params["emb_b"],
      params["wqkv"], params["bqkv"], params["wo"], params["bo"],
      params["g1"], params["be1"],
      params["wi"], params["bi"], params["wo2"], params["bo2"],
      params["g2"], params["be2"],
      params["wp"], params["bp"], params["wc"], params["bc"])

    out = {"bert_merged_encodings": merged,
           "pooler_output": pooled,
           "logits": logits}
    if targets is not None:
        out["loss"] = loss[0, 0]
    return out


# ----------------------------- main -------------------------------------------
if __name__ == "__main__":
    key = jax.random.PRNGKey(0)
    pkey, ikey = jax.random.split(key)
    params = init_params(pkey)

    input_ids = jax.random.randint(ikey, (BATCH, SEQ), 0, VOCAB, dtype=jnp.int32)
    attention_mask = jnp.array([[1, 1, 1, 1, 1, 1, 1, 1],
                                [1, 1, 1, 1, 1, 0, 0, 0]], dtype=jnp.int32)
    # lang ids used as token-type ids (type_vocab_size = n_lang_ids);
    # padded positions use token_type_pad_idx.
    token_type_pad_idx = N_LANG_IDS - 1
    token_type_ids = jnp.array(
        [[0, 1, 1, 2, 2, 1, 1, 0],
         [0, 2, 2, 1, 0, token_type_pad_idx, token_type_pad_idx,
          token_type_pad_idx]], dtype=jnp.int32)
    # subwords-per-word splits (excluding [CLS]/[SEP]) for each sentence
    batch_splits = [[2, 3, 1], [1, 2]]
    merge_matrix = build_merge_matrix(batch_splits, SEQ, MAX_WORDS)
    targets = jnp.array([0, 2], dtype=jnp.int32)

    out = whole_word_bert_forward(params, input_ids, attention_mask,
                                  token_type_ids, merge_matrix, targets)
    logits = jax.block_until_ready(out["logits"])
    loss = jax.block_until_ready(out["loss"])
    merged = jax.block_until_ready(out["bert_merged_encodings"])
    pooled = jax.block_until_ready(out["pooler_output"])

    assert logits.shape == (BATCH, OUT_DIM)
    assert pooled.shape == (BATCH, HIDDEN)
    assert merged.shape == (BATCH, MAX_WORDS, HIDDEN)
    assert jnp.isfinite(logits).all() and jnp.isfinite(loss)
    assert jnp.isfinite(merged).all() and jnp.isfinite(pooled).all()
    print("KERNEL_OK")
</pallas_src>

<mosaic_0001>
module attributes {stable_mosaic.version = 11 : i64} {
  func.func @fused_bert_kernel(%arg0: memref<2x8x32xf32, #tpu.memory_space<vmem>>, %arg1: memref<2x1x8xf32, #tpu.memory_space<vmem>>, %arg2: memref<2x8x8xf32, #tpu.memory_space<vmem>>, %arg3: memref<2x3xf32, #tpu.memory_space<vmem>>, %arg4: memref<1x32xf32, #tpu.memory_space<vmem>>, %arg5: memref<1x32xf32, #tpu.memory_space<vmem>>, %arg6: memref<2x32x96xf32, #tpu.memory_space<vmem>>, %arg7: memref<2x1x96xf32, #tpu.memory_space<vmem>>, %arg8: memref<2x32x32xf32, #tpu.memory_space<vmem>>, %arg9: memref<2x1x32xf32, #tpu.memory_space<vmem>>, %arg10: memref<2x1x32xf32, #tpu.memory_space<vmem>>, %arg11: memref<2x1x32xf32, #tpu.memory_space<vmem>>, %arg12: memref<2x32x64xf32, #tpu.memory_space<vmem>>, %arg13: memref<2x1x64xf32, #tpu.memory_space<vmem>>, %arg14: memref<2x64x32xf32, #tpu.memory_space<vmem>>, %arg15: memref<2x1x32xf32, #tpu.memory_space<vmem>>, %arg16: memref<2x1x32xf32, #tpu.memory_space<vmem>>, %arg17: memref<2x1x32xf32, #tpu.memory_space<vmem>>, %arg18: memref<32x32xf32, #tpu.memory_space<vmem>>, %arg19: memref<1x32xf32, #tpu.memory_space<vmem>>, %arg20: memref<32x3xf32, #tpu.memory_space<vmem>>, %arg21: memref<1x3xf32, #tpu.memory_space<vmem>>, %arg22: memref<2x8x32xf32, #tpu.memory_space<vmem>>, %arg23: memref<2x32xf32, #tpu.memory_space<vmem>>, %arg24: memref<2x3xf32, #tpu.memory_space<vmem>>, %arg25: memref<1x1xf32, #tpu.memory_space<vmem>>) attributes {dimension_semantics = [], scalar_prefetch = 0 : i64, scratch_operands = 0 : i64, tpu.core_type = #tpu.core_type<tc>} {
    %c0 = arith.constant 0 : index
    %c0_0 = arith.constant 0 : index
    %c0_1 = arith.constant 0 : index
    %0 = vector.load %arg0[%c0, %c0_0, %c0_1] : memref<2x8x32xf32, #tpu.memory_space<vmem>>, vector<2x8x32xf32>
    %1 = vector.shape_cast %0 : vector<2x8x32xf32> to vector<16x32xf32>
    %c0_2 = arith.constant 0 : index
    %c0_3 = arith.constant 0 : index
    %2 = vector.load %arg4[%c0_2, %c0_3] : memref<1x32xf32, #tpu.memory_space<vmem>>, vector<1x32xf32>
    %c0_4 = arith.constant 0 : index
    %c0_5 = arith.constant 0 : index
    %3 = vector.load %arg5[%c0_4, %c0_5] : memref<1x32xf32, #tpu.memory_space<vmem>>, vector<1x32xf32>
    %cst = arith.constant dense<0.000000e+00> : vector<16xf32>
    %4 = vector.multi_reduction <add>, %1, %cst [1] : vector<16x32xf32> to vector<16xf32>
    %5 = vector.shape_cast %4 : vector<16xf32> to vector<16x1xf32>
    %cst_6 = arith.constant 3.200000e+01 : f32
    %6 = vector.broadcast %cst_6 : f32 to vector<16x1xf32>
    %7 = arith.divf %5, %6 : vector<16x1xf32>
    %8 = vector.broadcast %7 : vector<16x1xf32> to vector<16x32xf32>
    %9 = arith.subf %1, %8 : vector<16x32xf32>
    %10 = vector.broadcast %7 : vector<16x1xf32> to vector<16x32xf32>
    %11 = arith.subf %1, %10 : vector<16x32xf32>
    %12 = arith.mulf %9, %11 : vector<16x32xf32>
    %cst_7 = arith.constant dense<0.000000e+00> : vector<16xf32>
    %13 = vector.multi_reduction <add>, %12, %cst_7 [1] : vector<16x32xf32> to vector<16xf32>
    %14 = vector.shape_cast %13 : vector<16xf32> to vector<16x1xf32>
    %cst_8 = arith.constant 3.200000e+01 : f32
    %15 = vector.broadcast %cst_8 : f32 to vector<16x1xf32>
    %16 = arith.divf %14, %15 : vector<16x1xf32>
    %17 = vector.broadcast %7 : vector<16x1xf32> to vector<16x32xf32>
    %18 = arith.subf %1, %17 : vector<16x32xf32>
    %cst_9 = arith.constant 9.99999996E-13 : f32
    %19 = vector.broadcast %cst_9 : f32 to vector<16x1xf32>
    %20 = arith.addf %16, %19 : vector<16x1xf32>
    %21 = math.rsqrt %20 : vector<16x1xf32>
    %22 = vector.broadcast %21 : vector<16x1xf32> to vector<16x32xf32>
    %23 = arith.mulf %18, %22 : vector<16x32xf32>
    %24 = vector.broadcast %2 : vector<1x32xf32> to vector<16x32xf32>
    %25 = arith.mulf %23, %24 : vector<16x32xf32>
    %26 = vector.broadcast %3 : vector<1x32xf32> to vector<16x32xf32>
    %27 = arith.addf %25, %26 : vector<16x32xf32>
    %c0_10 = arith.constant 0 : index
    %c0_11 = arith.constant 0 : index
    %c0_12 = arith.constant 0 : index
    %28 = vector.load %arg1[%c0_10, %c0_11, %c0_12] : memref<2x1x8xf32, #tpu.memory_space<vmem>>, vector<2x1x8xf32>
    %c0_13 = arith.constant 0 : index
    %c0_14 = arith.constant 0 : index
    %c0_15 = arith.constant 0 : index
    %29 = vector.load %arg6[%c0_13, %c0_14, %c0_15] : memref<2x32x96xf32, #tpu.memory_space<vmem>>, vector<1x32x96xf32>
    %30 = vector.shape_cast %29 : vector<1x32x96xf32> to vector<32x96xf32>
    %cst_16 = arith.constant dense<0.000000e+00> : vector<16x96xf32>
    %31 = tpu.matmul %27, %30, %cst_16 {dimension_numbers = #tpu.dot_dimension_numbers<[1], [0], [0], [1], [0, 0, 1, 1], [], []>} : vector<16x32xf32>, vector<32x96xf32>, vector<16x96xf32> -> vector<16x96xf32>
    %c0_17 = arith.constant 0 : index
    %c0_18 = arith.constant 0 : index
    %c0_19 = arith.constant 0 : index
    %32 = vector.load %arg7[%c0_17, %c0_18, %c0_19] : memref<2x1x96xf32, #tpu.memory_space<vmem>>, vector<1x1x96xf32>
    %33 = vector.shape_cast %32 : vector<1x1x96xf32> to vector<1x96xf32>
    %34 = vector.broadcast %33 : vector<1x96xf32> to vector<16x96xf32>
    %35 = arith.addf %31, %34 : vector<16x96xf32>
    %36 = vector.extract_strided_slice %35 {offsets = [0, 0], sizes = [16, 16], strides = [1, 1]} : vector<16x96xf32> to vector<16x16xf32>
    %37 = vector.shape_cast %36 : vector<16x16xf32> to vector<2x8x16xf32>
    %38 = vector.extract_strided_slice %35 {offsets = [0, 32], sizes = [16, 16], strides = [1, 1]} : vector<16x96xf32> to vector<16x16xf32>
    %39 = vector.shape_cast %38 : vector<16x16xf32> to vector<2x8x16xf32>
    %40 = vector.extract_strided_slice %35 {offsets = [0, 64], sizes = [16, 16], strides = [1, 1]} : vector<16x96xf32> to vector<16x16xf32>
    %41 = vector.shape_cast %40 : vector<16x16xf32> to vector<2x8x16xf32>
    "tpu.trace_start"() <{level = 10 : i32, message = "bqd,bkd->bqk"}> : () -> ()
    %cst_20 = arith.constant dense<0.000000e+00> : vector<2x8x8xf32>
    %42 = tpu.matmul %37, %39, %cst_20 {dimension_numbers = #tpu.dot_dimension_numbers<[2], [2], [1], [1], [0, 0, 0, 1, 1, 1], [0], [0]>} : vector<2x8x16xf32>, vector<2x8x16xf32>, vector<2x8x8xf32> -> vector<2x8x8xf32>
    "tpu.trace_stop"() : () -> ()
    %43 = vector.broadcast %28 : vector<2x1x8xf32> to vector<2x8x8xf32>
    %44 = arith.addf %42, %43 : vector<2x8x8xf32>
    %cst_21 = arith.constant dense<0xFF800000> : vector<2x8xf32>
    %45 = vector.multi_reduction <maximumf>, %44, %cst_21 [2] : vector<2x8x8xf32> to vector<2x8xf32>
    %46 = vector.shape_cast %45 : vector<2x8xf32> to vector<2x8x1xf32>
    %47 = vector.broadcast %46 : vector<2x8x1xf32> to vector<2x8x8xf32>
    %48 = arith.subf %44, %47 : vector<2x8x8xf32>
    %49 = math.exp %48 : vector<2x8x8xf32>
    %cst_22 = arith.constant dense<0.000000e+00> : vector<2x8xf32>
    %50 = vector.multi_reduction <add>, %49, %cst_22 [2] : vector<2x8x8xf32> to vector<2x8xf32>
    %51 = vector.shape_cast %50 : vector<2x8xf32> to vector<2x8x1xf32>
    %52 = tpu.reciprocal %51 {approx = true} : vector<2x8x1xf32> -> vector<2x8x1xf32>
    %53 = vector.broadcast %52 : vector<2x8x1xf32> to vector<2x8x8xf32>
    %54 = arith.mulf %49, %53 : vector<2x8x8xf32>
    "tpu.trace_start"() <{level = 10 : i32, message = "bqk,bkd->bqd"}> : () -> ()
    %cst_23 = arith.constant dense<0.000000e+00> : vector<2x8x16xf32>
    %55 = tpu.matmul %54, %41, %cst_23 {dimension_numbers = #tpu.dot_dimension_numbers<[2], [1], [1], [2], [0, 0, 0, 1, 1, 2], [0], [0]>} : vector<2x8x8xf32>, vector<2x8x16xf32>, vector<2x8x16xf32> -> vector<2x8x16xf32>
    "tpu.trace_stop"() : () -> ()
    %56 = vector.extract_strided_slice %35 {offsets = [0, 16], sizes = [16, 16], strides = [1, 1]} : vector<16x96xf32> to vector<16x16xf32>
    %57 = vector.shape_cast %56 : vector<16x16xf32> to vector<2x8x16xf32>
    %58 = vector.extract_strided_slice %35 {offsets = [0, 48], sizes = [16, 16], strides = [1, 1]} : vector<16x96xf32> to vector<16x16xf32>
    %59 = vector.shape_cast %58 : vector<16x16xf32> to vector<2x8x16xf32>
    %60 = vector.extract_strided_slice %35 {offsets = [0, 80], sizes = [16, 16], strides = [1, 1]} : vector<16x96xf32> to vector<16x16xf32>
    %61 = vector.shape_cast %60 : vector<16x16xf32> to vector<2x8x16xf32>
    "tpu.trace_start"() <{level = 10 : i32, message = "bqd,bkd->bqk"}> : () -> ()
    %cst_24 = arith.constant dense<0.000000e+00> : vector<2x8x8xf32>
    %62 = tpu.matmul %57, %59, %cst_24 {dimension_numbers = #tpu.dot_dimension_numbers<[2], [2], [1], [1], [0, 0, 0, 1, 1, 1], [0], [0]>} : vector<2x8x16xf32>, vector<2x8x16xf32>, vector<2x8x8xf32> -> vector<2x8x8xf32>
    "tpu.trace_stop"() : () -> ()
    %63 = vector.broadcast %28 : vector<2x1x8xf32> to vector<2x8x8xf32>
    %64 = arith.addf %62, %63 : vector<2x8x8xf32>
    %cst_25 = arith.constant dense<0xFF800000> : vector<2x8xf32>
    %65 = vector.multi_reduction <maximumf>, %64, %cst_25 [2] : vector<2x8x8xf32> to vector<2x8xf32>
    %66 = vector.shape_cast %65 : vector<2x8xf32> to vector<2x8x1xf32>
    %67 = vector.broadcast %66 : vector<2x8x1xf32> to vector<2x8x8xf32>
    %68 = arith.subf %64, %67 : vector<2x8x8xf32>
    %69 = math.exp %68 : vector<2x8x8xf32>
    %cst_26 = arith.constant dense<0.000000e+00> : vector<2x8xf32>
    %70 = vector.multi_reduction <add>, %69, %cst_26 [2] : vector<2x8x8xf32> to vector<2x8xf32>
    %71 = vector.shape_cast %70 : vector<2x8xf32> to vector<2x8x1xf32>
    %72 = tpu.reciprocal %71 {approx = true} : vector<2x8x1xf32> -> vector<2x8x1xf32>
    %73 = vector.broadcast %72 : vector<2x8x1xf32> to vector<2x8x8xf32>
    %74 = arith.mulf %69, %73 : vector<2x8x8xf32>
    "tpu.trace_start"() <{level = 10 : i32, message = "bqk,bkd->bqd"}> : () -> ()
    %cst_27 = arith.constant dense<0.000000e+00> : vector<2x8x16xf32>
    %75 = tpu.matmul %74, %61, %cst_27 {dimension_numbers = #tpu.dot_dimension_numbers<[2], [1], [1], [2], [0, 0, 0, 1, 1, 2], [0], [0]>} : vector<2x8x8xf32>, vector<2x8x16xf32>, vector<2x8x16xf32> -> vector<2x8x16xf32>
    "tpu.trace_stop"() : () -> ()
    %76 = tpu.concatenate %55, %75 in 2 : vector<2x8x16xf32>, vector<2x8x16xf32> -> vector<2x8x32xf32>
    %77 = vector.shape_cast %76 : vector<2x8x32xf32> to vector<16x32xf32>
    %c0_28 = arith.constant 0 : index
    %c0_29 = arith.constant 0 : index
    %c0_30 = arith.constant 0 : index
    %78 = vector.load %arg8[%c0_28, %c0_29, %c0_30] : memref<2x32x32xf32, #tpu.memory_space<vmem>>, vector<1x32x32xf32>
    %79 = vector.shape_cast %78 : vector<1x32x32xf32> to vector<32x32xf32>
    %cst_31 = arith.constant dense<0.000000e+00> : vector<16x32xf32>
    %80 = tpu.matmul %77, %79, %cst_31 {dimension_numbers = #tpu.dot_dimension_numbers<[1], [0], [0], [1], [0, 0, 1, 1], [], []>} : vector<16x32xf32>, vector<32x32xf32>, vector<16x32xf32> -> vector<16x32xf32>
    %c0_32 = arith.constant 0 : index
    %c0_33 = arith.constant 0 : index
    %c0_34 = arith.constant 0 : index
    %81 = vector.load %arg9[%c0_32, %c0_33, %c0_34] : memref<2x1x32xf32, #tpu.memory_space<vmem>>, vector<1x1x32xf32>
    %82 = vector.shape_cast %81 : vector<1x1x32xf32> to vector<1x32xf32>
    %83 = vector.broadcast %82 : vector<1x32xf32> to vector<16x32xf32>
    %84 = arith.addf %80, %83 : vector<16x32xf32>
    %85 = arith.addf %27, %84 : vector<16x32xf32>
    %c0_35 = arith.constant 0 : index
    %c0_36 = arith.constant 0 : index
    %c0_37 = arith.constant 0 : index
    %86 = vector.load %arg10[%c0_35, %c0_36, %c0_37] : memref<2x1x32xf32, #tpu.memory_space<vmem>>, vector<1x1x32xf32>
    %87 = vector.shape_cast %86 : vector<1x1x32xf32> to vector<1x32xf32>
    %c0_38 = arith.constant 0 : index
    %c0_39 = arith.constant 0 : index
    %c0_40 = arith.constant 0 : index
    %88 = vector.load %arg11[%c0_38, %c0_39, %c0_40] : memref<2x1x32xf32, #tpu.memory_space<vmem>>, vector<1x1x32xf32>
    %89 = vector.shape_cast %88 : vector<1x1x32xf32> to vector<1x32xf32>
    %cst_41 = arith.constant dense<0.000000e+00> : vector<16xf32>
    %90 = vector.multi_reduction <add>, %85, %cst_41 [1] : vector<16x32xf32> to vector<16xf32>
    %91 = vector.shape_cast %90 : vector<16xf32> to vector<16x1xf32>
    %cst_42 = arith.constant 3.200000e+01 : f32
    %92 = vector.broadcast %cst_42 : f32 to vector<16x1xf32>
    %93 = arith.divf %91, %92 : vector<16x1xf32>
    %94 = vector.broadcast %93 : vector<16x1xf32> to vector<16x32xf32>
    %95 = arith.subf %85, %94 : vector<16x32xf32>
    %96 = vector.broadcast %93 : vector<16x1xf32> to vector<16x32xf32>
    %97 = arith.subf %85, %96 : vector<16x32xf32>
    %98 = arith.mulf %95, %97 : vector<16x32xf32>
    %cst_43 = arith.constant dense<0.000000e+00> : vector<16xf32>
    %99 = vector.multi_reduction <add>, %98, %cst_43 [1] : vector<16x32xf32> to vector<16xf32>
    %100 = vector.shape_cast %99 : vector<16xf32> to vector<16x1xf32>
    %cst_44 = arith.constant 3.200000e+01 : f32
    %101 = vector.broadcast %cst_44 : f32 to vector<16x1xf32>
    %102 = arith.divf %100, %101 : vector<16x1xf32>
    %103 = vector.broadcast %93 : vector<16x1xf32> to vector<16x32xf32>
    %104 = arith.subf %85, %103 : vector<16x32xf32>
    %cst_45 = arith.constant 9.99999996E-13 : f32
    %105 = vector.broadcast %cst_45 : f32 to vector<16x1xf32>
    %106 = arith.addf %102, %105 : vector<16x1xf32>
    %107 = math.rsqrt %106 : vector<16x1xf32>
    %108 = vector.broadcast %107 : vector<16x1xf32> to vector<16x32xf32>
    %109 = arith.mulf %104, %108 : vector<16x32xf32>
    %110 = vector.broadcast %87 : vector<1x32xf32> to vector<16x32xf32>
    %111 = arith.mulf %109, %110 : vector<16x32xf32>
    %112 = vector.broadcast %89 : vector<1x32xf32> to vector<16x32xf32>
    %113 = arith.addf %111, %112 : vector<16x32xf32>
    %c0_46 = arith.constant 0 : index
    %c0_47 = arith.constant 0 : index
    %c0_48 = arith.constant 0 : index
    %114 = vector.load %arg12[%c0_46, %c0_47, %c0_48] : memref<2x32x64xf32, #tpu.memory_space<vmem>>, vector<1x32x64xf32>
    %115 = vector.shape_cast %114 : vector<1x32x64xf32> to vector<32x64xf32>
    %cst_49 = arith.constant dense<0.000000e+00> : vector<16x64xf32>
    %116 = tpu.matmul %113, %115, %cst_49 {dimension_numbers = #tpu.dot_dimension_numbers<[1], [0], [0], [1], [0, 0, 1, 1], [], []>} : vector<16x32xf32>, vector<32x64xf32>, vector<16x64xf32> -> vector<16x64xf32>
    %c0_50 = arith.constant 0 : index
    %c0_51 = arith.constant 0 : index
    %c0_52 = arith.constant 0 : index
    %117 = vector.load %arg13[%c0_50, %c0_51, %c0_52] : memref<2x1x64xf32, #tpu.memory_space<vmem>>, vector<1x1x64xf32>
    %118 = vector.shape_cast %117 : vector<1x1x64xf32> to vector<1x64xf32>
    %119 = vector.broadcast %118 : vector<1x64xf32> to vector<16x64xf32>
    %120 = arith.addf %116, %119 : vector<16x64xf32>
    %121 = arith.mulf %120, %120 : vector<16x64xf32>
    %122 = arith.mulf %120, %121 : vector<16x64xf32>
    %cst_53 = arith.constant 4.471500e-02 : f32
    %123 = vector.broadcast %cst_53 : f32 to vector<16x64xf32>
    %124 = arith.mulf %123, %122 : vector<16x64xf32>
    %125 = arith.addf %120, %124 : vector<16x64xf32>
    %cst_54 = arith.constant 0.797884583 : f32
    %126 = vector.broadcast %cst_54 : f32 to vector<16x64xf32>
    %127 = arith.mulf %126, %125 : vector<16x64xf32>
    %128 = math.tanh %127 : vector<16x64xf32>
    %cst_55 = arith.constant 1.000000e+00 : f32
    %129 = vector.broadcast %cst_55 : f32 to vector<16x64xf32>
    %130 = arith.addf %129, %128 : vector<16x64xf32>
    %cst_56 = arith.constant 5.000000e-01 : f32
    %131 = vector.broadcast %cst_56 : f32 to vector<16x64xf32>
    %132 = arith.mulf %131, %130 : vector<16x64xf32>
    %133 = arith.mulf %120, %132 : vector<16x64xf32>
    %c0_57 = arith.constant 0 : index
    %c0_58 = arith.constant 0 : index
    %c0_59 = arith.constant 0 : index
    %134 = vector.load %arg14[%c0_57, %c0_58, %c0_59] : memref<2x64x32xf32, #tpu.memory_space<vmem>>, vector<1x64x32xf32>
    %135 = vector.shape_cast %134 : vector<1x64x32xf32> to vector<64x32xf32>
    %cst_60 = arith.constant dense<0.000000e+00> : vector<16x32xf32>
    %136 = tpu.matmul %133, %135, %cst_60 {dimension_numbers = #tpu.dot_dimension_numbers<[1], [0], [0], [1], [0, 0, 1, 1], [], []>} : vector<16x64xf32>, vector<64x32xf32>, vector<16x32xf32> -> vector<16x32xf32>
    %c0_61 = arith.constant 0 : index
    %c0_62 = arith.constant 0 : index
    %c0_63 = arith.constant 0 : index
    %137 = vector.load %arg15[%c0_61, %c0_62, %c0_63] : memref<2x1x32xf32, #tpu.memory_space<vmem>>, vector<1x1x32xf32>
    %138 = vector.shape_cast %137 : vector<1x1x32xf32> to vector<1x32xf32>
    %139 = vector.broadcast %138 : vector<1x32xf32> to vector<16x32xf32>
    %140 = arith.addf %136, %139 : vector<16x32xf32>
    %141 = arith.addf %113, %140 : vector<16x32xf32>
    %c0_64 = arith.constant 0 : index
    %c0_65 = arith.constant 0 : index
    %c0_66 = arith.constant 0 : index
    %142 = vector.load %arg16[%c0_64, %c0_65, %c0_66] : memref<2x1x32xf32, #tpu.memory_space<vmem>>, vector<1x1x32xf32>
    %143 = vector.shape_cast %142 : vector<1x1x32xf32> to vector<1x32xf32>
    %c0_67 = arith.constant 0 : index
    %c0_68 = arith.constant 0 : index
    %c0_69 = arith.constant 0 : index
    %144 = vector.load %arg17[%c0_67, %c0_68, %c0_69] : memref<2x1x32xf32, #tpu.memory_space<vmem>>, vector<1x1x32xf32>
    %145 = vector.shape_cast %144 : vector<1x1x32xf32> to vector<1x32xf32>
    %cst_70 = arith.constant dense<0.000000e+00> : vector<16xf32>
    %146 = vector.multi_reduction <add>, %141, %cst_70 [1] : vector<16x32xf32> to vector<16xf32>
    %147 = vector.shape_cast %146 : vector<16xf32> to vector<16x1xf32>
    %cst_71 = arith.constant 3.200000e+01 : f32
    %148 = vector.broadcast %cst_71 : f32 to vector<16x1xf32>
    %149 = arith.divf %147, %148 : vector<16x1xf32>
    %150 = vector.broadcast %149 : vector<16x1xf32> to vector<16x32xf32>
    %151 = arith.subf %141, %150 : vector<16x32xf32>
    %152 = vector.broadcast %149 : vector<16x1xf32> to vector<16x32xf32>
    %153 = arith.subf %141, %152 : vector<16x32xf32>
    %154 = arith.mulf %151, %153 : vector<16x32xf32>
    %cst_72 = arith.constant dense<0.000000e+00> : vector<16xf32>
    %155 = vector.multi_reduction <add>, %154, %cst_72 [1] : vector<16x32xf32> to vector<16xf32>
    %156 = vector.shape_cast %155 : vector<16xf32> to vector<16x1xf32>
    %cst_73 = arith.constant 3.200000e+01 : f32
    %157 = vector.broadcast %cst_73 : f32 to vector<16x1xf32>
    %158 = arith.divf %156, %157 : vector<16x1xf32>
    %159 = vector.broadcast %149 : vector<16x1xf32> to vector<16x32xf32>
    %160 = arith.subf %141, %159 : vector<16x32xf32>
    %cst_74 = arith.constant 9.99999996E-13 : f32
    %161 = vector.broadcast %cst_74 : f32 to vector<16x1xf32>
    %162 = arith.addf %158, %161 : vector<16x1xf32>
    %163 = math.rsqrt %162 : vector<16x1xf32>
    %164 = vector.broadcast %163 : vector<16x1xf32> to vector<16x32xf32>
    %165 = arith.mulf %160, %164 : vector<16x32xf32>
    %166 = vector.broadcast %143 : vector<1x32xf32> to vector<16x32xf32>
    %167 = arith.mulf %165, %166 : vector<16x32xf32>
    %168 = vector.broadcast %145 : vector<1x32xf32> to vector<16x32xf32>
    %169 = arith.addf %167, %168 : vector<16x32xf32>
    %c1 = arith.constant 1 : index
    %c0_75 = arith.constant 0 : index
    %c0_76 = arith.constant 0 : index
    %170 = vector.load %arg6[%c1, %c0_75, %c0_76] : memref<2x32x96xf32, #tpu.memory_space<vmem>>, vector<1x32x96xf32>
    %171 = vector.shape_cast %170 : vector<1x32x96xf32> to vector<32x96xf32>
    %cst_77 = arith.constant dense<0.000000e+00> : vector<16x96xf32>
    %172 = tpu.matmul %169, %171, %cst_77 {dimension_numbers = #tpu.dot_dimension_numbers<[1], [0], [0], [1], [0, 0, 1, 1], [], []>} : vector<16x32xf32>, vector<32x96xf32>, vector<16x96xf32> -> vector<16x96xf32>
    %c1_78 = arith.constant 1 : index
    %c0_79 = arith.constant 0 : index
    %c0_80 = arith.constant 0 : index
    %173 = vector.load %arg7[%c1_78, %c0_79, %c0_80] : memref<2x1x96xf32, #tpu.memory_space<vmem>>, vector<1x1x96xf32>
    %174 = vector.shape_cast %173 : vector<1x1x96xf32> to vector<1x96xf32>
    %175 = vector.broadcast %174 : vector<1x96xf32> to vector<16x96xf32>
    %176 = arith.addf %172, %175 : vector<16x96xf32>
    %177 = vector.extract_strided_slice %176 {offsets = [0, 0], sizes = [16, 16], strides = [1, 1]} : vector<16x96xf32> to vector<16x16xf32>
    %178 = vector.shape_cast %177 : vector<16x16xf32> to vector<2x8x16xf32>
    %179 = vector.extract_strided_slice %176 {offsets = [0, 32], sizes = [16, 16], strides = [1, 1]} : vector<16x96xf32> to vector<16x16xf32>
    %180 = vector.shape_cast %179 : vector<16x16xf32> to vector<2x8x16xf32>
    %181 = vector.extract_strided_slice %176 {offsets = [0, 64], sizes = [16, 16], strides = [1, 1]} : vector<16x96xf32> to vector<16x16xf32>
    %182 = vector.shape_cast %181 : vector<16x16xf32> to vector<2x8x16xf32>
    "tpu.trace_start"() <{level = 10 : i32, message = "bqd,bkd->bqk"}> : () -> ()
    %cst_81 = arith.constant dense<0.000000e+00> : vector<2x8x8xf32>
    %183 = tpu.matmul %178, %180, %cst_81 {dimension_numbers = #tpu.dot_dimension_numbers<[2], [2], [1], [1], [0, 0, 0, 1, 1, 1], [0], [0]>} : vector<2x8x16xf32>, vector<2x8x16xf32>, vector<2x8x8xf32> -> vector<2x8x8xf32>
    "tpu.trace_stop"() : () -> ()
    %184 = vector.broadcast %28 : vector<2x1x8xf32> to vector<2x8x8xf32>
    %185 = arith.addf %183, %184 : vector<2x8x8xf32>
    %cst_82 = arith.constant dense<0xFF800000> : vector<2x8xf32>
    %186 = vector.multi_reduction <maximumf>, %185, %cst_82 [2] : vector<2x8x8xf32> to vector<2x8xf32>
    %187 = vector.shape_cast %186 : vector<2x8xf32> to vector<2x8x1xf32>
    %188 = vector.broadcast %187 : vector<2x8x1xf32> to vector<2x8x8xf32>
    %189 = arith.subf %185, %188 : vector<2x8x8xf32>
    %190 = math.exp %189 : vector<2x8x8xf32>
    %cst_83 = arith.constant dense<0.000000e+00> : vector<2x8xf32>
    %191 = vector.multi_reduction <add>, %190, %cst_83 [2] : vector<2x8x8xf32> to vector<2x8xf32>
    %192 = vector.shape_cast %191 : vector<2x8xf32> to vector<2x8x1xf32>
    %193 = tpu.reciprocal %192 {approx = true} : vector<2x8x1xf32> -> vector<2x8x1xf32>
    %194 = vector.broadcast %193 : vector<2x8x1xf32> to vector<2x8x8xf32>
    %195 = arith.mulf %190, %194 : vector<2x8x8xf32>
    "tpu.trace_start"() <{level = 10 : i32, message = "bqk,bkd->bqd"}> : () -> ()
    %cst_84 = arith.constant dense<0.000000e+00> : vector<2x8x16xf32>
    %196 = tpu.matmul %195, %182, %cst_84 {dimension_numbers = #tpu.dot_dimension_numbers<[2], [1], [1], [2], [0, 0, 0, 1, 1, 2], [0], [0]>} : vector<2x8x8xf32>, vector<2x8x16xf32>, vector<2x8x16xf32> -> vector<2x8x16xf32>
    "tpu.trace_stop"() : () -> ()
    %197 = vector.extract_strided_slice %176 {offsets = [0, 16], sizes = [16, 16], strides = [1, 1]} : vector<16x96xf32> to vector<16x16xf32>
    %198 = vector.shape_cast %197 : vector<16x16xf32> to vector<2x8x16xf32>
    %199 = vector.extract_strided_slice %176 {offsets = [0, 48], sizes = [16, 16], strides = [1, 1]} : vector<16x96xf32> to vector<16x16xf32>
    %200 = vector.shape_cast %199 : vector<16x16xf32> to vector<2x8x16xf32>
    %201 = vector.extract_strided_slice %176 {offsets = [0, 80], sizes = [16, 16], strides = [1, 1]} : vector<16x96xf32> to vector<16x16xf32>
    %202 = vector.shape_cast %201 : vector<16x16xf32> to vector<2x8x16xf32>
    "tpu.trace_start"() <{level = 10 : i32, message = "bqd,bkd->bqk"}> : () -> ()
    %cst_85 = arith.constant dense<0.000000e+00> : vector<2x8x8xf32>
    %203 = tpu.matmul %198, %200, %cst_85 {dimension_numbers = #tpu.dot_dimension_numbers<[2], [2], [1], [1], [0, 0, 0, 1, 1, 1], [0], [0]>} : vector<2x8x16xf32>, vector<2x8x16xf32>, vector<2x8x8xf32> -> vector<2x8x8xf32>
    "tpu.trace_stop"() : () -> ()
    %204 = vector.broadcast %28 : vector<2x1x8xf32> to vector<2x8x8xf32>
    %205 = arith.addf %203, %204 : vector<2x8x8xf32>
    %cst_86 = arith.constant dense<0xFF800000> : vector<2x8xf32>
    %206 = vector.multi_reduction <maximumf>, %205, %cst_86 [2] : vector<2x8x8xf32> to vector<2x8xf32>
    %207 = vector.shape_cast %206 : vector<2x8xf32> to vector<2x8x1xf32>
    %208 = vector.broadcast %207 : vector<2x8x1xf32> to vector<2x8x8xf32>
    %209 = arith.subf %205, %208 : vector<2x8x8xf32>
    %210 = math.exp %209 : vector<2x8x8xf32>
    %cst_87 = arith.constant dense<0.000000e+00> : vector<2x8xf32>
    %211 = vector.multi_reduction <add>, %210, %cst_87 [2] : vector<2x8x8xf32> to vector<2x8xf32>
    %212 = vector.shape_cast %211 : vector<2x8xf32> to vector<2x8x1xf32>
    %213 = tpu.reciprocal %212 {approx = true} : vector<2x8x1xf32> -> vector<2x8x1xf32>
    %214 = vector.broadcast %213 : vector<2x8x1xf32> to vector<2x8x8xf32>
    %215 = arith.mulf %210, %214 : vector<2x8x8xf32>
    "tpu.trace_start"() <{level = 10 : i32, message = "bqk,bkd->bqd"}> : () -> ()
    %cst_88 = arith.constant dense<0.000000e+00> : vector<2x8x16xf32>
    %216 = tpu.matmul %215, %202, %cst_88 {dimension_numbers = #tpu.dot_dimension_numbers<[2], [1], [1], [2], [0, 0, 0, 1, 1, 2], [0], [0]>} : vector<2x8x8xf32>, vector<2x8x16xf32>, vector<2x8x16xf32> -> vector<2x8x16xf32>
    "tpu.trace_stop"() : () -> ()
    %217 = tpu.concatenate %196, %216 in 2 : vector<2x8x16xf32>, vector<2x8x16xf32> -> vector<2x8x32xf32>
    %218 = vector.shape_cast %217 : vector<2x8x32xf32> to vector<16x32xf32>
    %c1_89 = arith.constant 1 : index
    %c0_90 = arith.constant 0 : index
    %c0_91 = arith.constant 0 : index
    %219 = vector.load %arg8[%c1_89, %c0_90, %c0_91] : memref<2x32x32xf32, #tpu.memory_space<vmem>>, vector<1x32x32xf32>
    %220 = vector.shape_cast %219 : vector<1x32x32xf32> to vector<32x32xf32>
    %cst_92 = arith.constant dense<0.000000e+00> : vector<16x32xf32>
    %221 = tpu.matmul %218, %220, %cst_92 {dimension_numbers = #tpu.dot_dimension_numbers<[1], [0], [0], [1], [0, 0, 1, 1], [], []>} : vector<16x32xf32>, vector<32x32xf32>, vector<16x32xf32> -> vector<16x32xf32>
    %c1_93 = arith.constant 1 : index
    %c0_94 = arith.constant 0 : index
    %c0_95 = arith.constant 0 : index
    %222 = vector.load %arg9[%c1_93, %c0_94, %c0_95] : memref<2x1x32xf32, #tpu.memory_space<vmem>>, vector<1x1x32xf32>
    %223 = vector.shape_cast %222 : vector<1x1x32xf32> to vector<1x32xf32>
    %224 = vector.broadcast %223 : vector<1x32xf32> to vector<16x32xf32>
    %225 = arith.addf %221, %224 : vector<16x32xf32>
    %226 = arith.addf %169, %225 : vector<16x32xf32>
    %c1_96 = arith.constant 1 : index
    %c0_97 = arith.constant 0 : index
    %c0_98 = arith.constant 0 : index
    %227 = vector.load %arg10[%c1_96, %c0_97, %c0_98] : memref<2x1x32xf32, #tpu.memory_space<vmem>>, vector<1x1x32xf32>
    %228 = vector.shape_cast %227 : vector<1x1x32xf32> to vector<1x32xf32>
    %c1_99 = arith.constant 1 : index
    %c0_100 = arith.constant 0 : index
    %c0_101 = arith.constant 0 : index
    %229 = vector.load %arg11[%c1_99, %c0_100, %c0_101] : memref<2x1x32xf32, #tpu.memory_space<vmem>>, vector<1x1x32xf32>
    %230 = vector.shape_cast %229 : vector<1x1x32xf32> to vector<1x32xf32>
    %cst_102 = arith.constant dense<0.000000e+00> : vector<16xf32>
    %231 = vector.multi_reduction <add>, %226, %cst_102 [1] : vector<16x32xf32> to vector<16xf32>
    %232 = vector.shape_cast %231 : vector<16xf32> to vector<16x1xf32>
    %cst_103 = arith.constant 3.200000e+01 : f32
    %233 = vector.broadcast %cst_103 : f32 to vector<16x1xf32>
    %234 = arith.divf %232, %233 : vector<16x1xf32>
    %235 = vector.broadcast %234 : vector<16x1xf32> to vector<16x32xf32>
    %236 = arith.subf %226, %235 : vector<16x32xf32>
    %237 = vector.broadcast %234 : vector<16x1xf32> to vector<16x32xf32>
    %238 = arith.subf %226, %237 : vector<16x32xf32>
    %239 = arith.mulf %236, %238 : vector<16x32xf32>
    %cst_104 = arith.constant dense<0.000000e+00> : vector<16xf32>
    %240 = vector.multi_reduction <add>, %239, %cst_104 [1] : vector<16x32xf32> to vector<16xf32>
    %241 = vector.shape_cast %240 : vector<16xf32> to vector<16x1xf32>
    %cst_105 = arith.constant 3.200000e+01 : f32
    %242 = vector.broadcast %cst_105 : f32 to vector<16x1xf32>
    %243 = arith.divf %241, %242 : vector<16x1xf32>
    %244 = vector.broadcast %234 : vector<16x1xf32> to vector<16x32xf32>
    %245 = arith.subf %226, %244 : vector<16x32xf32>
    %cst_106 = arith.constant 9.99999996E-13 : f32
    %246 = vector.broadcast %cst_106 : f32 to vector<16x1xf32>
    %247 = arith.addf %243, %246 : vector<16x1xf32>
    %248 = math.rsqrt %247 : vector<16x1xf32>
    %249 = vector.broadcast %248 : vector<16x1xf32> to vector<16x32xf32>
    %250 = arith.mulf %245, %249 : vector<16x32xf32>
    %251 = vector.broadcast %228 : vector<1x32xf32> to vector<16x32xf32>
    %252 = arith.mulf %250, %251 : vector<16x32xf32>
    %253 = vector.broadcast %230 : vector<1x32xf32> to vector<16x32xf32>
    %254 = arith.addf %252, %253 : vector<16x32xf32>
    %c1_107 = arith.constant 1 : index
    %c0_108 = arith.constant 0 : index
    %c0_109 = arith.constant 0 : index
    %255 = vector.load %arg12[%c1_107, %c0_108, %c0_109] : memref<2x32x64xf32, #tpu.memory_space<vmem>>, vector<1x32x64xf32>
    %256 = vector.shape_cast %255 : vector<1x32x64xf32> to vector<32x64xf32>
    %cst_110 = arith.constant dense<0.000000e+00> : vector<16x64xf32>
    %257 = tpu.matmul %254, %256, %cst_110 {dimension_numbers = #tpu.dot_dimension_numbers<[1], [0], [0], [1], [0, 0, 1, 1], [], []>} : vector<16x32xf32>, vector<32x64xf32>, vector<16x64xf32> -> vector<16x64xf32>
    %c1_111 = arith.constant 1 : index
    %c0_112 = arith.constant 0 : index
    %c0_113 = arith.constant 0 : index
    %258 = vector.load %arg13[%c1_111, %c0_112, %c0_113] : memref<2x1x64xf32, #tpu.memory_space<vmem>>, vector<1x1x64xf32>
    %259 = vector.shape_cast %258 : vector<1x1x64xf32> to vector<1x64xf32>
    %260 = vector.broadcast %259 : vector<1x64xf32> to vector<16x64xf32>
    %261 = arith.addf %257, %260 : vector<16x64xf32>
    %262 = arith.mulf %261, %261 : vector<16x64xf32>
    %263 = arith.mulf %261, %262 : vector<16x64xf32>
    %cst_114 = arith.constant 4.471500e-02 : f32
    %264 = vector.broadcast %cst_114 : f32 to vector<16x64xf32>
    %265 = arith.mulf %264, %263 : vector<16x64xf32>
    %266 = arith.addf %261, %265 : vector<16x64xf32>
    %cst_115 = arith.constant 0.797884583 : f32
    %267 = vector.broadcast %cst_115 : f32 to vector<16x64xf32>
    %268 = arith.mulf %267, %266 : vector<16x64xf32>
    %269 = math.tanh %268 : vector<16x64xf32>
    %cst_116 = arith.constant 1.000000e+00 : f32
    %270 = vector.broadcast %cst_116 : f32 to vector<16x64xf32>
    %271 = arith.addf %270, %269 : vector<16x64xf32>
    %cst_117 = arith.constant 5.000000e-01 : f32
    %272 = vector.broadcast %cst_117 : f32 to vector<16x64xf32>
    %273 = arith.mulf %272, %271 : vector<16x64xf32>
    %274 = arith.mulf %261, %273 : vector<16x64xf32>
    %c1_118 = arith.constant 1 : index
    %c0_119 = arith.constant 0 : index
    %c0_120 = arith.constant 0 : index
    %275 = vector.load %arg14[%c1_118, %c0_119, %c0_120] : memref<2x64x32xf32, #tpu.memory_space<vmem>>, vector<1x64x32xf32>
    %276 = vector.shape_cast %275 : vector<1x64x32xf32> to vector<64x32xf32>
    %cst_121 = arith.constant dense<0.000000e+00> : vector<16x32xf32>
    %277 = tpu.matmul %274, %276, %cst_121 {dimension_numbers = #tpu.dot_dimension_numbers<[1], [0], [0], [1], [0, 0, 1, 1], [], []>} : vector<16x64xf32>, vector<64x32xf32>, vector<16x32xf32> -> vector<16x32xf32>
    %c1_122 = arith.constant 1 : index
    %c0_123 = arith.constant 0 : index
    %c0_124 = arith.constant 0 : index
    %278 = vector.load %arg15[%c1_122, %c0_123, %c0_124] : memref<2x1x32xf32, #tpu.memory_space<vmem>>, vector<1x1x32xf32>
    %279 = vector.shape_cast %278 : vector<1x1x32xf32> to vector<1x32xf32>
    %280 = vector.broadcast %279 : vector<1x32xf32> to vector<16x32xf32>
    %281 = arith.addf %277, %280 : vector<16x32xf32>
    %282 = arith.addf %254, %281 : vector<16x32xf32>
    %c1_125 = arith.constant 1 : index
    %c0_126 = arith.constant 0 : index
    %c0_127 = arith.constant 0 : index
    %283 = vector.load %arg16[%c1_125, %c0_126, %c0_127] : memref<2x1x32xf32, #tpu.memory_space<vmem>>, vector<1x1x32xf32>
    %284 = vector.shape_cast %283 : vector<1x1x32xf32> to vector<1x32xf32>
    %c1_128 = arith.constant 1 : index
    %c0_129 = arith.constant 0 : index
    %c0_130 = arith.constant 0 : index
    %285 = vector.load %arg17[%c1_128, %c0_129, %c0_130] : memref<2x1x32xf32, #tpu.memory_space<vmem>>, vector<1x1x32xf32>
    %286 = vector.shape_cast %285 : vector<1x1x32xf32> to vector<1x32xf32>
    %cst_131 = arith.constant dense<0.000000e+00> : vector<16xf32>
    %287 = vector.multi_reduction <add>, %282, %cst_131 [1] : vector<16x32xf32> to vector<16xf32>
    %288 = vector.shape_cast %287 : vector<16xf32> to vector<16x1xf32>
    %cst_132 = arith.constant 3.200000e+01 : f32
    %289 = vector.broadcast %cst_132 : f32 to vector<16x1xf32>
    %290 = arith.divf %288, %289 : vector<16x1xf32>
    %291 = vector.broadcast %290 : vector<16x1xf32> to vector<16x32xf32>
    %292 = arith.subf %282, %291 : vector<16x32xf32>
    %293 = vector.broadcast %290 : vector<16x1xf32> to vector<16x32xf32>
    %294 = arith.subf %282, %293 : vector<16x32xf32>
    %295 = arith.mulf %292, %294 : vector<16x32xf32>
    %cst_133 = arith.constant dense<0.000000e+00> : vector<16xf32>
    %296 = vector.multi_reduction <add>, %295, %cst_133 [1] : vector<16x32xf32> to vector<16xf32>
    %297 = vector.shape_cast %296 : vector<16xf32> to vector<16x1xf32>
    %cst_134 = arith.constant 3.200000e+01 : f32
    %298 = vector.broadcast %cst_134 : f32 to vector<16x1xf32>
    %299 = arith.divf %297, %298 : vector<16x1xf32>
    %300 = vector.broadcast %290 : vector<16x1xf32> to vector<16x32xf32>
    %301 = arith.subf %282, %300 : vector<16x32xf32>
    %cst_135 = arith.constant 9.99999996E-13 : f32
    %302 = vector.broadcast %cst_135 : f32 to vector<16x1xf32>
    %303 = arith.addf %299, %302 : vector<16x1xf32>
    %304 = math.rsqrt %303 : vector<16x1xf32>
    %305 = vector.broadcast %304 : vector<16x1xf32> to vector<16x32xf32>
    %306 = arith.mulf %301, %305 : vector<16x32xf32>
    %307 = vector.broadcast %284 : vector<1x32xf32> to vector<16x32xf32>
    %308 = arith.mulf %306, %307 : vector<16x32xf32>
    %309 = vector.broadcast %286 : vector<1x32xf32> to vector<16x32xf32>
    %310 = arith.addf %308, %309 : vector<16x32xf32>
    %311 = vector.shape_cast %310 : vector<16x32xf32> to vector<2x8x32xf32>
    %c0_136 = arith.constant 0 : index
    %c0_137 = arith.constant 0 : index
    %c0_138 = arith.constant 0 : index
    %312 = vector.load %arg2[%c0_136, %c0_137, %c0_138] : memref<2x8x8xf32, #tpu.memory_space<vmem>>, vector<2x8x8xf32>
    "tpu.trace_start"() <{level = 10 : i32, message = "bws,bsh->bwh"}> : () -> ()
    %cst_139 = arith.constant dense<0.000000e+00> : vector<2x8x32xf32>
    %313 = tpu.matmul %312, %311, %cst_139 {dimension_numbers = #tpu.dot_dimension_numbers<[2], [1], [1], [2], [0, 0, 0, 1, 1, 2], [0], [0]>} : vector<2x8x8xf32>, vector<2x8x32xf32>, vector<2x8x32xf32> -> vector<2x8x32xf32>
    "tpu.trace_stop"() : () -> ()
    %c0_140 = arith.constant 0 : index
    %c0_141 = arith.constant 0 : index
    %c0_142 = arith.constant 0 : index
    %314 = vector.load %arg22[%c0_140, %c0_141, %c0_142] : memref<2x8x32xf32, #tpu.memory_space<vmem>>, vector<2x8x32xf32>
    tpu.vector_store %arg22[%c0_140, %c0_141, %c0_142], %313 {strides = array<i32>} : memref<2x8x32xf32, #tpu.memory_space<vmem>>, vector<2x8x32xf32>,
    %315 = vector.extract_strided_slice %311 {offsets = [0, 0, 0], sizes = [2, 1, 32], strides = [1, 1, 1]} : vector<2x8x32xf32> to vector<2x1x32xf32>
    %316 = vector.shape_cast %315 : vector<2x1x32xf32> to vector<2x32xf32>
    %c0_143 = arith.constant 0 : index
    %c0_144 = arith.constant 0 : index
    %317 = vector.load %arg18[%c0_143, %c0_144] : memref<32x32xf32, #tpu.memory_space<vmem>>, vector<32x32xf32>
    %cst_145 = arith.constant dense<0.000000e+00> : vector<2x32xf32>
    %318 = tpu.matmul %316, %317, %cst_145 {dimension_numbers = #tpu.dot_dimension_numbers<[1], [0], [0], [1], [0, 0, 1, 1], [], []>} : vector<2x32xf32>, vector<32x32xf32>, vector<2x32xf32> -> vector<2x32xf32>
    %c0_146 = arith.constant 0 : index
    %c0_147 = arith.constant 0 : index
    %319 = vector.load %arg19[%c0_146, %c0_147] : memref<1x32xf32, #tpu.memory_space<vmem>>, vector<1x32xf32>
    %320 = vector.broadcast %319 : vector<1x32xf32> to vector<2x32xf32>
    %321 = arith.addf %318, %320 : vector<2x32xf32>
    %322 = math.tanh %321 : vector<2x32xf32>
    %c0_148 = arith.constant 0 : index
    %c0_149 = arith.constant 0 : index
    %323 = vector.load %arg23[%c0_148, %c0_149] : memref<2x32xf32, #tpu.memory_space<vmem>>, vector<2x32xf32>
    tpu.vector_store %arg23[%c0_148, %c0_149], %322 {strides = array<i32>} : memref<2x32xf32, #tpu.memory_space<vmem>>, vector<2x32xf32>,
    %c0_150 = arith.constant 0 : index
    %c0_151 = arith.constant 0 : index
    %324 = vector.load %arg20[%c0_150, %c0_151] : memref<32x3xf32, #tpu.memory_space<vmem>>, vector<32x3xf32>
    %cst_152 = arith.constant dense<0.000000e+00> : vector<2x3xf32>
    %325 = tpu.matmul %322, %324, %cst_152 {dimension_numbers = #tpu.dot_dimension_numbers<[1], [0], [0], [1], [0, 0, 1, 1], [], []>} : vector<2x32xf32>, vector<32x3xf32>, vector<2x3xf32> -> vector<2x3xf32>
    %c0_153 = arith.constant 0 : index
    %c0_154 = arith.constant 0 : index
    %326 = vector.load %arg21[%c0_153, %c0_154] : memref<1x3xf32, #tpu.memory_space<vmem>>, vector<1x3xf32>
    %327 = vector.broadcast %326 : vector<1x3xf32> to vector<2x3xf32>
    %328 = arith.addf %325, %327 : vector<2x3xf32>
    %c0_155 = arith.constant 0 : index
    %c0_156 = arith.constant 0 : index
    %329 = vector.load %arg24[%c0_155, %c0_156] : memref<2x3xf32, #tpu.memory_space<vmem>>, vector<2x3xf32>
    tpu.vector_store %arg24[%c0_155, %c0_156], %328 {strides = array<i32>} : memref<2x3xf32, #tpu.memory_space<vmem>>, vector<2x3xf32>,
    %cst_157 = arith.constant dense<0xFF800000> : vector<2xf32>
    %330 = vector.multi_reduction <maximumf>, %328, %cst_157 [1] : vector<2x3xf32> to vector<2xf32>
    %331 = vector.shape_cast %330 : vector<2xf32> to vector<2x1xf32>
    %332 = vector.broadcast %331 : vector<2x1xf32> to vector<2x3xf32>
    %333 = arith.subf %328, %332 : vector<2x3xf32>
    %334 = math.exp %333 : vector<2x3xf32>
    %cst_158 = arith.constant dense<0.000000e+00> : vector<2xf32>
    %335 = vector.multi_reduction <add>, %334, %cst_158 [1] : vector<2x3xf32> to vector<2xf32>
    %336 = vector.shape_cast %335 : vector<2xf32> to vector<2x1xf32>
    %337 = math.log %336 : vector<2x1xf32>
    %338 = arith.addf %331, %337 : vector<2x1xf32>
    %c0_159 = arith.constant 0 : index
    %c0_160 = arith.constant 0 : index
    %339 = vector.load %arg3[%c0_159, %c0_160] : memref<2x3xf32, #tpu.memory_space<vmem>>, vector<2x3xf32>
    %340 = arith.mulf %328, %339 : vector<2x3xf32>
    %cst_161 = arith.constant dense<0.000000e+00> : vector<2xf32>
    %341 = vector.multi_reduction <add>, %340, %cst_161 [1] : vector<2x3xf32> to vector<2xf32>
    %342 = vector.shape_cast %341 : vector<2xf32> to vector<2x1xf32>
    %343 = arith.subf %338, %342 : vector<2x1xf32>
    %cst_162 = arith.constant dense<0.000000e+00> : vector<1xf32>
    %344 = vector.multi_reduction <add>, %343, %cst_162 [0] : vector<2x1xf32> to vector<1xf32>
    %345 = vector.shape_cast %344 : vector<1xf32> to vector<1x1xf32>
    %cst_163 = arith.constant 2.000000e+00 : f32
    %346 = vector.broadcast %cst_163 : f32 to vector<1x1xf32>
    %347 = arith.divf %345, %346 : vector<1x1xf32>
    %c0_164 = arith.constant 0 : index
    %c0_165 = arith.constant 0 : index
    %348 = vector.load %arg25[%c0_164, %c0_165] : memref<1x1xf32, #tpu.memory_space<vmem>>, vector<1x1xf32>
    tpu.vector_store %arg25[%c0_164, %c0_165], %347 {strides = array<i32>} : memref<1x1xf32, #tpu.memory_space<vmem>>, vector<1x1xf32>,
    return
  }
}

</mosaic_0001>

<llo_original>
// kernel: tpu_custom_call.1
$region0: #{tpu_custom_call.1}
  #allocation0 [shape = 'u32[]', space=smem, size = 0x4, offset = 0x4, fixed_abs, tag = 'smem constant byte address 0x4 - core index']
  #allocation1 [shape = 'u32[144,128]{1,0:T(1,128)}', space=vmem, size = 0x12000, scoped, tag = 'internal scratch']
  %s0 = inlined_call_operand.hbm [shape: f32[2,8,32], index: 0, kind: input, shape index: {}]
  %s1 = inlined_call_operand.hbm [shape: f32[2,1,8], index: 1, kind: input, shape index: {}]
  %s2 = inlined_call_operand.hbm [shape: f32[2,8,8], index: 2, kind: input, shape index: {}]
  %s3 = inlined_call_operand.hbm [shape: f32[2,3], index: 3, kind: input, shape index: {}]
  %s4 = inlined_call_operand.hbm [shape: f32[1,32], index: 4, kind: input, shape index: {}]
  %s5 = inlined_call_operand.hbm [shape: f32[1,32], index: 5, kind: input, shape index: {}]
  %s6 = inlined_call_operand.vmem [shape: f32[2,32,96], index: 6, kind: input, shape index: {}]
  %s7 = inlined_call_operand.hbm [shape: f32[2,1,96], index: 7, kind: input, shape index: {}]
  %s8 = inlined_call_operand.vmem [shape: f32[2,32,32], index: 8, kind: input, shape index: {}]
  %s9 = inlined_call_operand.hbm [shape: f32[2,1,32], index: 9, kind: input, shape index: {}]
  %s10 = inlined_call_operand.hbm [shape: f32[2,1,32], index: 10, kind: input, shape index: {}]
  %s11 = inlined_call_operand.hbm [shape: f32[2,1,32], index: 11, kind: input, shape index: {}]
  %s12 = inlined_call_operand.vmem [shape: f32[2,32,64], index: 12, kind: input, shape index: {}]
  %s13 = inlined_call_operand.hbm [shape: f32[2,1,64], index: 13, kind: input, shape index: {}]
  %s14 = inlined_call_operand.vmem [shape: f32[2,64,32], index: 14, kind: input, shape index: {}]
  %s15 = inlined_call_operand.hbm [shape: f32[2,1,32], index: 15, kind: input, shape index: {}]
  %s16 = inlined_call_operand.hbm [shape: f32[2,1,32], index: 16, kind: input, shape index: {}]
  %s17 = inlined_call_operand.hbm [shape: f32[2,1,32], index: 17, kind: input, shape index: {}]
  %s18 = inlined_call_operand.vmem [shape: f32[32,32], index: 18, kind: input, shape index: {}]
  %s19 = inlined_call_operand.vmem [shape: f32[1,32], index: 19, kind: input, shape index: {}]
  %s20 = inlined_call_operand.vmem [shape: f32[32,3], index: 20, kind: input, shape index: {}]
  %s21 = inlined_call_operand.vmem [shape: f32[1,3], index: 21, kind: input, shape index: {}]
  %s22 = inlined_call_operand.hbm [shape: f32[2,8,32], index: 22, kind: output, shape index: {0}]
  %s23 = inlined_call_operand.hbm [shape: f32[2,32], index: 23, kind: output, shape index: {1}]
  %s24 = inlined_call_operand.hbm [shape: f32[2,3], index: 24, kind: output, shape index: {2}]
  %s25 = inlined_call_operand.hbm [shape: f32[1,1], index: 25, kind: output, shape index: {3}]
  %26 = xla_tuple %s22, %s23, %s24, %s25
  %s27 = sld [smem:[#allocation0]]
  $region178: #{tpu_custom_call.1} parent=0
    _
  %s29 = ssub.s32 1, %s27
  %s30 = scalar_select 0, %s29, %s27
  $region1: #{tpu_custom_call.1} parent=0
    #allocation2 [shape = 'u8[8192]{0}', space=vmem, size = 0x2000, scoped, tag = 'input window, operand 0, single buffered']
    #allocation3 [shape = 's32[1]{0}', space=sflag, size = 0x4, scoped, tag = 'scoped memory for tpu_custom_call.1']
    #allocation4 [shape = 's32[1]{0}', space=sflag, size = 0x4, scoped, tag = 'scoped memory for tpu_custom_call.1']
    #allocation5 [shape = 'u8[1024]{0}', space=vmem, size = 0x400, scoped, tag = 'input window, operand 1, single buffered']
    #allocation6 [shape = 's32[1]{0}', space=sflag, size = 0x4, scoped, tag = 'scoped memory for tpu_custom_call.1']
    #allocation7 [shape = 'u8[8192]{0}', space=vmem, size = 0x2000, scoped, tag = 'input window, operand 2, single buffered']
    #allocation8 [shape = 'u8[1024]{0}', space=vmem, size = 0x400, scoped, tag = 'input window, operand 3, single buffered']
    #allocation9 [shape = 's32[1]{0}', space=sflag, size = 0x4, scoped, tag = 'scoped memory for tpu_custom_call.1']
    #allocation10 [shape = 'u8[512]{0}', space=vmem, size = 0x400, scoped, tag = 'input window, operand 4, single buffered']
    #allocation11 [shape = 'u8[512]{0}', space=vmem, size = 0x400, scoped, tag = 'input window, operand 5, single buffered']
    #allocation12 [shape = 's32[1]{0}', space=sflag, size = 0x4, scoped, tag = 'scoped memory for tpu_custom_call.1']
    #allocation13 [shape = 'u8[1024]{0}', space=vmem, size = 0x400, scoped, tag = 'input window, operand 7, single buffered']
    #allocation14 [shape = 'u8[1024]{0}', space=vmem, size = 0x400, scoped, tag = 'input window, operand 9, single buffered']
    #allocation15 [shape = 's32[1]{0}', space=sflag, size = 0x4, scoped, tag = 'scoped memory for tpu_custom_call.1']
    #allocation16 [shape = 'u8[1024]{0}', space=vmem, size = 0x400, scoped, tag = 'input window, operand 10, single buffered']
    #allocation17 [shape = 'u8[1024]{0}', space=vmem, size = 0x400, scoped, tag = 'input window, operand 11, single buffered']
    #allocation18 [shape = 's32[1]{0}', space=sflag, size = 0x4, scoped, tag = 'scoped memory for tpu_custom_call.1']
    #allocation19 [shape = 'u8[1024]{0}', space=vmem, size = 0x400, scoped, tag = 'input window, operand 13, single buffered']
    #allocation20 [shape = 'u8[1024]{0}', space=vmem, size = 0x400, scoped, tag = 'input window, operand 15, single buffered']
    #allocation21 [shape = 's32[1]{0}', space=sflag, size = 0x4, scoped, tag = 'scoped memory for tpu_custom_call.1']
    #allocation22 [shape = 'u8[1024]{0}', space=vmem, size = 0x400, scoped, tag = 'input window, operand 16, single buffered']
    #allocation23 [shape = 'u8[1024]{0}', space=vmem, size = 0x400, scoped, tag = 'input window, operand 17, single buffered']
    #allocation24 [shape = 's32[1]{0}', space=sflag, size = 0x4, scoped, tag = 'scoped memory for tpu_custom_call.1']
    #allocation25 [shape = 'u8[8192]{0}', space=vmem, size = 0x2000, scoped, tag = 'output window, operand 0, single buffered']
    #allocation26 [shape = 'u8[1024]{0}', space=vmem, size = 0x400, scoped, tag = 'output window, operand 1, single buffered']
    #allocation27 [shape = 's32[1]{0}', space=sflag, size = 0x4, scoped, tag = 'scoped memory for tpu_custom_call.1']
    #allocation28 [shape = 'u8[1024]{0}', space=vmem, size = 0x400, scoped, tag = 'output window, operand 2, single buffered']
    #allocation29 [shape = 'u8[512]{0}', space=vmem, size = 0x400, scoped, tag = 'output window, operand 3, single buffered']
    #allocation30 [shape = 's32[1]{0}', space=sflag, size = 0x4, scoped, tag = 'scoped memory for tpu_custom_call.1']
    %31 = vsyncpa [#allocation3], 0
    %32 = vsyncpa [#allocation6], 0
    %33 = vsyncpa [#allocation9], 0
    %34 = vsyncpa [#allocation12], 0
    %35 = vsyncpa [#allocation15], 0
    %36 = vsyncpa [#allocation18], 0
    %37 = vsyncpa [#allocation21], 0
    %38 = vsyncpa [#allocation24], 0
    %39 = vsyncpa [#allocation4], 0
    %40 = vsyncpa [#allocation27], 0
    %41 = vsyncpa [#allocation30], 0
    // Predicated region
    $region2: #{tpu_custom_call.1} parent=1 // pred_check
      _
    $region3: #{tpu_custom_call.1} parent=1 // pred_check_branch
      %43 = sbr.rel (0) target = $region5
    $region4: #{tpu_custom_call.1} parent=1 // pred_region
      %s45 = ssub.s32 256, 256
      %46 = vsyncadd [#allocation3], %s45
      %s47 = sshll.u32 [#allocation2], 4
      %s48 = int_to_ptr.vmem [resolvable:$true] %s47
      %53 = dma.hbm_to_vmem [thread:$0]  %s0, 256, %s48, [#allocation3], 128, 128, 8
    $region5: #{tpu_custom_call.1} parent=1 // pred_fallthru
      _
    // Predicated region
    $region6: #{tpu_custom_call.1} parent=1 // pred_check
      _
    $region7: #{tpu_custom_call.1} parent=1 // pred_check_branch
      %55 = sbr.rel (0) target = $region9
    $region8: #{tpu_custom_call.1} parent=1 // pred_region
      %s57 = ssub.s32 32, 32
      %58 = vsyncadd [#allocation6], %s57
      %s59 = sshll.u32 [#allocation5], 4
      %s60 = int_to_ptr.vmem [resolvable:$true] %s59
      %65 = dma.hbm_to_vmem [thread:$0]  %s1, 32, %s60, [#allocation6], 16, 16, 1
    $region9: #{tpu_custom_call.1} parent=1 // pred_fallthru
      _
    // Predicated region
    $region10: #{tpu_custom_call.1} parent=1 // pred_check
      _
    $region11: #{tpu_custom_call.1} parent=1 // pred_check_branch
      %67 = sbr.rel (0) target = $region13
    $region12: #{tpu_custom_call.1} parent=1 // pred_region
      %s69 = ssub.s32 256, 256
      %70 = vsyncadd [#allocation6], %s69
      %s71 = sshll.u32 [#allocation7], 4
      %s72 = int_to_ptr.vmem [resolvable:$true] %s71
      %77 = dma.hbm_to_vmem [thread:$0]  %s2, 256, %s72, [#allocation6], 128, 128, 8
    $region13: #{tpu_custom_call.1} parent=1 // pred_fallthru
      _
    // Predicated region
    $region14: #{tpu_custom_call.1} parent=1 // pred_check
      _
    $region15: #{tpu_custom_call.1} parent=1 // pred_check_branch
      %79 = sbr.rel (0) target = $region17
    $region16: #{tpu_custom_call.1} parent=1 // pred_region
      %s81 = ssub.s32 32, 32
      %82 = vsyncadd [#allocation9], %s81
      %s84 = sshll.u32 [#allocation8], 4
      %s85 = int_to_ptr.vmem [resolvable:$true] %s84
      %87 = dma.hbm_to_vmem [thread:$0]  %s3, 32, %s85, [#allocation9]
    $region17: #{tpu_custom_call.1} parent=1 // pred_fallthru
      _
    // Predicated region
    $region18: #{tpu_custom_call.1} parent=1 // pred_check
      _
    $region19: #{tpu_custom_call.1} parent=1 // pred_check_branch
      %89 = sbr.rel (0) target = $region21
    $region20: #{tpu_custom_call.1} parent=1 // pred_region
      %s91 = ssub.s32 16, 16
      %92 = vsyncadd [#allocation9], %s91
      %s94 = sshll.u32 [#allocation10], 4
      %s95 = int_to_ptr.vmem [resolvable:$true] %s94
      %97 = dma.hbm_to_vmem [thread:$0]  %s4, 16, %s95, [#allocation9]
    $region21: #{tpu_custom_call.1} parent=1 // pred_fallthru
      _
    // Predicated region
    $region22: #{tpu_custom_call.1} parent=1 // pred_check
      _
    $region23: #{tpu_custom_call.1} parent=1 // pred_check_branch
      %99 = sbr.rel (0) target = $region25
    $region24: #{tpu_custom_call.1} parent=1 // pred_region
      %s101 = ssub.s32 16, 16
      %102 = vsyncadd [#allocation12], %s101
      %s104 = sshll.u32 [#allocation11], 4
      %s105 = int_to_ptr.vmem [resolvable:$true] %s104
      %107 = dma.hbm_to_vmem [thread:$0]  %s5, 16, %s105, [#allocation12]
    $region25: #{tpu_custom_call.1} parent=1 // pred_fallthru
      _
    // Predicated region
    $region26: #{tpu_custom_call.1} parent=1 // pred_check
      _
    $region27: #{tpu_custom_call.1} parent=1 // pred_check_branch
      %109 = sbr.rel (0) target = $region29
    $region28: #{tpu_custom_call.1} parent=1 // pred_region
      _
    $region29: #{tpu_custom_call.1} parent=1 // pred_fallthru
      _
    // Predicated region
    $region30: #{tpu_custom_call.1} parent=1 // pred_check
      _
    $region31: #{tpu_custom_call.1} parent=1 // pred_check_branch
      %111 = sbr.rel (0) target = $region33
    $region32: #{tpu_custom_call.1} parent=1 // pred_region
      %s113 = ssub.s32 32, 32
      %114 = vsyncadd [#allocation12], %s113
      %s115 = sshll.u32 [#allocation13], 4
      %s116 = int_to_ptr.vmem [resolvable:$true] %s115
      %121 = dma.hbm_to_vmem [thread:$0]  %s7, 32, %s116, [#allocation12], 16, 16, 1
    $region33: #{tpu_custom_call.1} parent=1 // pred_fallthru
      _
    // Predicated region
    $region34: #{tpu_custom_call.1} parent=1 // pred_check
      _
    $region35: #{tpu_custom_call.1} parent=1 // pred_check_branch
      %123 = sbr.rel (0) target = $region37
    $region36: #{tpu_custom_call.1} parent=1 // pred_region
      _
    $region37: #{tpu_custom_call.1} parent=1 // pred_fallthru
      _
    // Predicated region
    $region38: #{tpu_custom_call.1} parent=1 // pred_check
      _
    $region39: #{tpu_custom_call.1} parent=1 // pred_check_branch
      %125 = sbr.rel (0) target = $region41
    $region40: #{tpu_custom_call.1} parent=1 // pred_region
      %s127 = ssub.s32 32, 32
      %128 = vsyncadd [#allocation15], %s127
      %s129 = sshll.u32 [#allocation14], 4
      %s130 = int_to_ptr.vmem [resolvable:$true] %s129
      %135 = dma.hbm_to_vmem [thread:$0]  %s9, 32, %s130, [#allocation15], 16, 16, 1
    $region41: #{tpu_custom_call.1} parent=1 // pred_fallthru
      _
    // Predicated region
    $region42: #{tpu_custom_call.1} parent=1 // pred_check
      _
    $region43: #{tpu_custom_call.1} parent=1 // pred_check_branch
      %137 = sbr.rel (0) target = $region45
    $region44: #{tpu_custom_call.1} parent=1 // pred_region
      %s139 = ssub.s32 32, 32
      %140 = vsyncadd [#allocation15], %s139
      %s141 = sshll.u32 [#allocation16], 4
      %s142 = int_to_ptr.vmem [resolvable:$true] %s141
      %147 = dma.hbm_to_vmem [thread:$0]  %s10, 32, %s142, [#allocation15], 16, 16, 1
    $region45: #{tpu_custom_call.1} parent=1 // pred_fallthru
      _
    // Predicated region
    $region46: #{tpu_custom_call.1} parent=1 // pred_check
      _
    $region47: #{tpu_custom_call.1} parent=1 // pred_check_branch
      %149 = sbr.rel (0) target = $region49
    $region48: #{tpu_custom_call.1} parent=1 // pred_region
      %s151 = ssub.s32 32, 32
      %152 = vsyncadd [#allocation18], %s151
      %s153 = sshll.u32 [#allocation17], 4
      %s154 = int_to_ptr.vmem [resolvable:$true] %s153
      %159 = dma.hbm_to_vmem [thread:$0]  %s11, 32, %s154, [#allocation18], 16, 16, 1
    $region49: #{tpu_custom_call.1} parent=1 // pred_fallthru
      _
    // Predicated region
    $region50: #{tpu_custom_call.1} parent=1 // pred_check
      _
    $region51: #{tpu_custom_call.1} parent=1 // pred_check_branch
      %161 = sbr.rel (0) target = $region53
    $region52: #{tpu_custom_call.1} parent=1 // pred_region
      _
    $region53: #{tpu_custom_call.1} parent=1 // pred_fallthru
      _
    // Predicated region
    $region54: #{tpu_custom_call.1} parent=1 // pred_check
      _
    $region55: #{tpu_custom_call.1} parent=1 // pred_check_branch
      %163 = sbr.rel (0) target = $region57
    $region56: #{tpu_custom_call.1} parent=1 // pred_region
      %s165 = ssub.s32 32, 32
      %166 = vsyncadd [#allocation18], %s165
      %s167 = sshll.u32 [#allocation19], 4
      %s168 = int_to_ptr.vmem [resolvable:$true] %s167
      %173 = dma.hbm_to_vmem [thread:$0]  %s13, 32, %s168, [#allocation18], 16, 16, 1
    $region57: #{tpu_custom_call.1} parent=1 // pred_fallthru
      _
    // Predicated region
    $region58: #{tpu_custom_call.1} parent=1 // pred_check
      _
    $region59: #{tpu_custom_call.1} parent=1 // pred_check_branch
      %175 = sbr.rel (0) target = $region61
    $region60: #{tpu_custom_call.1} parent=1 // pred_region
      _
    $region61: #{tpu_custom_call.1} parent=1 // pred_fallthru
      _
    // Predicated region
    $region62: #{tpu_custom_call.1} parent=1 // pred_check
      _
    $region63: #{tpu_custom_call.1} parent=1 // pred_check_branch
      %177 = sbr.rel (0) target = $region65
    $region64: #{tpu_custom_call.1} parent=1 // pred_region
      %s179 = ssub.s32 32, 32
      %180 = vsyncadd [#allocation21], %s179
      %s181 = sshll.u32 [#allocation20], 4
      %s182 = int_to_ptr.vmem [resolvable:$true] %s181
      %187 = dma.hbm_to_vmem [thread:$0]  %s15, 32, %s182, [#allocation21], 16, 16, 1
    $region65: #{tpu_custom_call.1} parent=1 // pred_fallthru
      _
    // Predicated region
    $region66: #{tpu_custom_call.1} parent=1 // pred_check
      _
    $region67: #{tpu_custom_call.1} parent=1 // pred_check_branch
      %189 = sbr.rel (0) target = $region69
    $region68: #{tpu_custom_call.1} parent=1 // pred_region
      %s191 = ssub.s32 32, 32
      %192 = vsyncadd [#allocation21], %s191
      %s193 = sshll.u32 [#allocation22], 4
      %s194 = int_to_ptr.vmem [resolvable:$true] %s193
      %199 = dma.hbm_to_vmem [thread:$0]  %s16, 32, %s194, [#allocation21], 16, 16, 1
    $region69: #{tpu_custom_call.1} parent=1 // pred_fallthru
      _
    // Predicated region
    $region70: #{tpu_custom_call.1} parent=1 // pred_check
      _
    $region71: #{tpu_custom_call.1} parent=1 // pred_check_branch
      %201 = sbr.rel (0) target = $region73
    $region72: #{tpu_custom_call.1} parent=1 // pred_region
      %s203 = ssub.s32 32, 32
      %204 = vsyncadd [#allocation24], %s203
      %s205 = sshll.u32 [#allocation23], 4
      %s206 = int_to_ptr.vmem [resolvable:$true] %s205
      %211 = dma.hbm_to_vmem [thread:$0]  %s17, 32, %s206, [#allocation24], 16, 16, 1
    $region73: #{tpu_custom_call.1} parent=1 // pred_fallthru
      _
    // Predicated region
    $region74: #{tpu_custom_call.1} parent=1 // pred_check
      _
    $region75: #{tpu_custom_call.1} parent=1 // pred_check_branch
      %213 = sbr.rel (0) target = $region77
    $region76: #{tpu_custom_call.1} parent=1 // pred_region
      _
    $region77: #{tpu_custom_call.1} parent=1 // pred_fallthru
      _
    // Predicated region
    $region78: #{tpu_custom_call.1} parent=1 // pred_check
      _
    $region79: #{tpu_custom_call.1} parent=1 // pred_check_branch
      %215 = sbr.rel (0) target = $region81
    $region80: #{tpu_custom_call.1} parent=1 // pred_region
      _
    $region81: #{tpu_custom_call.1} parent=1 // pred_fallthru
      _
    // Predicated region
    $region82: #{tpu_custom_call.1} parent=1 // pred_check
      _
    $region83: #{tpu_custom_call.1} parent=1 // pred_check_branch
      %217 = sbr.rel (0) target = $region85
    $region84: #{tpu_custom_call.1} parent=1 // pred_region
      _
    $region85: #{tpu_custom_call.1} parent=1 // pred_fallthru
      _
    // Predicated region
    $region86: #{tpu_custom_call.1} parent=1 // pred_check
      _
    $region87: #{tpu_custom_call.1} parent=1 // pred_check_branch
      %219 = sbr.rel (0) target = $region89
    $region88: #{tpu_custom_call.1} parent=1 // pred_region
      _
    $region89: #{tpu_custom_call.1} parent=1 // pred_fallthru
      _
    // Predicated region
    $region90: #{tpu_custom_call.1} parent=1 // pred_check
      _
    $region91: #{tpu_custom_call.1} parent=1 // pred_check_branch
      %221 = sbr.rel (0) target = $region93
    $region92: #{tpu_custom_call.1} parent=1 // pred_region
      %222 = dma.done [#allocation3], 256
    $region93: #{tpu_custom_call.1} parent=1 // pred_fallthru
      _
    // Predicated region
    $region94: #{tpu_custom_call.1} parent=1 // pred_check
      _
    $region95: #{tpu_custom_call.1} parent=1 // pred_check_branch
      %224 = sbr.rel (0) target = $region97
    $region96: #{tpu_custom_call.1} parent=1 // pred_region
      %225 = dma.done [#allocation6], 32
    $region97: #{tpu_custom_call.1} parent=1 // pred_fallthru
      _
    // Predicated region
    $region98: #{tpu_custom_call.1} parent=1 // pred_check
      _
    $region99: #{tpu_custom_call.1} parent=1 // pred_check_branch
      %227 = sbr.rel (0) target = $region101
    $region100: #{tpu_custom_call.1} parent=1 // pred_region
      %228 = dma.done [#allocation6], 256
    $region101: #{tpu_custom_call.1} parent=1 // pred_fallthru
      _
    // Predicated region
    $region102: #{tpu_custom_call.1} parent=1 // pred_check
      _
    $region103: #{tpu_custom_call.1} parent=1 // pred_check_branch
      %230 = sbr.rel (0) target = $region105
    $region104: #{tpu_custom_call.1} parent=1 // pred_region
      %231 = dma.done [#allocation9], 32
    $region105: #{tpu_custom_call.1} parent=1 // pred_fallthru
      _
    // Predicated region
    $region106: #{tpu_custom_call.1} parent=1 // pred_check
      _
    $region107: #{tpu_custom_call.1} parent=1 // pred_check_branch
      %233 = sbr.rel (0) target = $region109
    $region108: #{tpu_custom_call.1} parent=1 // pred_region
      %234 = dma.done [#allocation9], 16
    $region109: #{tpu_custom_call.1} parent=1 // pred_fallthru
      _
    // Predicated region
    $region110: #{tpu_custom_call.1} parent=1 // pred_check
      _
    $region111: #{tpu_custom_call.1} parent=1 // pred_check_branch
      %236 = sbr.rel (0) target = $region113
    $region112: #{tpu_custom_call.1} parent=1 // pred_region
      %237 = dma.done [#allocation12], 16
    $region113: #{tpu_custom_call.1} parent=1 // pred_fallthru
      _
    // Predicated region
    $region114: #{tpu_custom_call.1} parent=1 // pred_check
      _
    $region115: #{tpu_custom_call.1} parent=1 // pred_check_branch
      %239 = sbr.rel (0) target = $region117
    $region116: #{tpu_custom_call.1} parent=1 // pred_region
      %240 = dma.done [#allocation12], 32
    $region117: #{tpu_custom_call.1} parent=1 // pred_fallthru
      _
    // Predicated region
    $region118: #{tpu_custom_call.1} parent=1 // pred_check
      _
    $region119: #{tpu_custom_call.1} parent=1 // pred_check_branch
      %242 = sbr.rel (0) target = $region121
    $region120: #{tpu_custom_call.1} parent=1 // pred_region
      %243 = dma.done [#allocation15], 32
    $region121: #{tpu_custom_call.1} parent=1 // pred_fallthru
      _
    // Predicated region
    $region122: #{tpu_custom_call.1} parent=1 // pred_check
      _
    $region123: #{tpu_custom_call.1} parent=1 // pred_check_branch
      %245 = sbr.rel (0) target = $region125
    $region124: #{tpu_custom_call.1} parent=1 // pred_region
      %246 = dma.done [#allocation15], 32
    $region125: #{tpu_custom_call.1} parent=1 // pred_fallthru
      _
    // Predicated region
    $region126: #{tpu_custom_call.1} parent=1 // pred_check
      _
    $region127: #{tpu_custom_call.1} parent=1 // pred_check_branch
      %248 = sbr.rel (0) target = $region129
    $region128: #{tpu_custom_call.1} parent=1 // pred_region
      %249 = dma.done [#allocation18], 32
    $region129: #{tpu_custom_call.1} parent=1 // pred_fallthru
      _
    // Predicated region
    $region130: #{tpu_custom_call.1} parent=1 // pred_check
      _
    $region131: #{tpu_custom_call.1} parent=1 // pred_check_branch
      %251 = sbr.rel (0) target = $region133
    $region132: #{tpu_custom_call.1} parent=1 // pred_region
      %252 = dma.done [#allocation18], 32
    $region133: #{tpu_custom_call.1} parent=1 // pred_fallthru
      _
    // Predicated region
    $region134: #{tpu_custom_call.1} parent=1 // pred_check
      _
    $region135: #{tpu_custom_call.1} parent=1 // pred_check_branch
      %254 = sbr.rel (0) target = $region137
    $region136: #{tpu_custom_call.1} parent=1 // pred_region
      %255 = dma.done [#allocation21], 32
    $region137: #{tpu_custom_call.1} parent=1 // pred_fallthru
      _
    // Predicated region
    $region138: #{tpu_custom_call.1} parent=1 // pred_check
      _
    $region139: #{tpu_custom_call.1} parent=1 // pred_check_branch
      %257 = sbr.rel (0) target = $region141
    $region140: #{tpu_custom_call.1} parent=1 // pred_region
      %258 = dma.done [#allocation21], 32
    $region141: #{tpu_custom_call.1} parent=1 // pred_fallthru
      _
    // Predicated region
    $region142: #{tpu_custom_call.1} parent=1 // pred_check
      _
    $region143: #{tpu_custom_call.1} parent=1 // pred_check_branch
      %260 = sbr.rel (0) target = $region145
    $region144: #{tpu_custom_call.1} parent=1 // pred_region
      %261 = dma.done [#allocation24], 32
    $region145: #{tpu_custom_call.1} parent=1 // pred_fallthru
      _
    %v262 = vld [vmem:[#allocation2] sm:$0xff]
    %v263 = vld [vmem:[#allocation2 + $0x8] sm:$0xff]
    %v264 = vld [vmem:[#allocation10] sm:$0x1]
    %v265 = vld [vmem:[#allocation11] sm:$0x1]
    %vm266 = vcmask 261120
    %v267 = vsel %vm266, %v262, 0.0
    %268 = vadd.xlane.f32.xlu0 %v267
    %v269 = vpop.xlane.xlu0 %268
    %v270 = vsel %vm266, %v263, 0.0
    %271 = vadd.xlane.f32.xlu0 %v270
    %v272 = vpop.xlane.xlu0 %271
    %v273 = vrcp.pop 32.0
    %v274 = vmul.f32 %v269, %v273
    %v275 = vmul.f32 %v272, %v273
    %v276 = vsub.f32 %v262, %v274
    %v277 = vsub.f32 %v263, %v275
    %v278 = vmul.f32 %v276, %v276
    %v279 = vmul.f32 %v277, %v277
    %v280 = vsel %vm266, %v278, 0.0
    %281 = vadd.xlane.f32.xlu0 %v280
    %v282 = vpop.xlane.xlu0 %281
    %v283 = vsel %vm266, %v279, 0.0
    %284 = vadd.xlane.f32.xlu0 %v283
    %v285 = vpop.xlane.xlu0 %284
    %v286 = vmul.f32 %v282, %v273
    %v287 = vmul.f32 %v285, %v273
    %v288 = vadd.f32 %v286, 1e-12
    %v289 = vadd.f32 %v287, 1e-12
    %v290 = vrsqrt.pop %v288
    %v291 = vrsqrt.pop %v289
    %v292 = vmul.f32 %v276, %v290
    %v293 = vmul.f32 %v277, %v291
    %v295 = vlaneseq
    %v296 = vshrl.u32 %v295, 7
    %v297 = vsub.s32 0, %v296
    %v298 = vrot.slane %v264, %v297
    %v300 = vmul.f32 %v292, %v298
    %v301 = vmul.f32 %v293, %v298
    %v303 = vlaneseq
    %v304 = vshrl.u32 %v303, 7
    %v305 = vsub.s32 0, %v304
    %v306 = vrot.slane %v265, %v305
    %v308 = vadd.f32 %v300, %v306
    %v309 = vadd.f32 %v301, %v306
    %v310 = vld [vmem:[#allocation5] sm:$0x1]
    %v311 = vld [vmem:[#allocation5 + $0x1] sm:$0x1]
    %v312 = vld [vmem:[%s6] sm:$0xff]
    %v313 = vld [vmem:[%s6 + $0x8] sm:$0xff]
    %v314 = vld [vmem:[%s6 + $0x10] sm:$0xff]
    %v315 = vld [vmem:[%s6 + $0x18] sm:$0xff]
    %v316 = vld [vmem:[#allocation13] sm:$0x1]
    %v318 = vlaneseq
    %v319 = vshrl.u32 %v318, 7
    %v320 = vsub.s32 0, %v319
    %v321 = vrot.slane %v316, %v320
    %v324 = vsel %vm266, %v308, 0
    %v327 = vsel %vm266, %v309, 0
    %329 = vmatprep.subr.mxu0 0.0
    %330 = vmatpush1.msra.mxu0 %v312
    %331 = vmatprep.subr.mxu0 0.0
    %332 = vmatpush1.msra.mxu0 %v313
    %333 = vmatprep.subr.mxu0 0.0
    %334 = vmatpush1.msra.mxu0 %v314
    %335 = vmatprep.subr.mxu0 0.0
    %336 = vmatpush1.msra.mxu0 %v315
    %337 = vmatprep.subr.mxu0 0.0
    %338 = vmatpush1.msra.mxu0 0.0
    %339 = vmatprep.subr.mxu0 0.0
    %340 = vmatpush1.msra.mxu0 0.0
    %341 = vmatprep.subr.mxu0 0.0
    %342 = vmatpush1.msra.mxu0 0.0
    %343 = vmatprep.subr.mxu0 0.0
    %344 = vmatpush1.msra.mxu0 0.0
    %345 = vmatprep.subr.mxu0 0.0
    %346 = vmatpush1.msra.mxu0 0.0
    %347 = vmatprep.subr.mxu0 0.0
    %348 = vmatpush1.msra.mxu0 0.0
    %349 = vmatprep.subr.mxu0 0.0
    %350 = vmatpush1.msra.mxu0 0.0
    %351 = vmatprep.subr.mxu0 0.0
    %352 = vmatpush1.msra.mxu0 0.0
    %353 = vmatprep.subr.mxu0 0.0
    %354 = vmatpush1.msra.mxu0 0.0
    %355 = vmatprep.subr.mxu0 0.0
    %356 = vmatpush1.msra.mxu0 0.0
    %357 = vmatprep.subr.mxu0 0.0
    %358 = vmatpush1.msra.mxu0 0.0
    %359 = vmatprep.subr.mxu0 0.0
    %360 = vmatpush1.msra.mxu0 0.0
    %361 = vmatprep.subr.mxu0 0.0
    %362 = vmatpush1.msra.mxu0 0.0
    %363 = vmatprep.subr.mxu0 0.0
    %364 = vmatpush1.msra.mxu0 0.0
    %365 = vmatprep.subr.mxu0 0.0
    %366 = vmatpush1.msra.mxu0 0.0
    %367 = vmatprep.subr.mxu0 0.0
    %368 = vmatpush1.msra.mxu0 0.0
    %369 = vmatprep.subr.mxu0 0.0
    %370 = vmatpush1.msra.mxu0 0.0
    %371 = vmatprep.subr.mxu0 0.0
    %372 = vmatpush1.msra.mxu0 0.0
    %373 = vmatprep.subr.mxu0 0.0
    %374 = vmatpush1.msra.mxu0 0.0
    %375 = vmatprep.subr.mxu0 0.0
    %376 = vmatpush1.msra.mxu0 0.0
    %377 = vmatprep.subr.mxu0 0.0
    %378 = vmatpush1.msra.mxu0 0.0
    %379 = vmatprep.subr.mxu0 0.0
    %380 = vmatpush1.msra.mxu0 0.0
    %381 = vmatprep.subr.mxu0 0.0
    %382 = vmatpush1.msra.mxu0 0.0
    %383 = vmatprep.subr.mxu0 0.0
    %384 = vmatpush1.msra.mxu0 0.0
    %385 = vmatprep.subr.mxu0 0.0
    %386 = vmatpush1.msra.mxu0 0.0
    %387 = vmatprep.subr.mxu0 0.0
    %388 = vmatpush1.msra.mxu0 0.0
    %389 = vmatprep.subr.mxu0 0.0
    %390 = vmatpush1.msra.mxu0 0.0
    %391 = vmatprep.subr.mxu0 0.0
    %392 = vmatpush1.msra.mxu0 0.0
    %393 = vmatprep.mubr.f32.mxu0 0.0
    %394 = vmatmul.mubr.f32.gmra.mrb[0].mxu0 %v324
    %v395 = vpop.f32.mrb[0].mxu0
    %v396 = vadd.f32 %v321, %v395
    %v397 = vpop.f32.mrb[0].mxu0
    %398 = vmatprep.mubr.f32.mxu0 0.0
    %399 = vmatmul.mubr.f32.gmra.mrb[0].mxu0 %v327
    %v400 = vpop.f32.mrb[0].mxu0
    %v401 = vadd.f32 %v321, %v400
    %v402 = vpop.f32.mrb[0].mxu0
    %403 = vdwg.mxu0
    %v406 = vlaneseq
    %v407 = vshrl.u32 %v406, 7
    %v408 = vsub.s32 0, %v407
    %v409 = vrot.slane %v310, %v408
    %v410 = vlaneseq
    %v411 = vshrl.u32 %v410, 7
    %v412 = vsub.s32 0, %v411
    %v413 = vrot.slane %v311, %v412
    %417 = vrot.lane.b32.xlu0 %v396, 96
    %v418 = vpop.permute.xlu0 %417
    %vm419 = vcmask 130048
    %v420 = vsel %vm419, %v396, 0
    %v422 = vsel %vm419, %v418, 0
    %424 = vmatprep.subr.mxu0 0.0
    %425 = vmatpush1.xpose.msra.mxu0 %v422
    %426 = vmatprep.subr.mxu0 0.0
    %427 = vmatpush1.xpose.msra.mxu0 0.0
    %428 = vmatprep.subr.mxu0 0.0
    %429 = vmatpush1.xpose.msra.mxu0 0.0
    %430 = vmatprep.subr.mxu0 0.0
    %431 = vmatpush1.xpose.msra.mxu0 0.0
    %432 = vmatprep.subr.mxu0 0.0
    %433 = vmatpush1.xpose.msra.mxu0 0.0
    %434 = vmatprep.subr.mxu0 0.0
    %435 = vmatpush1.xpose.msra.mxu0 0.0
    %436 = vmatprep.subr.mxu0 0.0
    %437 = vmatpush1.xpose.msra.mxu0 0.0
    %438 = vmatprep.subr.mxu0 0.0
    %439 = vmatpush1.xpose.msra.mxu0 0.0
    %440 = vmatprep.subr.mxu0 0.0
    %441 = vmatpush1.xpose.msra.mxu0 0.0
    %442 = vmatprep.subr.mxu0 0.0
    %443 = vmatpush1.xpose.msra.mxu0 0.0
    %444 = vmatprep.subr.mxu0 0.0
    %445 = vmatpush1.xpose.msra.mxu0 0.0
    %446 = vmatprep.subr.mxu0 0.0
    %447 = vmatpush1.xpose.msra.mxu0 0.0
    %448 = vmatprep.subr.mxu0 0.0
    %449 = vmatpush1.xpose.msra.mxu0 0.0
    %450 = vmatprep.subr.mxu0 0.0
    %451 = vmatpush1.xpose.msra.mxu0 0.0
    %452 = vmatprep.subr.mxu0 0.0
    %453 = vmatpush1.xpose.msra.mxu0 0.0
    %454 = vmatprep.subr.mxu0 0.0
    %455 = vmatpush1.xpose.msra.mxu0 0.0
    %456 = vmatprep.subr.mxu0 0.0
    %457 = vmatpush1.xpose.msra.mxu0 0.0
    %458 = vmatprep.subr.mxu0 0.0
    %459 = vmatpush1.xpose.msra.mxu0 0.0
    %460 = vmatprep.subr.mxu0 0.0
    %461 = vmatpush1.xpose.msra.mxu0 0.0
    %462 = vmatprep.subr.mxu0 0.0
    %463 = vmatpush1.xpose.msra.mxu0 0.0
    %464 = vmatprep.subr.mxu0 0.0
    %465 = vmatpush1.xpose.msra.mxu0 0.0
    %466 = vmatprep.subr.mxu0 0.0
    %467 = vmatpush1.xpose.msra.mxu0 0.0
    %468 = vmatprep.subr.mxu0 0.0
    %469 = vmatpush1.xpose.msra.mxu0 0.0
    %470 = vmatprep.subr.mxu0 0.0
    %471 = vmatpush1.xpose.msra.mxu0 0.0
    %472 = vmatprep.subr.mxu0 0.0
    %473 = vmatpush1.xpose.msra.mxu0 0.0
    %474 = vmatprep.subr.mxu0 0.0
    %475 = vmatpush1.xpose.msra.mxu0 0.0
    %476 = vmatprep.subr.mxu0 0.0
    %477 = vmatpush1.xpose.msra.mxu0 0.0
    %478 = vmatprep.subr.mxu0 0.0
    %479 = vmatpush1.xpose.msra.mxu0 0.0
    %480 = vmatprep.subr.mxu0 0.0
    %481 = vmatpush1.xpose.msra.mxu0 0.0
    %482 = vmatprep.subr.mxu0 0.0
    %483 = vmatpush1.xpose.msra.mxu0 0.0
    %484 = vmatprep.subr.mxu0 0.0
    %485 = vmatpush1.xpose.msra.mxu0 0.0
    %486 = vmatprep.subr.mxu0 0.0
    %487 = vmatpush1.xpose.msra.mxu0 0.0
    %488 = vmatprep.mubr.f32.mxu0 0.0
    %489 = vmatmul.mubr.f32.gmra.mrb[0].mxu0 %v420
    %v490 = vpop.f32.mrb[0].mxu0
    %v491 = vadd.f32 %v409, %v490
    %v492 = vpop.f32.mrb[0].mxu0
    %493 = vdwg.mxu0
    %495 = vrot.lane.b32.xlu0 %v401, 96
    %v496 = vpop.permute.xlu0 %495
    %v497 = vsel %vm419, %v401, 0
    %v499 = vsel %vm419, %v496, 0
    %501 = vmatprep.subr.mxu0 0.0
    %502 = vmatpush1.xpose.msra.mxu0 %v499
    %503 = vmatprep.subr.mxu0 0.0
    %504 = vmatpush1.xpose.msra.mxu0 0.0
    %505 = vmatprep.subr.mxu0 0.0
    %506 = vmatpush1.xpose.msra.mxu0 0.0
    %507 = vmatprep.subr.mxu0 0.0
    %508 = vmatpush1.xpose.msra.mxu0 0.0
    %509 = vmatprep.subr.mxu0 0.0
    %510 = vmatpush1.xpose.msra.mxu0 0.0
    %511 = vmatprep.subr.mxu0 0.0
    %512 = vmatpush1.xpose.msra.mxu0 0.0
    %513 = vmatprep.subr.mxu0 0.0
    %514 = vmatpush1.xpose.msra.mxu0 0.0
    %515 = vmatprep.subr.mxu0 0.0
    %516 = vmatpush1.xpose.msra.mxu0 0.0
    %517 = vmatprep.subr.mxu0 0.0
    %518 = vmatpush1.xpose.msra.mxu0 0.0
    %519 = vmatprep.subr.mxu0 0.0
    %520 = vmatpush1.xpose.msra.mxu0 0.0
    %521 = vmatprep.subr.mxu0 0.0
    %522 = vmatpush1.xpose.msra.mxu0 0.0
    %523 = vmatprep.subr.mxu0 0.0
    %524 = vmatpush1.xpose.msra.mxu0 0.0
    %525 = vmatprep.subr.mxu0 0.0
    %526 = vmatpush1.xpose.msra.mxu0 0.0
    %527 = vmatprep.subr.mxu0 0.0
    %528 = vmatpush1.xpose.msra.mxu0 0.0
    %529 = vmatprep.subr.mxu0 0.0
    %530 = vmatpush1.xpose.msra.mxu0 0.0
    %531 = vmatprep.subr.mxu0 0.0
    %532 = vmatpush1.xpose.msra.mxu0 0.0
    %533 = vmatprep.subr.mxu0 0.0
    %534 = vmatpush1.xpose.msra.mxu0 0.0
    %535 = vmatprep.subr.mxu0 0.0
    %536 = vmatpush1.xpose.msra.mxu0 0.0
    %537 = vmatprep.subr.mxu0 0.0
    %538 = vmatpush1.xpose.msra.mxu0 0.0
    %539 = vmatprep.subr.mxu0 0.0
    %540 = vmatpush1.xpose.msra.mxu0 0.0
    %541 = vmatprep.subr.mxu0 0.0
    %542 = vmatpush1.xpose.msra.mxu0 0.0
    %543 = vmatprep.subr.mxu0 0.0
    %544 = vmatpush1.xpose.msra.mxu0 0.0
    %545 = vmatprep.subr.mxu0 0.0
    %546 = vmatpush1.xpose.msra.mxu0 0.0
    %547 = vmatprep.subr.mxu0 0.0
    %548 = vmatpush1.xpose.msra.mxu0 0.0
    %549 = vmatprep.subr.mxu0 0.0
    %550 = vmatpush1.xpose.msra.mxu0 0.0
    %551 = vmatprep.subr.mxu0 0.0
    %552 = vmatpush1.xpose.msra.mxu0 0.0
    %553 = vmatprep.subr.mxu0 0.0
    %554 = vmatpush1.xpose.msra.mxu0 0.0
    %555 = vmatprep.subr.mxu0 0.0
    %556 = vmatpush1.xpose.msra.mxu0 0.0
    %557 = vmatprep.subr.mxu0 0.0
    %558 = vmatpush1.xpose.msra.mxu0 0.0
    %559 = vmatprep.subr.mxu0 0.0
    %560 = vmatpush1.xpose.msra.mxu0 0.0
    %561 = vmatprep.subr.mxu0 0.0
    %562 = vmatpush1.xpose.msra.mxu0 0.0
    %563 = vmatprep.subr.mxu0 0.0
    %564 = vmatpush1.xpose.msra.mxu0 0.0
    %565 = vmatprep.mubr.f32.mxu0 0.0
    %566 = vmatmul.mubr.f32.gmra.mrb[0].mxu0 %v497
    %v567 = vpop.f32.mrb[0].mxu0
    %v568 = vadd.f32 %v413, %v567
    %v569 = vpop.f32.mrb[0].mxu0
    %570 = vdwg.mxu0
    %vm571 = vcmask 64512
    %v572 = vsel %vm571, %v491, -inf
    %573 = vmax.xlane.f32.xlu0 %v572
    %v574 = vpop.xlane.xlu0 %573
    %v575 = vsel %vm571, %v568, -inf
    %576 = vmax.xlane.f32.xlu0 %v575
    %v577 = vpop.xlane.xlu0 %576
    %v578 = vsub.f32 %v491, %v574
    %v579 = vsub.f32 %v568, %v577
    %v580 = vmul.f32 %v578, 1.442695
    %v581 = vpow.pop %v580
    %v582 = vmul.f32 %v579, 1.442695
    %v583 = vpow.pop %v582
    %v584 = vsel %vm571, %v581, 0.0
    %585 = vadd.xlane.f32.xlu0 %v584
    %v586 = vpop.xlane.xlu0 %585
    %v587 = vsel %vm571, %v583, 0.0
    %588 = vadd.xlane.f32.xlu0 %v587
    %v589 = vpop.xlane.xlu0 %588
    %v590 = vrcp.pop %v586
    %v591 = vrcp.pop %v589
    %v592 = vmul.f32 %v581, %v590
    %v593 = vmul.f32 %v583, %v591
    %594 = vrot.lane.b32.xlu0 %v396, 64
    %v595 = vpop.permute.xlu0 %594
    %v598 = vsel %vm571, %v592, 0
    %600 = vmatprep.subr.mxu0 0.0
    %601 = vmatpush1.msra.mxu0 %v595
    %602 = vmatprep.subr.mxu0 0.0
    %603 = vmatpush1.msra.mxu0 0.0
    %604 = vmatprep.subr.mxu0 0.0
    %605 = vmatpush1.msra.mxu0 0.0
    %606 = vmatprep.subr.mxu0 0.0
    %607 = vmatpush1.msra.mxu0 0.0
    %608 = vmatprep.subr.mxu0 0.0
    %609 = vmatpush1.msra.mxu0 0.0
    %610 = vmatprep.subr.mxu0 0.0
    %611 = vmatpush1.msra.mxu0 0.0
    %612 = vmatprep.subr.mxu0 0.0
    %613 = vmatpush1.msra.mxu0 0.0
    %614 = vmatprep.subr.mxu0 0.0
    %615 = vmatpush1.msra.mxu0 0.0
    %616 = vmatprep.subr.mxu0 0.0
    %617 = vmatpush1.msra.mxu0 0.0
    %618 = vmatprep.subr.mxu0 0.0
    %619 = vmatpush1.msra.mxu0 0.0
    %620 = vmatprep.subr.mxu0 0.0
    %621 = vmatpush1.msra.mxu0 0.0
    %622 = vmatprep.subr.mxu0 0.0
    %623 = vmatpush1.msra.mxu0 0.0
    %624 = vmatprep.subr.mxu0 0.0
    %625 = vmatpush1.msra.mxu0 0.0
    %626 = vmatprep.subr.mxu0 0.0
    %627 = vmatpush1.msra.mxu0 0.0
    %628 = vmatprep.subr.mxu0 0.0
    %629 = vmatpush1.msra.mxu0 0.0
    %630 = vmatprep.subr.mxu0 0.0
    %631 = vmatpush1.msra.mxu0 0.0
    %632 = vmatprep.subr.mxu0 0.0
    %633 = vmatpush1.msra.mxu0 0.0
    %634 = vmatprep.subr.mxu0 0.0
    %635 = vmatpush1.msra.mxu0 0.0
    %636 = vmatprep.subr.mxu0 0.0
    %637 = vmatpush1.msra.mxu0 0.0
    %638 = vmatprep.subr.mxu0 0.0
    %639 = vmatpush1.msra.mxu0 0.0
    %640 = vmatprep.subr.mxu0 0.0
    %641 = vmatpush1.msra.mxu0 0.0
    %642 = vmatprep.subr.mxu0 0.0
    %643 = vmatpush1.msra.mxu0 0.0
    %644 = vmatprep.subr.mxu0 0.0
    %645 = vmatpush1.msra.mxu0 0.0
    %646 = vmatprep.subr.mxu0 0.0
    %647 = vmatpush1.msra.mxu0 0.0
    %648 = vmatprep.subr.mxu0 0.0
    %649 = vmatpush1.msra.mxu0 0.0
    %650 = vmatprep.subr.mxu0 0.0
    %651 = vmatpush1.msra.mxu0 0.0
    %652 = vmatprep.subr.mxu0 0.0
    %653 = vmatpush1.msra.mxu0 0.0
    %654 = vmatprep.subr.mxu0 0.0
    %655 = vmatpush1.msra.mxu0 0.0
    %656 = vmatprep.subr.mxu0 0.0
    %657 = vmatpush1.msra.mxu0 0.0
    %658 = vmatprep.subr.mxu0 0.0
    %659 = vmatpush1.msra.mxu0 0.0
    %660 = vmatprep.subr.mxu0 0.0
    %661 = vmatpush1.msra.mxu0 0.0
    %662 = vmatprep.subr.mxu0 0.0
    %663 = vmatpush1.msra.mxu0 0.0
    %664 = vmatprep.mubr.f32.mxu0 0.0
    %665 = vmatmul.mubr.f32.gmra.mrb[0].mxu0 %v598
    %v666 = vpop.f32.mrb[0].mxu0
    %v667 = vadd.f32 0.0, %v666
    %v668 = vpop.f32.mrb[0].mxu0
    %669 = vdwg.mxu0
    %670 = vrot.lane.b32.xlu0 %v401, 64
    %v671 = vpop.permute.xlu0 %670
    %v674 = vsel %vm571, %v593, 0
    %676 = vmatprep.subr.mxu0 0.0
    %677 = vmatpush1.msra.mxu0 %v671
    %678 = vmatprep.subr.mxu0 0.0
    %679 = vmatpush1.msra.mxu0 0.0
    %680 = vmatprep.subr.mxu0 0.0
    %681 = vmatpush1.msra.mxu0 0.0
    %682 = vmatprep.subr.mxu0 0.0
    %683 = vmatpush1.msra.mxu0 0.0
    %684 = vmatprep.subr.mxu0 0.0
    %685 = vmatpush1.msra.mxu0 0.0
    %686 = vmatprep.subr.mxu0 0.0
    %687 = vmatpush1.msra.mxu0 0.0
    %688 = vmatprep.subr.mxu0 0.0
    %689 = vmatpush1.msra.mxu0 0.0
    %690 = vmatprep.subr.mxu0 0.0
    %691 = vmatpush1.msra.mxu0 0.0
    %692 = vmatprep.subr.mxu0 0.0
    %693 = vmatpush1.msra.mxu0 0.0
    %694 = vmatprep.subr.mxu0 0.0
    %695 = vmatpush1.msra.mxu0 0.0
    %696 = vmatprep.subr.mxu0 0.0
    %697 = vmatpush1.msra.mxu0 0.0
    %698 = vmatprep.subr.mxu0 0.0
    %699 = vmatpush1.msra.mxu0 0.0
    %700 = vmatprep.subr.mxu0 0.0
    %701 = vmatpush1.msra.mxu0 0.0
    %702 = vmatprep.subr.mxu0 0.0
    %703 = vmatpush1.msra.mxu0 0.0
    %704 = vmatprep.subr.mxu0 0.0
    %705 = vmatpush1.msra.mxu0 0.0
    %706 = vmatprep.subr.mxu0 0.0
    %707 = vmatpush1.msra.mxu0 0.0
    %708 = vmatprep.subr.mxu0 0.0
    %709 = vmatpush1.msra.mxu0 0.0
    %710 = vmatprep.subr.mxu0 0.0
    %711 = vmatpush1.msra.mxu0 0.0
    %712 = vmatprep.subr.mxu0 0.0
    %713 = vmatpush1.msra.mxu0 0.0
    %714 = vmatprep.subr.mxu0 0.0
    %715 = vmatpush1.msra.mxu0 0.0
    %716 = vmatprep.subr.mxu0 0.0
    %717 = vmatpush1.msra.mxu0 0.0
    %718 = vmatprep.subr.mxu0 0.0
    %719 = vmatpush1.msra.mxu0 0.0
    %720 = vmatprep.subr.mxu0 0.0
    %721 = vmatpush1.msra.mxu0 0.0
    %722 = vmatprep.subr.mxu0 0.0
    %723 = vmatpush1.msra.mxu0 0.0
    %724 = vmatprep.subr.mxu0 0.0
    %725 = vmatpush1.msra.mxu0 0.0
    %726 = vmatprep.subr.mxu0 0.0
    %727 = vmatpush1.msra.mxu0 0.0
    %728 = vmatprep.subr.mxu0 0.0
    %729 = vmatpush1.msra.mxu0 0.0
    %730 = vmatprep.subr.mxu0 0.0
    %731 = vmatpush1.msra.mxu0 0.0
    %732 = vmatprep.subr.mxu0 0.0
    %733 = vmatpush1.msra.mxu0 0.0
    %734 = vmatprep.subr.mxu0 0.0
    %735 = vmatpush1.msra.mxu0 0.0
    %736 = vmatprep.subr.mxu0 0.0
    %737 = vmatpush1.msra.mxu0 0.0
    %738 = vmatprep.subr.mxu0 0.0
    %739 = vmatpush1.msra.mxu0 0.0
    %740 = vmatprep.mubr.f32.mxu0 0.0
    %741 = vmatmul.mubr.f32.gmra.mrb[0].mxu0 %v674
    %v742 = vpop.f32.mrb[0].mxu0
    %v743 = vadd.f32 0.0, %v742
    %v744 = vpop.f32.mrb[0].mxu0
    %745 = vdwg.mxu0
    %746 = vrot.lane.b32.xlu0 %v396, 112
    %v747 = vpop.permute.xlu0 %746
    %748 = vrot.lane.b32.xlu0 %v396, 80
    %v749 = vpop.permute.xlu0 %748
    %v750 = vsel %vm419, %v747, 0
    %v752 = vsel %vm419, %v749, 0
    %754 = vmatprep.subr.mxu0 0.0
    %755 = vmatpush1.xpose.msra.mxu0 %v752
    %756 = vmatprep.subr.mxu0 0.0
    %757 = vmatpush1.xpose.msra.mxu0 0.0
    %758 = vmatprep.subr.mxu0 0.0
    %759 = vmatpush1.xpose.msra.mxu0 0.0
    %760 = vmatprep.subr.mxu0 0.0
    %761 = vmatpush1.xpose.msra.mxu0 0.0
    %762 = vmatprep.subr.mxu0 0.0
    %763 = vmatpush1.xpose.msra.mxu0 0.0
    %764 = vmatprep.subr.mxu0 0.0
    %765 = vmatpush1.xpose.msra.mxu0 0.0
    %766 = vmatprep.subr.mxu0 0.0
    %767 = vmatpush1.xpose.msra.mxu0 0.0
    %768 = vmatprep.subr.mxu0 0.0
    %769 = vmatpush1.xpose.msra.mxu0 0.0
    %770 = vmatprep.subr.mxu0 0.0
    %771 = vmatpush1.xpose.msra.mxu0 0.0
    %772 = vmatprep.subr.mxu0 0.0
    %773 = vmatpush1.xpose.msra.mxu0 0.0
    %774 = vmatprep.subr.mxu0 0.0
    %775 = vmatpush1.xpose.msra.mxu0 0.0
    %776 = vmatprep.subr.mxu0 0.0
    %777 = vmatpush1.xpose.msra.mxu0 0.0
    %778 = vmatprep.subr.mxu0 0.0
    %779 = vmatpush1.xpose.msra.mxu0 0.0
    %780 = vmatprep.subr.mxu0 0.0
    %781 = vmatpush1.xpose.msra.mxu0 0.0
    %782 = vmatprep.subr.mxu0 0.0
    %783 = vmatpush1.xpose.msra.mxu0 0.0
    %784 = vmatprep.subr.mxu0 0.0
    %785 = vmatpush1.xpose.msra.mxu0 0.0
    %786 = vmatprep.subr.mxu0 0.0
    %787 = vmatpush1.xpose.msra.mxu0 0.0
    %788 = vmatprep.subr.mxu0 0.0
    %789 = vmatpush1.xpose.msra.mxu0 0.0
    %790 = vmatprep.subr.mxu0 0.0
    %791 = vmatpush1.xpose.msra.mxu0 0.0
    %792 = vmatprep.subr.mxu0 0.0
    %793 = vmatpush1.xpose.msra.mxu0 0.0
    %794 = vmatprep.subr.mxu0 0.0
    %795 = vmatpush1.xpose.msra.mxu0 0.0
    %796 = vmatprep.subr.mxu0 0.0
    %797 = vmatpush1.xpose.msra.mxu0 0.0
    %798 = vmatprep.subr.mxu0 0.0
    %799 = vmatpush1.xpose.msra.mxu0 0.0
    %800 = vmatprep.subr.mxu0 0.0
    %801 = vmatpush1.xpose.msra.mxu0 0.0
    %802 = vmatprep.subr.mxu0 0.0
    %803 = vmatpush1.xpose.msra.mxu0 0.0
    %804 = vmatprep.subr.mxu0 0.0
    %805 = vmatpush1.xpose.msra.mxu0 0.0
    %806 = vmatprep.subr.mxu0 0.0
    %807 = vmatpush1.xpose.msra.mxu0 0.0
    %808 = vmatprep.subr.mxu0 0.0
    %809 = vmatpush1.xpose.msra.mxu0 0.0
    %810 = vmatprep.subr.mxu0 0.0
    %811 = vmatpush1.xpose.msra.mxu0 0.0
    %812 = vmatprep.subr.mxu0 0.0
    %813 = vmatpush1.xpose.msra.mxu0 0.0
    %814 = vmatprep.subr.mxu0 0.0
    %815 = vmatpush1.xpose.msra.mxu0 0.0
    %816 = vmatprep.subr.mxu0 0.0
    %817 = vmatpush1.xpose.msra.mxu0 0.0
    %818 = vmatprep.mubr.f32.mxu0 0.0
    %819 = vmatmul.mubr.f32.gmra.mrb[0].mxu0 %v750
    %v820 = vpop.f32.mrb[0].mxu0
    %v821 = vadd.f32 %v409, %v820
    %v822 = vpop.f32.mrb[0].mxu0
    %823 = vdwg.mxu0
    %824 = vrot.lane.b32.xlu0 %v401, 112
    %v825 = vpop.permute.xlu0 %824
    %826 = vrot.lane.b32.xlu0 %v401, 80
    %v827 = vpop.permute.xlu0 %826
    %v828 = vsel %vm419, %v825, 0
    %v830 = vsel %vm419, %v827, 0
    %832 = vmatprep.subr.mxu0 0.0
    %833 = vmatpush1.xpose.msra.mxu0 %v830
    %834 = vmatprep.subr.mxu0 0.0
    %835 = vmatpush1.xpose.msra.mxu0 0.0
    %836 = vmatprep.subr.mxu0 0.0
    %837 = vmatpush1.xpose.msra.mxu0 0.0
    %838 = vmatprep.subr.mxu0 0.0
    %839 = vmatpush1.xpose.msra.mxu0 0.0
    %840 = vmatprep.subr.mxu0 0.0
    %841 = vmatpush1.xpose.msra.mxu0 0.0
    %842 = vmatprep.subr.mxu0 0.0
    %843 = vmatpush1.xpose.msra.mxu0 0.0
    %844 = vmatprep.subr.mxu0 0.0
    %845 = vmatpush1.xpose.msra.mxu0 0.0
    %846 = vmatprep.subr.mxu0 0.0
    %847 = vmatpush1.xpose.msra.mxu0 0.0
    %848 = vmatprep.subr.mxu0 0.0
    %849 = vmatpush1.xpose.msra.mxu0 0.0
    %850 = vmatprep.subr.mxu0 0.0
    %851 = vmatpush1.xpose.msra.mxu0 0.0
    %852 = vmatprep.subr.mxu0 0.0
    %853 = vmatpush1.xpose.msra.mxu0 0.0
    %854 = vmatprep.subr.mxu0 0.0
    %855 = vmatpush1.xpose.msra.mxu0 0.0
    %856 = vmatprep.subr.mxu0 0.0
    %857 = vmatpush1.xpose.msra.mxu0 0.0
    %858 = vmatprep.subr.mxu0 0.0
    %859 = vmatpush1.xpose.msra.mxu0 0.0
    %860 = vmatprep.subr.mxu0 0.0
    %861 = vmatpush1.xpose.msra.mxu0 0.0
    %862 = vmatprep.subr.mxu0 0.0
    %863 = vmatpush1.xpose.msra.mxu0 0.0
    %864 = vmatprep.subr.mxu0 0.0
    %865 = vmatpush1.xpose.msra.mxu0 0.0
    %866 = vmatprep.subr.mxu0 0.0
    %867 = vmatpush1.xpose.msra.mxu0 0.0
    %868 = vmatprep.subr.mxu0 0.0
    %869 = vmatpush1.xpose.msra.mxu0 0.0
    %870 = vmatprep.subr.mxu0 0.0
    %871 = vmatpush1.xpose.msra.mxu0 0.0
    %872 = vmatprep.subr.mxu0 0.0
    %873 = vmatpush1.xpose.msra.mxu0 0.0
    %874 = vmatprep.subr.mxu0 0.0
    %875 = vmatpush1.xpose.msra.mxu0 0.0
    %876 = vmatprep.subr.mxu0 0.0
    %877 = vmatpush1.xpose.msra.mxu0 0.0
    %878 = vmatprep.subr.mxu0 0.0
    %879 = vmatpush1.xpose.msra.mxu0 0.0
    %880 = vmatprep.subr.mxu0 0.0
    %881 = vmatpush1.xpose.msra.mxu0 0.0
    %882 = vmatprep.subr.mxu0 0.0
    %883 = vmatpush1.xpose.msra.mxu0 0.0
    %884 = vmatprep.subr.mxu0 0.0
    %885 = vmatpush1.xpose.msra.mxu0 0.0
    %886 = vmatprep.subr.mxu0 0.0
    %887 = vmatpush1.xpose.msra.mxu0 0.0
    %888 = vmatprep.subr.mxu0 0.0
    %889 = vmatpush1.xpose.msra.mxu0 0.0
    %890 = vmatprep.subr.mxu0 0.0
    %891 = vmatpush1.xpose.msra.mxu0 0.0
    %892 = vmatprep.subr.mxu0 0.0
    %893 = vmatpush1.xpose.msra.mxu0 0.0
    %894 = vmatprep.subr.mxu0 0.0
    %895 = vmatpush1.xpose.msra.mxu0 0.0
    %896 = vmatprep.mubr.f32.mxu0 0.0
    %897 = vmatmul.mubr.f32.gmra.mrb[0].mxu0 %v828
    %v898 = vpop.f32.mrb[0].mxu0
    %v899 = vadd.f32 %v413, %v898
    %v900 = vpop.f32.mrb[0].mxu0
    %901 = vdwg.mxu0
    %v902 = vsel %vm571, %v821, -inf
    %903 = vmax.xlane.f32.xlu0 %v902
    %v904 = vpop.xlane.xlu0 %903
    %v905 = vsel %vm571, %v899, -inf
    %906 = vmax.xlane.f32.xlu0 %v905
    %v907 = vpop.xlane.xlu0 %906
    %v908 = vsub.f32 %v821, %v904
    %v909 = vsub.f32 %v899, %v907
    %v910 = vmul.f32 %v908, 1.442695
    %v911 = vpow.pop %v910
    %v912 = vmul.f32 %v909, 1.442695
    %v913 = vpow.pop %v912
    %v914 = vsel %vm571, %v911, 0.0
    %915 = vadd.xlane.f32.xlu0 %v914
    %v916 = vpop.xlane.xlu0 %915
    %v917 = vsel %vm571, %v913, 0.0
    %918 = vadd.xlane.f32.xlu0 %v917
    %v919 = vpop.xlane.xlu0 %918
    %v920 = vrcp.pop %v916
    %v921 = vrcp.pop %v919
    %v922 = vmul.f32 %v911, %v920
    %v923 = vmul.f32 %v913, %v921
    %924 = vrot.lane.b32.xlu0 %v396, 48
    %v925 = vpop.permute.xlu0 %924
    %v928 = vsel %vm571, %v922, 0
    %930 = vmatprep.subr.mxu0 0.0
    %931 = vmatpush1.msra.mxu0 %v925
    %932 = vmatprep.subr.mxu0 0.0
    %933 = vmatpush1.msra.mxu0 0.0
    %934 = vmatprep.subr.mxu0 0.0
    %935 = vmatpush1.msra.mxu0 0.0
    %936 = vmatprep.subr.mxu0 0.0
    %937 = vmatpush1.msra.mxu0 0.0
    %938 = vmatprep.subr.mxu0 0.0
    %939 = vmatpush1.msra.mxu0 0.0
    %940 = vmatprep.subr.mxu0 0.0
    %941 = vmatpush1.msra.mxu0 0.0
    %942 = vmatprep.subr.mxu0 0.0
    %943 = vmatpush1.msra.mxu0 0.0
    %944 = vmatprep.subr.mxu0 0.0
    %945 = vmatpush1.msra.mxu0 0.0
    %946 = vmatprep.subr.mxu0 0.0
    %947 = vmatpush1.msra.mxu0 0.0
    %948 = vmatprep.subr.mxu0 0.0
    %949 = vmatpush1.msra.mxu0 0.0
    %950 = vmatprep.subr.mxu0 0.0
    %951 = vmatpush1.msra.mxu0 0.0
    %952 = vmatprep.subr.mxu0 0.0
    %953 = vmatpush1.msra.mxu0 0.0
    %954 = vmatprep.subr.mxu0 0.0
    %955 = vmatpush1.msra.mxu0 0.0
    %956 = vmatprep.subr.mxu0 0.0
    %957 = vmatpush1.msra.mxu0 0.0
    %958 = vmatprep.subr.mxu0 0.0
    %959 = vmatpush1.msra.mxu0 0.0
    %960 = vmatprep.subr.mxu0 0.0
    %961 = vmatpush1.msra.mxu0 0.0
    %962 = vmatprep.subr.mxu0 0.0
    %963 = vmatpush1.msra.mxu0 0.0
    %964 = vmatprep.subr.mxu0 0.0
    %965 = vmatpush1.msra.mxu0 0.0
    %966 = vmatprep.subr.mxu0 0.0
    %967 = vmatpush1.msra.mxu0 0.0
    %968 = vmatprep.subr.mxu0 0.0
    %969 = vmatpush1.msra.mxu0 0.0
    %970 = vmatprep.subr.mxu0 0.0
    %971 = vmatpush1.msra.mxu0 0.0
    %972 = vmatprep.subr.mxu0 0.0
    %973 = vmatpush1.msra.mxu0 0.0
    %974 = vmatprep.subr.mxu0 0.0
    %975 = vmatpush1.msra.mxu0 0.0
    %976 = vmatprep.subr.mxu0 0.0
    %977 = vmatpush1.msra.mxu0 0.0
    %978 = vmatprep.subr.mxu0 0.0
    %979 = vmatpush1.msra.mxu0 0.0
    %980 = vmatprep.subr.mxu0 0.0
    %981 = vmatpush1.msra.mxu0 0.0
    %982 = vmatprep.subr.mxu0 0.0
    %983 = vmatpush1.msra.mxu0 0.0
    %984 = vmatprep.subr.mxu0 0.0
    %985 = vmatpush1.msra.mxu0 0.0
    %986 = vmatprep.subr.mxu0 0.0
    %987 = vmatpush1.msra.mxu0 0.0
    %988 = vmatprep.subr.mxu0 0.0
    %989 = vmatpush1.msra.mxu0 0.0
    %990 = vmatprep.subr.mxu0 0.0
    %991 = vmatpush1.msra.mxu0 0.0
    %992 = vmatprep.subr.mxu0 0.0
    %993 = vmatpush1.msra.mxu0 0.0
    %994 = vmatprep.mubr.f32.mxu0 0.0
    %995 = vmatmul.mubr.f32.gmra.mrb[0].mxu0 %v928
    %v996 = vpop.f32.mrb[0].mxu0
    %v997 = vadd.f32 0.0, %v996
    %v998 = vpop.f32.mrb[0].mxu0
    %999 = vdwg.mxu0
    %1000 = vrot.lane.b32.xlu0 %v401, 48
    %v1001 = vpop.permute.xlu0 %1000
    %v1004 = vsel %vm571, %v923, 0
    %1006 = vmatprep.subr.mxu0 0.0
    %1007 = vmatpush1.msra.mxu0 %v1001
    %1008 = vmatprep.subr.mxu0 0.0
    %1009 = vmatpush1.msra.mxu0 0.0
    %1010 = vmatprep.subr.mxu0 0.0
    %1011 = vmatpush1.msra.mxu0 0.0
    %1012 = vmatprep.subr.mxu0 0.0
    %1013 = vmatpush1.msra.mxu0 0.0
    %1014 = vmatprep.subr.mxu0 0.0
    %1015 = vmatpush1.msra.mxu0 0.0
    %1016 = vmatprep.subr.mxu0 0.0
    %1017 = vmatpush1.msra.mxu0 0.0
    %1018 = vmatprep.subr.mxu0 0.0
    %1019 = vmatpush1.msra.mxu0 0.0
    %1020 = vmatprep.subr.mxu0 0.0
    %1021 = vmatpush1.msra.mxu0 0.0
    %1022 = vmatprep.subr.mxu0 0.0
    %1023 = vmatpush1.msra.mxu0 0.0
    %1024 = vmatprep.subr.mxu0 0.0
    %1025 = vmatpush1.msra.mxu0 0.0
    %1026 = vmatprep.subr.mxu0 0.0
    %1027 = vmatpush1.msra.mxu0 0.0
    %1028 = vmatprep.subr.mxu0 0.0
    %1029 = vmatpush1.msra.mxu0 0.0
    %1030 = vmatprep.subr.mxu0 0.0
    %1031 = vmatpush1.msra.mxu0 0.0
    %1032 = vmatprep.subr.mxu0 0.0
    %1033 = vmatpush1.msra.mxu0 0.0
    %1034 = vmatprep.subr.mxu0 0.0
    %1035 = vmatpush1.msra.mxu0 0.0
    %1036 = vmatprep.subr.mxu0 0.0
    %1037 = vmatpush1.msra.mxu0 0.0
    %1038 = vmatprep.subr.mxu0 0.0
    %1039 = vmatpush1.msra.mxu0 0.0
    %1040 = vmatprep.subr.mxu0 0.0
    %1041 = vmatpush1.msra.mxu0 0.0
    %1042 = vmatprep.subr.mxu0 0.0
    %1043 = vmatpush1.msra.mxu0 0.0
    %1044 = vmatprep.subr.mxu0 0.0
    %1045 = vmatpush1.msra.mxu0 0.0
    %1046 = vmatprep.subr.mxu0 0.0
    %1047 = vmatpush1.msra.mxu0 0.0
    %1048 = vmatprep.subr.mxu0 0.0
    %1049 = vmatpush1.msra.mxu0 0.0
    %1050 = vmatprep.subr.mxu0 0.0
    %1051 = vmatpush1.msra.mxu0 0.0
    %1052 = vmatprep.subr.mxu0 0.0
    %1053 = vmatpush1.msra.mxu0 0.0
    %1054 = vmatprep.subr.mxu0 0.0
    %1055 = vmatpush1.msra.mxu0 0.0
    %1056 = vmatprep.subr.mxu0 0.0
    %1057 = vmatpush1.msra.mxu0 0.0
    %1058 = vmatprep.subr.mxu0 0.0
    %1059 = vmatpush1.msra.mxu0 0.0
    %1060 = vmatprep.subr.mxu0 0.0
    %1061 = vmatpush1.msra.mxu0 0.0
    %1062 = vmatprep.subr.mxu0 0.0
    %1063 = vmatpush1.msra.mxu0 0.0
    %1064 = vmatprep.subr.mxu0 0.0
    %1065 = vmatpush1.msra.mxu0 0.0
    %1066 = vmatprep.subr.mxu0 0.0
    %1067 = vmatpush1.msra.mxu0 0.0
    %1068 = vmatprep.subr.mxu0 0.0
    %1069 = vmatpush1.msra.mxu0 0.0
    %1070 = vmatprep.mubr.f32.mxu0 0.0
    %1071 = vmatmul.mubr.f32.gmra.mrb[0].mxu0 %v1004
    %v1072 = vpop.f32.mrb[0].mxu0
    %v1073 = vadd.f32 0.0, %v1072
    %v1074 = vpop.f32.mrb[0].mxu0
    %1075 = vdwg.mxu0
    %1078 = vrot.lane.b32.xlu0 %v997, 16
    %v1079 = vpop.permute.xlu0 %1078
    %1080 = vrot.lane.b32.xlu0 %v1073, 16
    %v1081 = vpop.permute.xlu0 %1080
    %v1084 = vsel %vm419, %v667, %v1079
    %v1085 = vsel %vm419, %v743, %v1081
    %v1086 = vld [vmem:[%s8] sm:$0xff]
    %v1087 = vld [vmem:[%s8 + $0x8] sm:$0xff]
    %v1088 = vld [vmem:[%s8 + $0x10] sm:$0xff]
    %v1089 = vld [vmem:[%s8 + $0x18] sm:$0xff]
    %v1090 = vld [vmem:[#allocation14] sm:$0x1]
    %v1092 = vlaneseq
    %v1093 = vshrl.u32 %v1092, 7
    %v1094 = vsub.s32 0, %v1093
    %v1095 = vrot.slane %v1090, %v1094
    %v1098 = vsel %vm266, %v1084, 0
    %v1101 = vsel %vm266, %v1085, 0
    %1103 = vmatprep.subr.mxu0 0.0
    %1104 = vmatpush1.msra.mxu0 %v1086
    %1105 = vmatprep.subr.mxu0 0.0
    %1106 = vmatpush1.msra.mxu0 %v1087
    %1107 = vmatprep.subr.mxu0 0.0
    %1108 = vmatpush1.msra.mxu0 %v1088
    %1109 = vmatprep.subr.mxu0 0.0
    %1110 = vmatpush1.msra.mxu0 %v1089
    %1111 = vmatprep.subr.mxu0 0.0
    %1112 = vmatpush1.msra.mxu0 0.0
    %1113 = vmatprep.subr.mxu0 0.0
    %1114 = vmatpush1.msra.mxu0 0.0
    %1115 = vmatprep.subr.mxu0 0.0
    %1116 = vmatpush1.msra.mxu0 0.0
    %1117 = vmatprep.subr.mxu0 0.0
    %1118 = vmatpush1.msra.mxu0 0.0
    %1119 = vmatprep.subr.mxu0 0.0
    %1120 = vmatpush1.msra.mxu0 0.0
    %1121 = vmatprep.subr.mxu0 0.0
    %1122 = vmatpush1.msra.mxu0 0.0
    %1123 = vmatprep.subr.mxu0 0.0
    %1124 = vmatpush1.msra.mxu0 0.0
    %1125 = vmatprep.subr.mxu0 0.0
    %1126 = vmatpush1.msra.mxu0 0.0
    %1127 = vmatprep.subr.mxu0 0.0
    %1128 = vmatpush1.msra.mxu0 0.0
    %1129 = vmatprep.subr.mxu0 0.0
    %1130 = vmatpush1.msra.mxu0 0.0
    %1131 = vmatprep.subr.mxu0 0.0
    %1132 = vmatpush1.msra.mxu0 0.0
    %1133 = vmatprep.subr.mxu0 0.0
    %1134 = vmatpush1.msra.mxu0 0.0
    %1135 = vmatprep.subr.mxu0 0.0
    %1136 = vmatpush1.msra.mxu0 0.0
    %1137 = vmatprep.subr.mxu0 0.0
    %1138 = vmatpush1.msra.mxu0 0.0
    %1139 = vmatprep.subr.mxu0 0.0
    %1140 = vmatpush1.msra.mxu0 0.0
    %1141 = vmatprep.subr.mxu0 0.0
    %1142 = vmatpush1.msra.mxu0 0.0
    %1143 = vmatprep.subr.mxu0 0.0
    %1144 = vmatpush1.msra.mxu0 0.0
    %1145 = vmatprep.subr.mxu0 0.0
    %1146 = vmatpush1.msra.mxu0 0.0
    %1147 = vmatprep.subr.mxu0 0.0
    %1148 = vmatpush1.msra.mxu0 0.0
    %1149 = vmatprep.subr.mxu0 0.0
    %1150 = vmatpush1.msra.mxu0 0.0
    %1151 = vmatprep.subr.mxu0 0.0
    %1152 = vmatpush1.msra.mxu0 0.0
    %1153 = vmatprep.subr.mxu0 0.0
    %1154 = vmatpush1.msra.mxu0 0.0
    %1155 = vmatprep.subr.mxu0 0.0
    %1156 = vmatpush1.msra.mxu0 0.0
    %1157 = vmatprep.subr.mxu0 0.0
    %1158 = vmatpush1.msra.mxu0 0.0
    %1159 = vmatprep.subr.mxu0 0.0
    %1160 = vmatpush1.msra.mxu0 0.0
    %1161 = vmatprep.subr.mxu0 0.0
    %1162 = vmatpush1.msra.mxu0 0.0
    %1163 = vmatprep.subr.mxu0 0.0
    %1164 = vmatpush1.msra.mxu0 0.0
    %1165 = vmatprep.subr.mxu0 0.0
    %1166 = vmatpush1.msra.mxu0 0.0
    %1167 = vmatprep.mubr.f32.mxu0 0.0
    %1168 = vmatmul.mubr.f32.gmra.mrb[0].mxu0 %v1098
    %v1169 = vpop.f32.mrb[0].mxu0
    %v1170 = vadd.f32 %v1095, %v1169
    %v1171 = vpop.f32.mrb[0].mxu0
    %1172 = vmatprep.mubr.f32.mxu0 0.0
    %1173 = vmatmul.mubr.f32.gmra.mrb[0].mxu0 %v1101
    %v1174 = vpop.f32.mrb[0].mxu0
    %v1175 = vadd.f32 %v1095, %v1174
    %v1176 = vpop.f32.mrb[0].mxu0
    %1177 = vdwg.mxu0
    %v1178 = vadd.f32 %v308, %v1170
    %v1179 = vadd.f32 %v309, %v1175
    %v1180 = vld [vmem:[#allocation16] sm:$0x1]
    %v1181 = vld [vmem:[#allocation17] sm:$0x1]
    %v1182 = vsel %vm266, %v1178, 0.0
    %1183 = vadd.xlane.f32.xlu0 %v1182
    %v1184 = vpop.xlane.xlu0 %1183
    %v1185 = vsel %vm266, %v1179, 0.0
    %1186 = vadd.xlane.f32.xlu0 %v1185
    %v1187 = vpop.xlane.xlu0 %1186
    %v1188 = vmul.f32 %v1184, %v273
    %v1189 = vmul.f32 %v1187, %v273
    %v1190 = vsub.f32 %v1178, %v1188
    %v1191 = vsub.f32 %v1179, %v1189
    %v1192 = vmul.f32 %v1190, %v1190
    %v1193 = vmul.f32 %v1191, %v1191
    %v1194 = vsel %vm266, %v1192, 0.0
    %1195 = vadd.xlane.f32.xlu0 %v1194
    %v1196 = vpop.xlane.xlu0 %1195
    %v1197 = vsel %vm266, %v1193, 0.0
    %1198 = vadd.xlane.f32.xlu0 %v1197
    %v1199 = vpop.xlane.xlu0 %1198
    %v1200 = vmul.f32 %v1196, %v273
    %v1201 = vmul.f32 %v1199, %v273
    %v1202 = vadd.f32 %v1200, 1e-12
    %v1203 = vadd.f32 %v1201, 1e-12
    %v1204 = vrsqrt.pop %v1202
    %v1205 = vrsqrt.pop %v1203
    %v1206 = vmul.f32 %v1190, %v1204
    %v1207 = vmul.f32 %v1191, %v1205
    %v1209 = vlaneseq
    %v1210 = vshrl.u32 %v1209, 7
    %v1211 = vsub.s32 0, %v1210
    %v1212 = vrot.slane %v1180, %v1211
    %v1214 = vmul.f32 %v1206, %v1212
    %v1215 = vmul.f32 %v1207, %v1212
    %v1217 = vlaneseq
    %v1218 = vshrl.u32 %v1217, 7
    %v1219 = vsub.s32 0, %v1218
    %v1220 = vrot.slane %v1181, %v1219
    %v1222 = vadd.f32 %v1214, %v1220
    %v1223 = vadd.f32 %v1215, %v1220
    %v1224 = vld [vmem:[%s12] sm:$0xff]
    %v1225 = vld [vmem:[%s12 + $0x8] sm:$0xff]
    %v1226 = vld [vmem:[%s12 + $0x10] sm:$0xff]
    %v1227 = vld [vmem:[%s12 + $0x18] sm:$0xff]
    %v1228 = vld [vmem:[#allocation19] sm:$0x1]
    %v1230 = vlaneseq
    %v1231 = vshrl.u32 %v1230, 7
    %v1232 = vsub.s32 0, %v1231
    %v1233 = vrot.slane %v1228, %v1232
    %v1236 = vsel %vm266, %v1222, 0
    %v1239 = vsel %vm266, %v1223, 0
    %1241 = vmatprep.subr.mxu0 0.0
    %1242 = vmatpush1.msra.mxu0 %v1224
    %1243 = vmatprep.subr.mxu0 0.0
    %1244 = vmatpush1.msra.mxu0 %v1225
    %1245 = vmatprep.subr.mxu0 0.0
    %1246 = vmatpush1.msra.mxu0 %v1226
    %1247 = vmatprep.subr.mxu0 0.0
    %1248 = vmatpush1.msra.mxu0 %v1227
    %1249 = vmatprep.subr.mxu0 0.0
    %1250 = vmatpush1.msra.mxu0 0.0
    %1251 = vmatprep.subr.mxu0 0.0
    %1252 = vmatpush1.msra.mxu0 0.0
    %1253 = vmatprep.subr.mxu0 0.0
    %1254 = vmatpush1.msra.mxu0 0.0
    %1255 = vmatprep.subr.mxu0 0.0
    %1256 = vmatpush1.msra.mxu0 0.0
    %1257 = vmatprep.subr.mxu0 0.0
    %1258 = vmatpush1.msra.mxu0 0.0
    %1259 = vmatprep.subr.mxu0 0.0
    %1260 = vmatpush1.msra.mxu0 0.0
    %1261 = vmatprep.subr.mxu0 0.0
    %1262 = vmatpush1.msra.mxu0 0.0
    %1263 = vmatprep.subr.mxu0 0.0
    %1264 = vmatpush1.msra.mxu0 0.0
    %1265 = vmatprep.subr.mxu0 0.0
    %1266 = vmatpush1.msra.mxu0 0.0
    %1267 = vmatprep.subr.mxu0 0.0
    %1268 = vmatpush1.msra.mxu0 0.0
    %1269 = vmatprep.subr.mxu0 0.0
    %1270 = vmatpush1.msra.mxu0 0.0
    %1271 = vmatprep.subr.mxu0 0.0
    %1272 = vmatpush1.msra.mxu0 0.0
    %1273 = vmatprep.subr.mxu0 0.0
    %1274 = vmatpush1.msra.mxu0 0.0
    %1275 = vmatprep.subr.mxu0 0.0
    %1276 = vmatpush1.msra.mxu0 0.0
    %1277 = vmatprep.subr.mxu0 0.0
    %1278 = vmatpush1.msra.mxu0 0.0
    %1279 = vmatprep.subr.mxu0 0.0
    %1280 = vmatpush1.msra.mxu0 0.0
    %1281 = vmatprep.subr.mxu0 0.0
    %1282 = vmatpush1.msra.mxu0 0.0
    %1283 = vmatprep.subr.mxu0 0.0
    %1284 = vmatpush1.msra.mxu0 0.0
    %1285 = vmatprep.subr.mxu0 0.0
    %1286 = vmatpush1.msra.mxu0 0.0
    %1287 = vmatprep.subr.mxu0 0.0
    %1288 = vmatpush1.msra.mxu0 0.0
    %1289 = vmatprep.subr.mxu0 0.0
    %1290 = vmatpush1.msra.mxu0 0.0
    %1291 = vmatprep.subr.mxu0 0.0
    %1292 = vmatpush1.msra.mxu0 0.0
    %1293 = vmatprep.subr.mxu0 0.0
    %1294 = vmatpush1.msra.mxu0 0.0
    %1295 = vmatprep.subr.mxu0 0.0
    %1296 = vmatpush1.msra.mxu0 0.0
    %1297 = vmatprep.subr.mxu0 0.0
    %1298 = vmatpush1.msra.mxu0 0.0
    %1299 = vmatprep.subr.mxu0 0.0
    %1300 = vmatpush1.msra.mxu0 0.0
    %1301 = vmatprep.subr.mxu0 0.0
    %1302 = vmatpush1.msra.mxu0 0.0
    %1303 = vmatprep.subr.mxu0 0.0
    %1304 = vmatpush1.msra.mxu0 0.0
    %1305 = vmatprep.mubr.f32.mxu0 0.0
    %1306 = vmatmul.mubr.f32.gmra.mrb[0].mxu0 %v1236
    %v1307 = vpop.f32.mrb[0].mxu0
    %v1308 = vadd.f32 %v1233, %v1307
    %v1309 = vpop.f32.mrb[0].mxu0
    %1310 = vmatprep.mubr.f32.mxu0 0.0
    %1311 = vmatmul.mubr.f32.gmra.mrb[0].mxu0 %v1239
    %v1312 = vpop.f32.mrb[0].mxu0
    %v1313 = vadd.f32 %v1233, %v1312
    %v1314 = vpop.f32.mrb[0].mxu0
    %1315 = vdwg.mxu0
    %v1316 = vmul.f32 %v1308, %v1308
    %v1317 = vmul.f32 %v1313, %v1313
    %v1318 = vmul.f32 %v1308, %v1316
    %v1319 = vmul.f32 %v1313, %v1317
    %v1320 = vmul.f32 %v1318, 0.044715
    %v1321 = vmul.f32 %v1319, 0.044715
    %v1322 = vadd.f32 %v1308, %v1320
    %v1323 = vadd.f32 %v1313, %v1321
    %v1324 = vmul.f32 %v1322, 0.7978846
    %v1325 = vmul.f32 %v1323, 0.7978846
    %v1326 = vtanh.pop %v1324
    %v1327 = vtanh.pop %v1325
    %v1328 = vadd.f32 %v1326, 1.0
    %v1329 = vadd.f32 %v1327, 1.0
    %v1330 = vmul.f32 %v1328, 0.5
    %v1331 = vmul.f32 %v1329, 0.5
    %v1332 = vmul.f32 %v1308, %v1330
    %v1333 = vmul.f32 %v1313, %v1331
    %v1334 = vld [vmem:[%s14] sm:$0xff]
    %v1335 = vld [vmem:[%s14 + $0x8] sm:$0xff]
    %v1336 = vld [vmem:[%s14 + $0x10] sm:$0xff]
    %v1337 = vld [vmem:[%s14 + $0x18] sm:$0xff]
    %v1338 = vld [vmem:[%s14 + $0x20] sm:$0xff]
    %v1339 = vld [vmem:[%s14 + $0x28] sm:$0xff]
    %v1340 = vld [vmem:[%s14 + $0x30] sm:$0xff]
    %v1341 = vld [vmem:[%s14 + $0x38] sm:$0xff]
    %v1342 = vld [vmem:[#allocation20] sm:$0x1]
    %v1344 = vlaneseq
    %v1345 = vshrl.u32 %v1344, 7
    %v1346 = vsub.s32 0, %v1345
    %v1347 = vrot.slane %v1342, %v1346
    %vm1349 = vcmask 523264
    %v1351 = vsel %vm1349, %v1332, 0
    %v1354 = vsel %vm1349, %v1333, 0
    %1356 = vmatprep.subr.mxu0 0.0
    %1357 = vmatpush1.msra.mxu0 %v1334
    %1358 = vmatprep.subr.mxu0 0.0
    %1359 = vmatpush1.msra.mxu0 %v1335
    %1360 = vmatprep.subr.mxu0 0.0
    %1361 = vmatpush1.msra.mxu0 %v1336
    %1362 = vmatprep.subr.mxu0 0.0
    %1363 = vmatpush1.msra.mxu0 %v1337
    %1364 = vmatprep.subr.mxu0 0.0
    %1365 = vmatpush1.msra.mxu0 %v1338
    %1366 = vmatprep.subr.mxu0 0.0
    %1367 = vmatpush1.msra.mxu0 %v1339
    %1368 = vmatprep.subr.mxu0 0.0
    %1369 = vmatpush1.msra.mxu0 %v1340
    %1370 = vmatprep.subr.mxu0 0.0
    %1371 = vmatpush1.msra.mxu0 %v1341
    %1372 = vmatprep.subr.mxu0 0.0
    %1373 = vmatpush1.msra.mxu0 0.0
    %1374 = vmatprep.subr.mxu0 0.0
    %1375 = vmatpush1.msra.mxu0 0.0
    %1376 = vmatprep.subr.mxu0 0.0
    %1377 = vmatpush1.msra.mxu0 0.0
    %1378 = vmatprep.subr.mxu0 0.0
    %1379 = vmatpush1.msra.mxu0 0.0
    %1380 = vmatprep.subr.mxu0 0.0
    %1381 = vmatpush1.msra.mxu0 0.0
    %1382 = vmatprep.subr.mxu0 0.0
    %1383 = vmatpush1.msra.mxu0 0.0
    %1384 = vmatprep.subr.mxu0 0.0
    %1385 = vmatpush1.msra.mxu0 0.0
    %1386 = vmatprep.subr.mxu0 0.0
    %1387 = vmatpush1.msra.mxu0 0.0
    %1388 = vmatprep.subr.mxu0 0.0
    %1389 = vmatpush1.msra.mxu0 0.0
    %1390 = vmatprep.subr.mxu0 0.0
    %1391 = vmatpush1.msra.mxu0 0.0
    %1392 = vmatprep.subr.mxu0 0.0
    %1393 = vmatpush1.msra.mxu0 0.0
    %1394 = vmatprep.subr.mxu0 0.0
    %1395 = vmatpush1.msra.mxu0 0.0
    %1396 = vmatprep.subr.mxu0 0.0
    %1397 = vmatpush1.msra.mxu0 0.0
    %1398 = vmatprep.subr.mxu0 0.0
    %1399 = vmatpush1.msra.mxu0 0.0
    %1400 = vmatprep.subr.mxu0 0.0
    %1401 = vmatpush1.msra.mxu0 0.0
    %1402 = vmatprep.subr.mxu0 0.0
    %1403 = vmatpush1.msra.mxu0 0.0
    %1404 = vmatprep.subr.mxu0 0.0
    %1405 = vmatpush1.msra.mxu0 0.0
    %1406 = vmatprep.subr.mxu0 0.0
    %1407 = vmatpush1.msra.mxu0 0.0
    %1408 = vmatprep.subr.mxu0 0.0
    %1409 = vmatpush1.msra.mxu0 0.0
    %1410 = vmatprep.subr.mxu0 0.0
    %1411 = vmatpush1.msra.mxu0 0.0
    %1412 = vmatprep.subr.mxu0 0.0
    %1413 = vmatpush1.msra.mxu0 0.0
    %1414 = vmatprep.subr.mxu0 0.0
    %1415 = vmatpush1.msra.mxu0 0.0
    %1416 = vmatprep.subr.mxu0 0.0
    %1417 = vmatpush1.msra.mxu0 0.0
    %1418 = vmatprep.subr.mxu0 0.0
    %1419 = vmatpush1.msra.mxu0 0.0
    %1420 = vmatprep.mubr.f32.mxu0 0.0
    %1421 = vmatmul.mubr.f32.gmra.mrb[0].mxu0 %v1351
    %v1422 = vpop.f32.mrb[0].mxu0
    %v1423 = vadd.f32 %v1347, %v1422
    %v1424 = vpop.f32.mrb[0].mxu0
    %1425 = vmatprep.mubr.f32.mxu0 0.0
    %1426 = vmatmul.mubr.f32.gmra.mrb[0].mxu0 %v1354
    %v1427 = vpop.f32.mrb[0].mxu0
    %v1428 = vadd.f32 %v1347, %v1427
    %v1429 = vpop.f32.mrb[0].mxu0
    %1430 = vdwg.mxu0
    %v1431 = vadd.f32 %v1222, %v1423
    %v1432 = vadd.f32 %v1223, %v1428
    %v1433 = vld [vmem:[#allocation22] sm:$0x1]
    %v1434 = vld [vmem:[#allocation23] sm:$0x1]
    %v1435 = vsel %vm266, %v1431, 0.0
    %1436 = vadd.xlane.f32.xlu0 %v1435
    %v1437 = vpop.xlane.xlu0 %1436
    %v1438 = vsel %vm266, %v1432, 0.0
    %1439 = vadd.xlane.f32.xlu0 %v1438
    %v1440 = vpop.xlane.xlu0 %1439
    %v1441 = vmul.f32 %v1437, %v273
    %v1442 = vmul.f32 %v1440, %v273
    %v1443 = vsub.f32 %v1431, %v1441
    %v1444 = vsub.f32 %v1432, %v1442
    %v1445 = vmul.f32 %v1443, %v1443
    %v1446 = vmul.f32 %v1444, %v1444
    %v1447 = vsel %vm266, %v1445, 0.0
    %1448 = vadd.xlane.f32.xlu0 %v1447
    %v1449 = vpop.xlane.xlu0 %1448
    %v1450 = vsel %vm266, %v1446, 0.0
    %1451 = vadd.xlane.f32.xlu0 %v1450
    %v1452 = vpop.xlane.xlu0 %1451
    %v1453 = vmul.f32 %v1449, %v273
    %v1454 = vmul.f32 %v1452, %v273
    %v1455 = vadd.f32 %v1453, 1e-12
    %v1456 = vadd.f32 %v1454, 1e-12
    %v1457 = vrsqrt.pop %v1455
    %v1458 = vrsqrt.pop %v1456
    %v1459 = vmul.f32 %v1443, %v1457
    %v1460 = vmul.f32 %v1444, %v1458
    %v1462 = vlaneseq
    %v1463 = vshrl.u32 %v1462, 7
    %v1464 = vsub.s32 0, %v1463
    %v1465 = vrot.slane %v1433, %v1464
    %v1467 = vmul.f32 %v1459, %v1465
    %v1468 = vmul.f32 %v1460, %v1465
    %v1470 = vlaneseq
    %v1471 = vshrl.u32 %v1470, 7
    %v1472 = vsub.s32 0, %v1471
    %v1473 = vrot.slane %v1434, %v1472
    %v1475 = vadd.f32 %v1467, %v1473
    %v1476 = vadd.f32 %v1468, %v1473
    %s1477 = scalar_lea.vmem %s6, 32
    %v1478 = vld [vmem:[%s1477] sm:$0xff]
    %v1479 = vld [vmem:[%s1477 + $0x8] sm:$0xff]
    %v1480 = vld [vmem:[%s1477 + $0x10] sm:$0xff]
    %v1481 = vld [vmem:[%s1477 + $0x18] sm:$0xff]
    %s1482 = scalar_lea.vmem [#allocation13], 1
    %v1483 = vld [vmem:[%s1482] sm:$0x1]
    %v1485 = vlaneseq
    %v1486 = vshrl.u32 %v1485, 7
    %v1487 = vsub.s32 0, %v1486
    %v1488 = vrot.slane %v1483, %v1487
    %v1491 = vsel %vm266, %v1475, 0
    %v1494 = vsel %vm266, %v1476, 0
    %1496 = vmatprep.subr.mxu0 0.0
    %1497 = vmatpush1.msra.mxu0 %v1478
    %1498 = vmatprep.subr.mxu0 0.0
    %1499 = vmatpush1.msra.mxu0 %v1479
    %1500 = vmatprep.subr.mxu0 0.0
    %1501 = vmatpush1.msra.mxu0 %v1480
    %1502 = vmatprep.subr.mxu0 0.0
    %1503 = vmatpush1.msra.mxu0 %v1481
    %1504 = vmatprep.subr.mxu0 0.0
    %1505 = vmatpush1.msra.mxu0 0.0
    %1506 = vmatprep.subr.mxu0 0.0
    %1507 = vmatpush1.msra.mxu0 0.0
    %1508 = vmatprep.subr.mxu0 0.0
    %1509 = vmatpush1.msra.mxu0 0.0
    %1510 = vmatprep.subr.mxu0 0.0
    %1511 = vmatpush1.msra.mxu0 0.0
    %1512 = vmatprep.subr.mxu0 0.0
    %1513 = vmatpush1.msra.mxu0 0.0
    %1514 = vmatprep.subr.mxu0 0.0
    %1515 = vmatpush1.msra.mxu0 0.0
    %1516 = vmatprep.subr.mxu0 0.0
    %1517 = vmatpush1.msra.mxu0 0.0
    %1518 = vmatprep.subr.mxu0 0.0
    %1519 = vmatpush1.msra.mxu0 0.0
    %1520 = vmatprep.subr.mxu0 0.0
    %1521 = vmatpush1.msra.mxu0 0.0
    %1522 = vmatprep.subr.mxu0 0.0
    %1523 = vmatpush1.msra.mxu0 0.0
    %1524 = vmatprep.subr.mxu0 0.0
    %1525 = vmatpush1.msra.mxu0 0.0
    %1526 = vmatprep.subr.mxu0 0.0
    %1527 = vmatpush1.msra.mxu0 0.0
    %1528 = vmatprep.subr.mxu0 0.0
    %1529 = vmatpush1.msra.mxu0 0.0
    %1530 = vmatprep.subr.mxu0 0.0
    %1531 = vmatpush1.msra.mxu0 0.0
    %1532 = vmatprep.subr.mxu0 0.0
    %1533 = vmatpush1.msra.mxu0 0.0
    %1534 = vmatprep.subr.mxu0 0.0
    %1535 = vmatpush1.msra.mxu0 0.0
    %1536 = vmatprep.subr.mxu0 0.0
    %1537 = vmatpush1.msra.mxu0 0.0
    %1538 = vmatprep.subr.mxu0 0.0
    %1539 = vmatpush1.msra.mxu0 0.0
    %1540 = vmatprep.subr.mxu0 0.0
    %1541 = vmatpush1.msra.mxu0 0.0
    %1542 = vmatprep.subr.mxu0 0.0
    %1543 = vmatpush1.msra.mxu0 0.0
    %1544 = vmatprep.subr.mxu0 0.0
    %1545 = vmatpush1.msra.mxu0 0.0
    %1546 = vmatprep.subr.mxu0 0.0
    %1547 = vmatpush1.msra.mxu0 0.0
    %1548 = vmatprep.subr.mxu0 0.0
    %1549 = vmatpush1.msra.mxu0 0.0
    %1550 = vmatprep.subr.mxu0 0.0
    %1551 = vmatpush1.msra.mxu0 0.0
    %1552 = vmatprep.subr.mxu0 0.0
    %1553 = vmatpush1.msra.mxu0 0.0
    %1554 = vmatprep.subr.mxu0 0.0
    %1555 = vmatpush1.msra.mxu0 0.0
    %1556 = vmatprep.subr.mxu0 0.0
    %1557 = vmatpush1.msra.mxu0 0.0
    %1558 = vmatprep.subr.mxu0 0.0
    %1559 = vmatpush1.msra.mxu0 0.0
    %1560 = vmatprep.mubr.f32.mxu0 0.0
    %1561 = vmatmul.mubr.f32.gmra.mrb[0].mxu0 %v1491
    %v1562 = vpop.f32.mrb[0].mxu0
    %v1563 = vadd.f32 %v1488, %v1562
    %v1564 = vpop.f32.mrb[0].mxu0
    %1565 = vmatprep.mubr.f32.mxu0 0.0
    %1566 = vmatmul.mubr.f32.gmra.mrb[0].mxu0 %v1494
    %v1567 = vpop.f32.mrb[0].mxu0
    %v1568 = vadd.f32 %v1488, %v1567
    %v1569 = vpop.f32.mrb[0].mxu0
    %1570 = vdwg.mxu0
    %1572 = vrot.lane.b32.xlu0 %v1563, 96
    %v1573 = vpop.permute.xlu0 %1572
    %v1574 = vsel %vm419, %v1563, 0
    %v1576 = vsel %vm419, %v1573, 0
    %1578 = vmatprep.subr.mxu0 0.0
    %1579 = vmatpush1.xpose.msra.mxu0 %v1576
    %1580 = vmatprep.subr.mxu0 0.0
    %1581 = vmatpush1.xpose.msra.mxu0 0.0
    %1582 = vmatprep.subr.mxu0 0.0
    %1583 = vmatpush1.xpose.msra.mxu0 0.0
    %1584 = vmatprep.subr.mxu0 0.0
    %1585 = vmatpush1.xpose.msra.mxu0 0.0
    %1586 = vmatprep.subr.mxu0 0.0
    %1587 = vmatpush1.xpose.msra.mxu0 0.0
    %1588 = vmatprep.subr.mxu0 0.0
    %1589 = vmatpush1.xpose.msra.mxu0 0.0
    %1590 = vmatprep.subr.mxu0 0.0
    %1591 = vmatpush1.xpose.msra.mxu0 0.0
    %1592 = vmatprep.subr.mxu0 0.0
    %1593 = vmatpush1.xpose.msra.mxu0 0.0
    %1594 = vmatprep.subr.mxu0 0.0
    %1595 = vmatpush1.xpose.msra.mxu0 0.0
    %1596 = vmatprep.subr.mxu0 0.0
    %1597 = vmatpush1.xpose.msra.mxu0 0.0
    %1598 = vmatprep.subr.mxu0 0.0
    %1599 = vmatpush1.xpose.msra.mxu0 0.0
    %1600 = vmatprep.subr.mxu0 0.0
    %1601 = vmatpush1.xpose.msra.mxu0 0.0
    %1602 = vmatprep.subr.mxu0 0.0
    %1603 = vmatpush1.xpose.msra.mxu0 0.0
    %1604 = vmatprep.subr.mxu0 0.0
    %1605 = vmatpush1.xpose.msra.mxu0 0.0
    %1606 = vmatprep.subr.mxu0 0.0
    %1607 = vmatpush1.xpose.msra.mxu0 0.0
    %1608 = vmatprep.subr.mxu0 0.0
    %1609 = vmatpush1.xpose.msra.mxu0 0.0
    %1610 = vmatprep.subr.mxu0 0.0
    %1611 = vmatpush1.xpose.msra.mxu0 0.0
    %1612 = vmatprep.subr.mxu0 0.0
    %1613 = vmatpush1.xpose.msra.mxu0 0.0
    %1614 = vmatprep.subr.mxu0 0.0
    %1615 = vmatpush1.xpose.msra.mxu0 0.0
    %1616 = vmatprep.subr.mxu0 0.0
    %1617 = vmatpush1.xpose.msra.mxu0 0.0
    %1618 = vmatprep.subr.mxu0 0.0
    %1619 = vmatpush1.xpose.msra.mxu0 0.0
    %1620 = vmatprep.subr.mxu0 0.0
    %1621 = vmatpush1.xpose.msra.mxu0 0.0
    %1622 = vmatprep.subr.mxu0 0.0
    %1623 = vmatpush1.xpose.msra.mxu0 0.0
    %1624 = vmatprep.subr.mxu0 0.0
    %1625 = vmatpush1.xpose.msra.mxu0 0.0
    %1626 = vmatprep.subr.mxu0 0.0
    %1627 = vmatpush1.xpose.msra.mxu0 0.0
    %1628 = vmatprep.subr.mxu0 0.0
    %1629 = vmatpush1.xpose.msra.mxu0 0.0
    %1630 = vmatprep.subr.mxu0 0.0
    %1631 = vmatpush1.xpose.msra.mxu0 0.0
    %1632 = vmatprep.subr.mxu0 0.0
    %1633 = vmatpush1.xpose.msra.mxu0 0.0
    %1634 = vmatprep.subr.mxu0 0.0
    %1635 = vmatpush1.xpose.msra.mxu0 0.0
    %1636 = vmatprep.subr.mxu0 0.0
    %1637 = vmatpush1.xpose.msra.mxu0 0.0
    %1638 = vmatprep.subr.mxu0 0.0
    %1639 = vmatpush1.xpose.msra.mxu0 0.0
    %1640 = vmatprep.subr.mxu0 0.0
    %1641 = vmatpush1.xpose.msra.mxu0 0.0
    %1642 = vmatprep.mubr.f32.mxu0 0.0
    %1643 = vmatmul.mubr.f32.gmra.mrb[0].mxu0 %v1574
    %v1644 = vpop.f32.mrb[0].mxu0
    %v1645 = vadd.f32 %v409, %v1644
    %v1646 = vpop.f32.mrb[0].mxu0
    %1647 = vdwg.mxu0
    %1649 = vrot.lane.b32.xlu0 %v1568, 96
    %v1650 = vpop.permute.xlu0 %1649
    %v1651 = vsel %vm419, %v1568, 0
    %v1653 = vsel %vm419, %v1650, 0
    %1655 = vmatprep.subr.mxu0 0.0
    %1656 = vmatpush1.xpose.msra.mxu0 %v1653
    %1657 = vmatprep.subr.mxu0 0.0
    %1658 = vmatpush1.xpose.msra.mxu0 0.0
    %1659 = vmatprep.subr.mxu0 0.0
    %1660 = vmatpush1.xpose.msra.mxu0 0.0
    %1661 = vmatprep.subr.mxu0 0.0
    %1662 = vmatpush1.xpose.msra.mxu0 0.0
    %1663 = vmatprep.subr.mxu0 0.0
    %1664 = vmatpush1.xpose.msra.mxu0 0.0
    %1665 = vmatprep.subr.mxu0 0.0
    %1666 = vmatpush1.xpose.msra.mxu0 0.0
    %1667 = vmatprep.subr.mxu0 0.0
    %1668 = vmatpush1.xpose.msra.mxu0 0.0
    %1669 = vmatprep.subr.mxu0 0.0
    %1670 = vmatpush1.xpose.msra.mxu0 0.0
    %1671 = vmatprep.subr.mxu0 0.0
    %1672 = vmatpush1.xpose.msra.mxu0 0.0
    %1673 = vmatprep.subr.mxu0 0.0
    %1674 = vmatpush1.xpose.msra.mxu0 0.0
    %1675 = vmatprep.subr.mxu0 0.0
    %1676 = vmatpush1.xpose.msra.mxu0 0.0
    %1677 = vmatprep.subr.mxu0 0.0
    %1678 = vmatpush1.xpose.msra.mxu0 0.0
    %1679 = vmatprep.subr.mxu0 0.0
    %1680 = vmatpush1.xpose.msra.mxu0 0.0
    %1681 = vmatprep.subr.mxu0 0.0
    %1682 = vmatpush1.xpose.msra.mxu0 0.0
    %1683 = vmatprep.subr.mxu0 0.0
    %1684 = vmatpush1.xpose.msra.mxu0 0.0
    %1685 = vmatprep.subr.mxu0 0.0
    %1686 = vmatpush1.xpose.msra.mxu0 0.0
    %1687 = vmatprep.subr.mxu0 0.0
    %1688 = vmatpush1.xpose.msra.mxu0 0.0
    %1689 = vmatprep.subr.mxu0 0.0
    %1690 = vmatpush1.xpose.msra.mxu0 0.0
    %1691 = vmatprep.subr.mxu0 0.0
    %1692 = vmatpush1.xpose.msra.mxu0 0.0
    %1693 = vmatprep.subr.mxu0 0.0
    %1694 = vmatpush1.xpose.msra.mxu0 0.0
    %1695 = vmatprep.subr.mxu0 0.0
    %1696 = vmatpush1.xpose.msra.mxu0 0.0
    %1697 = vmatprep.subr.mxu0 0.0
    %1698 = vmatpush1.xpose.msra.mxu0 0.0
    %1699 = vmatprep.subr.mxu0 0.0
    %1700 = vmatpush1.xpose.msra.mxu0 0.0
    %1701 = vmatprep.subr.mxu0 0.0
    %1702 = vmatpush1.xpose.msra.mxu0 0.0
    %1703 = vmatprep.subr.mxu0 0.0
    %1704 = vmatpush1.xpose.msra.mxu0 0.0
    %1705 = vmatprep.subr.mxu0 0.0
    %1706 = vmatpush1.xpose.msra.mxu0 0.0
    %1707 = vmatprep.subr.mxu0 0.0
    %1708 = vmatpush1.xpose.msra.mxu0 0.0
    %1709 = vmatprep.subr.mxu0 0.0
    %1710 = vmatpush1.xpose.msra.mxu0 0.0
    %1711 = vmatprep.subr.mxu0 0.0
    %1712 = vmatpush1.xpose.msra.mxu0 0.0
    %1713 = vmatprep.subr.mxu0 0.0
    %1714 = vmatpush1.xpose.msra.mxu0 0.0
    %1715 = vmatprep.subr.mxu0 0.0
    %1716 = vmatpush1.xpose.msra.mxu0 0.0
    %1717 = vmatprep.subr.mxu0 0.0
    %1718 = vmatpush1.xpose.msra.mxu0 0.0
    %1719 = vmatprep.mubr.f32.mxu0 0.0
    %1720 = vmatmul.mubr.f32.gmra.mrb[0].mxu0 %v1651
    %v1721 = vpop.f32.mrb[0].mxu0
    %v1722 = vadd.f32 %v413, %v1721
    %v1723 = vpop.f32.mrb[0].mxu0
    %1724 = vdwg.mxu0
    %v1725 = vsel %vm571, %v1645, -inf
    %1726 = vmax.xlane.f32.xlu0 %v1725
    %v1727 = vpop.xlane.xlu0 %1726
    %v1728 = vsel %vm571, %v1722, -inf
    %1729 = vmax.xlane.f32.xlu0 %v1728
    %v1730 = vpop.xlane.xlu0 %1729
    %v1731 = vsub.f32 %v1645, %v1727
    %v1732 = vsub.f32 %v1722, %v1730
    %v1733 = vmul.f32 %v1731, 1.442695
    %v1734 = vpow.pop %v1733
    %v1735 = vmul.f32 %v1732, 1.442695
    %v1736 = vpow.pop %v1735
    %v1737 = vsel %vm571, %v1734, 0.0
    %1738 = vadd.xlane.f32.xlu0 %v1737
    %v1739 = vpop.xlane.xlu0 %1738
    %v1740 = vsel %vm571, %v1736, 0.0
    %1741 = vadd.xlane.f32.xlu0 %v1740
    %v1742 = vpop.xlane.xlu0 %1741
    %v1743 = vrcp.pop %v1739
    %v1744 = vrcp.pop %v1742
    %v1745 = vmul.f32 %v1734, %v1743
    %v1746 = vmul.f32 %v1736, %v1744
    %1747 = vrot.lane.b32.xlu0 %v1563, 64
    %v1748 = vpop.permute.xlu0 %1747
    %v1751 = vsel %vm571, %v1745, 0
    %1753 = vmatprep.subr.mxu0 0.0
    %1754 = vmatpush1.msra.mxu0 %v1748
    %1755 = vmatprep.subr.mxu0 0.0
    %1756 = vmatpush1.msra.mxu0 0.0
    %1757 = vmatprep.subr.mxu0 0.0
    %1758 = vmatpush1.msra.mxu0 0.0
    %1759 = vmatprep.subr.mxu0 0.0
    %1760 = vmatpush1.msra.mxu0 0.0
    %1761 = vmatprep.subr.mxu0 0.0
    %1762 = vmatpush1.msra.mxu0 0.0
    %1763 = vmatprep.subr.mxu0 0.0
    %1764 = vmatpush1.msra.mxu0 0.0
    %1765 = vmatprep.subr.mxu0 0.0
    %1766 = vmatpush1.msra.mxu0 0.0
    %1767 = vmatprep.subr.mxu0 0.0
    %1768 = vmatpush1.msra.mxu0 0.0
    %1769 = vmatprep.subr.mxu0 0.0
    %1770 = vmatpush1.msra.mxu0 0.0
    %1771 = vmatprep.subr.mxu0 0.0
    %1772 = vmatpush1.msra.mxu0 0.0
    %1773 = vmatprep.subr.mxu0 0.0
    %1774 = vmatpush1.msra.mxu0 0.0
    %1775 = vmatprep.subr.mxu0 0.0
    %1776 = vmatpush1.msra.mxu0 0.0
    %1777 = vmatprep.subr.mxu0 0.0
    %1778 = vmatpush1.msra.mxu0 0.0
    %1779 = vmatprep.subr.mxu0 0.0
    %1780 = vmatpush1.msra.mxu0 0.0
    %1781 = vmatprep.subr.mxu0 0.0
    %1782 = vmatpush1.msra.mxu0 0.0
    %1783 = vmatprep.subr.mxu0 0.0
    %1784 = vmatpush1.msra.mxu0 0.0
    %1785 = vmatprep.subr.mxu0 0.0
    %1786 = vmatpush1.msra.mxu0 0.0
    %1787 = vmatprep.subr.mxu0 0.0
    %1788 = vmatpush1.msra.mxu0 0.0
    %1789 = vmatprep.subr.mxu0 0.0
    %1790 = vmatpush1.msra.mxu0 0.0
    %1791 = vmatprep.subr.mxu0 0.0
    %1792 = vmatpush1.msra.mxu0 0.0
    %1793 = vmatprep.subr.mxu0 0.0
    %1794 = vmatpush1.msra.mxu0 0.0
    %1795 = vmatprep.subr.mxu0 0.0
    %1796 = vmatpush1.msra.mxu0 0.0
    %1797 = vmatprep.subr.mxu0 0.0
    %1798 = vmatpush1.msra.mxu0 0.0
    %1799 = vmatprep.subr.mxu0 0.0
    %1800 = vmatpush1.msra.mxu0 0.0
    %1801 = vmatprep.subr.mxu0 0.0
    %1802 = vmatpush1.msra.mxu0 0.0
    %1803 = vmatprep.subr.mxu0 0.0
    %1804 = vmatpush1.msra.mxu0 0.0
    %1805 = vmatprep.subr.mxu0 0.0
    %1806 = vmatpush1.msra.mxu0 0.0
    %1807 = vmatprep.subr.mxu0 0.0
    %1808 = vmatpush1.msra.mxu0 0.0
    %1809 = vmatprep.subr.mxu0 0.0
    %1810 = vmatpush1.msra.mxu0 0.0
    %1811 = vmatprep.subr.mxu0 0.0
    %1812 = vmatpush1.msra.mxu0 0.0
    %1813 = vmatprep.subr.mxu0 0.0
    %1814 = vmatpush1.msra.mxu0 0.0
    %1815 = vmatprep.subr.mxu0 0.0
    %1816 = vmatpush1.msra.mxu0 0.0
    %1817 = vmatprep.mubr.f32.mxu0 0.0
    %1818 = vmatmul.mubr.f32.gmra.mrb[0].mxu0 %v1751
    %v1819 = vpop.f32.mrb[0].mxu0
    %v1820 = vadd.f32 0.0, %v1819
    %v1821 = vpop.f32.mrb[0].mxu0
    %1822 = vdwg.mxu0
    %1823 = vrot.lane.b32.xlu0 %v1568, 64
    %v1824 = vpop.permute.xlu0 %1823
    %v1827 = vsel %vm571, %v1746, 0
    %1829 = vmatprep.subr.mxu0 0.0
    %1830 = vmatpush1.msra.mxu0 %v1824
    %1831 = vmatprep.subr.mxu0 0.0
    %1832 = vmatpush1.msra.mxu0 0.0
    %1833 = vmatprep.subr.mxu0 0.0
    %1834 = vmatpush1.msra.mxu0 0.0
    %1835 = vmatprep.subr.mxu0 0.0
    %1836 = vmatpush1.msra.mxu0 0.0
    %1837 = vmatprep.subr.mxu0 0.0
    %1838 = vmatpush1.msra.mxu0 0.0
    %1839 = vmatprep.subr.mxu0 0.0
    %1840 = vmatpush1.msra.mxu0 0.0
    %1841 = vmatprep.subr.mxu0 0.0
    %1842 = vmatpush1.msra.mxu0 0.0
    %1843 = vmatprep.subr.mxu0 0.0
    %1844 = vmatpush1.msra.mxu0 0.0
    %1845 = vmatprep.subr.mxu0 0.0
    %1846 = vmatpush1.msra.mxu0 0.0
    %1847 = vmatprep.subr.mxu0 0.0
    %1848 = vmatpush1.msra.mxu0 0.0
    %1849 = vmatprep.subr.mxu0 0.0
    %1850 = vmatpush1.msra.mxu0 0.0
    %1851 = vmatprep.subr.mxu0 0.0
    %1852 = vmatpush1.msra.mxu0 0.0
    %1853 = vmatprep.subr.mxu0 0.0
    %1854 = vmatpush1.msra.mxu0 0.0
    %1855 = vmatprep.subr.mxu0 0.0
    %1856 = vmatpush1.msra.mxu0 0.0
    %1857 = vmatprep.subr.mxu0 0.0
    %1858 = vmatpush1.msra.mxu0 0.0
    %1859 = vmatprep.subr.mxu0 0.0
    %1860 = vmatpush1.msra.mxu0 0.0
    %1861 = vmatprep.subr.mxu0 0.0
    %1862 = vmatpush1.msra.mxu0 0.0
    %1863 = vmatprep.subr.mxu0 0.0
    %1864 = vmatpush1.msra.mxu0 0.0
    %1865 = vmatprep.subr.mxu0 0.0
    %1866 = vmatpush1.msra.mxu0 0.0
    %1867 = vmatprep.subr.mxu0 0.0
    %1868 = vmatpush1.msra.mxu0 0.0
    %1869 = vmatprep.subr.mxu0 0.0
    %1870 = vmatpush1.msra.mxu0 0.0
    %1871 = vmatprep.subr.mxu0 0.0
    %1872 = vmatpush1.msra.mxu0 0.0
    %1873 = vmatprep.subr.mxu0 0.0
    %1874 = vmatpush1.msra.mxu0 0.0
    %1875 = vmatprep.subr.mxu0 0.0
    %1876 = vmatpush1.msra.mxu0 0.0
    %1877 = vmatprep.subr.mxu0 0.0
    %1878 = vmatpush1.msra.mxu0 0.0
    %1879 = vmatprep.subr.mxu0 0.0
    %1880 = vmatpush1.msra.mxu0 0.0
    %1881 = vmatprep.subr.mxu0 0.0
    %1882 = vmatpush1.msra.mxu0 0.0
    %1883 = vmatprep.subr.mxu0 0.0
    %1884 = vmatpush1.msra.mxu0 0.0
    %1885 = vmatprep.subr.mxu0 0.0
    %1886 = vmatpush1.msra.mxu0 0.0
    %1887 = vmatprep.subr.mxu0 0.0
    %1888 = vmatpush1.msra.mxu0 0.0
    %1889 = vmatprep.subr.mxu0 0.0
    %1890 = vmatpush1.msra.mxu0 0.0
    %1891 = vmatprep.subr.mxu0 0.0
    %1892 = vmatpush1.msra.mxu0 0.0
    %1893 = vmatprep.mubr.f32.mxu0 0.0
    %1894 = vmatmul.mubr.f32.gmra.mrb[0].mxu0 %v1827
    %v1895 = vpop.f32.mrb[0].mxu0
    %v1896 = vadd.f32 0.0, %v1895
    %v1897 = vpop.f32.mrb[0].mxu0
    %1898 = vdwg.mxu0
    %1899 = vrot.lane.b32.xlu0 %v1563, 112
    %v1900 = vpop.permute.xlu0 %1899
    %1901 = vrot.lane.b32.xlu0 %v1563, 80
    %v1902 = vpop.permute.xlu0 %1901
    %v1903 = vsel %vm419, %v1900, 0
    %v1905 = vsel %vm419, %v1902, 0
    %1907 = vmatprep.subr.mxu0 0.0
    %1908 = vmatpush1.xpose.msra.mxu0 %v1905
    %1909 = vmatprep.subr.mxu0 0.0
    %1910 = vmatpush1.xpose.msra.mxu0 0.0
    %1911 = vmatprep.subr.mxu0 0.0
    %1912 = vmatpush1.xpose.msra.mxu0 0.0
    %1913 = vmatprep.subr.mxu0 0.0
    %1914 = vmatpush1.xpose.msra.mxu0 0.0
    %1915 = vmatprep.subr.mxu0 0.0
    %1916 = vmatpush1.xpose.msra.mxu0 0.0
    %1917 = vmatprep.subr.mxu0 0.0
    %1918 = vmatpush1.xpose.msra.mxu0 0.0
    %1919 = vmatprep.subr.mxu0 0.0
    %1920 = vmatpush1.xpose.msra.mxu0 0.0
    %1921 = vmatprep.subr.mxu0 0.0
    %1922 = vmatpush1.xpose.msra.mxu0 0.0
    %1923 = vmatprep.subr.mxu0 0.0
    %1924 = vmatpush1.xpose.msra.mxu0 0.0
    %1925 = vmatprep.subr.mxu0 0.0
    %1926 = vmatpush1.xpose.msra.mxu0 0.0
    %1927 = vmatprep.subr.mxu0 0.0
    %1928 = vmatpush1.xpose.msra.mxu0 0.0
    %1929 = vmatprep.subr.mxu0 0.0
    %1930 = vmatpush1.xpose.msra.mxu0 0.0
    %1931 = vmatprep.subr.mxu0 0.0
    %1932 = vmatpush1.xpose.msra.mxu0 0.0
    %1933 = vmatprep.subr.mxu0 0.0
    %1934 = vmatpush1.xpose.msra.mxu0 0.0
    %1935 = vmatprep.subr.mxu0 0.0
    %1936 = vmatpush1.xpose.msra.mxu0 0.0
    %1937 = vmatprep.subr.mxu0 0.0
    %1938 = vmatpush1.xpose.msra.mxu0 0.0
    %1939 = vmatprep.subr.mxu0 0.0
    %1940 = vmatpush1.xpose.msra.mxu0 0.0
    %1941 = vmatprep.subr.mxu0 0.0
    %1942 = vmatpush1.xpose.msra.mxu0 0.0
    %1943 = vmatprep.subr.mxu0 0.0
    %1944 = vmatpush1.xpose.msra.mxu0 0.0
    %1945 = vmatprep.subr.mxu0 0.0
    %1946 = vmatpush1.xpose.msra.mxu0 0.0
    %1947 = vmatprep.subr.mxu0 0.0
    %1948 = vmatpush1.xpose.msra.mxu0 0.0
    %1949 = vmatprep.subr.mxu0 0.0
    %1950 = vmatpush1.xpose.msra.mxu0 0.0
    %1951 = vmatprep.subr.mxu0 0.0
    %1952 = vmatpush1.xpose.msra.mxu0 0.0
    %1953 = vmatprep.subr.mxu0 0.0
    %1954 = vmatpush1.xpose.msra.mxu0 0.0
    %1955 = vmatprep.subr.mxu0 0.0
    %1956 = vmatpush1.xpose.msra.mxu0 0.0
    %1957 = vmatprep.subr.mxu0 0.0
    %1958 = vmatpush1.xpose.msra.mxu0 0.0
    %1959 = vmatprep.subr.mxu0 0.0
    %1960 = vmatpush1.xpose.msra.mxu0 0.0
    %1961 = vmatprep.subr.mxu0 0.0
    %1962 = vmatpush1.xpose.msra.mxu0 0.0
    %1963 = vmatprep.subr.mxu0 0.0
    %1964 = vmatpush1.xpose.msra.mxu0 0.0
    %1965 = vmatprep.subr.mxu0 0.0
    %1966 = vmatpush1.xpose.msra.mxu0 0.0
    %1967 = vmatprep.subr.mxu0 0.0
    %1968 = vmatpush1.xpose.msra.mxu0 0.0
    %1969 = vmatprep.subr.mxu0 0.0
    %1970 = vmatpush1.xpose.msra.mxu0 0.0
    %1971 = vmatprep.mubr.f32.mxu0 0.0
    %1972 = vmatmul.mubr.f32.gmra.mrb[0].mxu0 %v1903
    %v1973 = vpop.f32.mrb[0].mxu0
    %v1974 = vadd.f32 %v409, %v1973
    %v1975 = vpop.f32.mrb[0].mxu0
    %1976 = vdwg.mxu0
    %1977 = vrot.lane.b32.xlu0 %v1568, 112
    %v1978 = vpop.permute.xlu0 %1977
    %1979 = vrot.lane.b32.xlu0 %v1568, 80
    %v1980 = vpop.permute.xlu0 %1979
    %v1981 = vsel %vm419, %v1978, 0
    %v1983 = vsel %vm419, %v1980, 0
    %1985 = vmatprep.subr.mxu0 0.0
    %1986 = vmatpush1.xpose.msra.mxu0 %v1983
    %1987 = vmatprep.subr.mxu0 0.0
    %1988 = vmatpush1.xpose.msra.mxu0 0.0
    %1989 = vmatprep.subr.mxu0 0.0
    %1990 = vmatpush1.xpose.msra.mxu0 0.0
    %1991 = vmatprep.subr.mxu0 0.0
    %1992 = vmatpush1.xpose.msra.mxu0 0.0
    %1993 = vmatprep.subr.mxu0 0.0
    %1994 = vmatpush1.xpose.msra.mxu0 0.0
    %1995 = vmatprep.subr.mxu0 0.0
    %1996 = vmatpush1.xpose.msra.mxu0 0.0
    %1997 = vmatprep.subr.mxu0 0.0
    %1998 = vmatpush1.xpose.msra.mxu0 0.0
    %1999 = vmatprep.subr.mxu0 0.0
    %2000 = vmatpush1.xpose.msra.mxu0 0.0
    %2001 = vmatprep.subr.mxu0 0.0
    %2002 = vmatpush1.xpose.msra.mxu0 0.0
    %2003 = vmatprep.subr.mxu0 0.0
    %2004 = vmatpush1.xpose.msra.mxu0 0.0
    %2005 = vmatprep.subr.mxu0 0.0
    %2006 = vmatpush1.xpose.msra.mxu0 0.0
    %2007 = vmatprep.subr.mxu0 0.0
    %2008 = vmatpush1.xpose.msra.mxu0 0.0
    %2009 = vmatprep.subr.mxu0 0.0
    %2010 = vmatpush1.xpose.msra.mxu0 0.0
    %2011 = vmatprep.subr.mxu0 0.0
    %2012 = vmatpush1.xpose.msra.mxu0 0.0
    %2013 = vmatprep.subr.mxu0 0.0
    %2014 = vmatpush1.xpose.msra.mxu0 0.0
    %2015 = vmatprep.subr.mxu0 0.0
    %2016 = vmatpush1.xpose.msra.mxu0 0.0
    %2017 = vmatprep.subr.mxu0 0.0
    %2018 = vmatpush1.xpose.msra.mxu0 0.0
    %2019 = vmatprep.subr.mxu0 0.0
    %2020 = vmatpush1.xpose.msra.mxu0 0.0
    %2021 = vmatprep.subr.mxu0 0.0
    %2022 = vmatpush1.xpose.msra.mxu0 0.0
    %2023 = vmatprep.subr.mxu0 0.0
    %2024 = vmatpush1.xpose.msra.mxu0 0.0
    %2025 = vmatprep.subr.mxu0 0.0
    %2026 = vmatpush1.xpose.msra.mxu0 0.0
    %2027 = vmatprep.subr.mxu0 0.0
    %2028 = vmatpush1.xpose.msra.mxu0 0.0
    %2029 = vmatprep.subr.mxu0 0.0
    %2030 = vmatpush1.xpose.msra.mxu0 0.0
    %2031 = vmatprep.subr.mxu0 0.0
    %2032 = vmatpush1.xpose.msra.mxu0 0.0
    %2033 = vmatprep.subr.mxu0 0.0
    %2034 = vmatpush1.xpose.msra.mxu0 0.0
    %2035 = vmatprep.subr.mxu0 0.0
    %2036 = vmatpush1.xpose.msra.mxu0 0.0
    %2037 = vmatprep.subr.mxu0 0.0
    %2038 = vmatpush1.xpose.msra.mxu0 0.0
    %2039 = vmatprep.subr.mxu0 0.0
    %2040 = vmatpush1.xpose.msra.mxu0 0.0
    %2041 = vmatprep.subr.mxu0 0.0
    %2042 = vmatpush1.xpose.msra.mxu0 0.0
    %2043 = vmatprep.subr.mxu0 0.0
    %2044 = vmatpush1.xpose.msra.mxu0 0.0
    %2045 = vmatprep.subr.mxu0 0.0
    %2046 = vmatpush1.xpose.msra.mxu0 0.0
    %2047 = vmatprep.subr.mxu0 0.0
    %2048 = vmatpush1.xpose.msra.mxu0 0.0
    %2049 = vmatprep.mubr.f32.mxu0 0.0
    %2050 = vmatmul.mubr.f32.gmra.mrb[0].mxu0 %v1981
    %v2051 = vpop.f32.mrb[0].mxu0
    %v2052 = vadd.f32 %v413, %v2051
    %v2053 = vpop.f32.mrb[0].mxu0
    %2054 = vdwg.mxu0
    %v2055 = vsel %vm571, %v1974, -inf
    %2056 = vmax.xlane.f32.xlu0 %v2055
    %v2057 = vpop.xlane.xlu0 %2056
    %v2058 = vsel %vm571, %v2052, -inf
    %2059 = vmax.xlane.f32.xlu0 %v2058
    %v2060 = vpop.xlane.xlu0 %2059
    %v2061 = vsub.f32 %v1974, %v2057
    %v2062 = vsub.f32 %v2052, %v2060
    %v2063 = vmul.f32 %v2061, 1.442695
    %v2064 = vpow.pop %v2063
    %v2065 = vmul.f32 %v2062, 1.442695
    %v2066 = vpow.pop %v2065
    %v2067 = vsel %vm571, %v2064, 0.0
    %2068 = vadd.xlane.f32.xlu0 %v2067
    %v2069 = vpop.xlane.xlu0 %2068
    %v2070 = vsel %vm571, %v2066, 0.0
    %2071 = vadd.xlane.f32.xlu0 %v2070
    %v2072 = vpop.xlane.xlu0 %2071
    %v2073 = vrcp.pop %v2069
    %v2074 = vrcp.pop %v2072
    %v2075 = vmul.f32 %v2064, %v2073
    %v2076 = vmul.f32 %v2066, %v2074
    %2077 = vrot.lane.b32.xlu0 %v1563, 48
    %v2078 = vpop.permute.xlu0 %2077
    %v2081 = vsel %vm571, %v2075, 0
    %2083 = vmatprep.subr.mxu0 0.0
    %2084 = vmatpush1.msra.mxu0 %v2078
    %2085 = vmatprep.subr.mxu0 0.0
    %2086 = vmatpush1.msra.mxu0 0.0
    %2087 = vmatprep.subr.mxu0 0.0
    %2088 = vmatpush1.msra.mxu0 0.0
    %2089 = vmatprep.subr.mxu0 0.0
    %2090 = vmatpush1.msra.mxu0 0.0
    %2091 = vmatprep.subr.mxu0 0.0
    %2092 = vmatpush1.msra.mxu0 0.0
    %2093 = vmatprep.subr.mxu0 0.0
    %2094 = vmatpush1.msra.mxu0 0.0
    %2095 = vmatprep.subr.mxu0 0.0
    %2096 = vmatpush1.msra.mxu0 0.0
    %2097 = vmatprep.subr.mxu0 0.0
    %2098 = vmatpush1.msra.mxu0 0.0
    %2099 = vmatprep.subr.mxu0 0.0
    %2100 = vmatpush1.msra.mxu0 0.0
    %2101 = vmatprep.subr.mxu0 0.0
    %2102 = vmatpush1.msra.mxu0 0.0
    %2103 = vmatprep.subr.mxu0 0.0
    %2104 = vmatpush1.msra.mxu0 0.0
    %2105 = vmatprep.subr.mxu0 0.0
    %2106 = vmatpush1.msra.mxu0 0.0
    %2107 = vmatprep.subr.mxu0 0.0
    %2108 = vmatpush1.msra.mxu0 0.0
    %2109 = vmatprep.subr.mxu0 0.0
    %2110 = vmatpush1.msra.mxu0 0.0
    %2111 = vmatprep.subr.mxu0 0.0
    %2112 = vmatpush1.msra.mxu0 0.0
    %2113 = vmatprep.subr.mxu0 0.0
    %2114 = vmatpush1.msra.mxu0 0.0
    %2115 = vmatprep.subr.mxu0 0.0
    %2116 = vmatpush1.msra.mxu0 0.0
    %2117 = vmatprep.subr.mxu0 0.0
    %2118 = vmatpush1.msra.mxu0 0.0
    %2119 = vmatprep.subr.mxu0 0.0
    %2120 = vmatpush1.msra.mxu0 0.0
    %2121 = vmatprep.subr.mxu0 0.0
    %2122 = vmatpush1.msra.mxu0 0.0
    %2123 = vmatprep.subr.mxu0 0.0
    %2124 = vmatpush1.msra.mxu0 0.0
    %2125 = vmatprep.subr.mxu0 0.0
    %2126 = vmatpush1.msra.mxu0 0.0
    %2127 = vmatprep.subr.mxu0 0.0
    %2128 = vmatpush1.msra.mxu0 0.0
    %2129 = vmatprep.subr.mxu0 0.0
    %2130 = vmatpush1.msra.mxu0 0.0
    %2131 = vmatprep.subr.mxu0 0.0
    %2132 = vmatpush1.msra.mxu0 0.0
    %2133 = vmatprep.subr.mxu0 0.0
    %2134 = vmatpush1.msra.mxu0 0.0
    %2135 = vmatprep.subr.mxu0 0.0
    %2136 = vmatpush1.msra.mxu0 0.0
    %2137 = vmatprep.subr.mxu0 0.0
    %2138 = vmatpush1.msra.mxu0 0.0
    %2139 = vmatprep.subr.mxu0 0.0
    %2140 = vmatpush1.msra.mxu0 0.0
    %2141 = vmatprep.subr.mxu0 0.0
    %2142 = vmatpush1.msra.mxu0 0.0
    %2143 = vmatprep.subr.mxu0 0.0
    %2144 = vmatpush1.msra.mxu0 0.0
    %2145 = vmatprep.subr.mxu0 0.0
    %2146 = vmatpush1.msra.mxu0 0.0
    %2147 = vmatprep.mubr.f32.mxu0 0.0
    %2148 = vmatmul.mubr.f32.gmra.mrb[0].mxu0 %v2081
    %v2149 = vpop.f32.mrb[0].mxu0
    %v2150 = vadd.f32 0.0, %v2149
    %v2151 = vpop.f32.mrb[0].mxu0
    %2152 = vdwg.mxu0
    %2153 = vrot.lane.b32.xlu0 %v1568, 48
    %v2154 = vpop.permute.xlu0 %2153
    %v2157 = vsel %vm571, %v2076, 0
    %2159 = vmatprep.subr.mxu0 0.0
    %2160 = vmatpush1.msra.mxu0 %v2154
    %2161 = vmatprep.subr.mxu0 0.0
    %2162 = vmatpush1.msra.mxu0 0.0
    %2163 = vmatprep.subr.mxu0 0.0
    %2164 = vmatpush1.msra.mxu0 0.0
    %2165 = vmatprep.subr.mxu0 0.0
    %2166 = vmatpush1.msra.mxu0 0.0
    %2167 = vmatprep.subr.mxu0 0.0
    %2168 = vmatpush1.msra.mxu0 0.0
    %2169 = vmatprep.subr.mxu0 0.0
    %2170 = vmatpush1.msra.mxu0 0.0
    %2171 = vmatprep.subr.mxu0 0.0
    %2172 = vmatpush1.msra.mxu0 0.0
    %2173 = vmatprep.subr.mxu0 0.0
    %2174 = vmatpush1.msra.mxu0 0.0
    %2175 = vmatprep.subr.mxu0 0.0
    %2176 = vmatpush1.msra.mxu0 0.0
    %2177 = vmatprep.subr.mxu0 0.0
    %2178 = vmatpush1.msra.mxu0 0.0
    %2179 = vmatprep.subr.mxu0 0.0
    %2180 = vmatpush1.msra.mxu0 0.0
    %2181 = vmatprep.subr.mxu0 0.0
    %2182 = vmatpush1.msra.mxu0 0.0
    %2183 = vmatprep.subr.mxu0 0.0
    %2184 = vmatpush1.msra.mxu0 0.0
    %2185 = vmatprep.subr.mxu0 0.0
    %2186 = vmatpush1.msra.mxu0 0.0
    %2187 = vmatprep.subr.mxu0 0.0
    %2188 = vmatpush1.msra.mxu0 0.0
    %2189 = vmatprep.subr.mxu0 0.0
    %2190 = vmatpush1.msra.mxu0 0.0
    %2191 = vmatprep.subr.mxu0 0.0
    %2192 = vmatpush1.msra.mxu0 0.0
    %2193 = vmatprep.subr.mxu0 0.0
    %2194 = vmatpush1.msra.mxu0 0.0
    %2195 = vmatprep.subr.mxu0 0.0
    %2196 = vmatpush1.msra.mxu0 0.0
    %2197 = vmatprep.subr.mxu0 0.0
    %2198 = vmatpush1.msra.mxu0 0.0
    %2199 = vmatprep.subr.mxu0 0.0
    %2200 = vmatpush1.msra.mxu0 0.0
    %2201 = vmatprep.subr.mxu0 0.0
    %2202 = vmatpush1.msra.mxu0 0.0
    %2203 = vmatprep.subr.mxu0 0.0
    %2204 = vmatpush1.msra.mxu0 0.0
    %2205 = vmatprep.subr.mxu0 0.0
    %2206 = vmatpush1.msra.mxu0 0.0
    %2207 = vmatprep.subr.mxu0 0.0
    %2208 = vmatpush1.msra.mxu0 0.0
    %2209 = vmatprep.subr.mxu0 0.0
    %2210 = vmatpush1.msra.mxu0 0.0
    %2211 = vmatprep.subr.mxu0 0.0
    %2212 = vmatpush1.msra.mxu0 0.0
    %2213 = vmatprep.subr.mxu0 0.0
    %2214 = vmatpush1.msra.mxu0 0.0
    %2215 = vmatprep.subr.mxu0 0.0
    %2216 = vmatpush1.msra.mxu0 0.0
    %2217 = vmatprep.subr.mxu0 0.0
    %2218 = vmatpush1.msra.mxu0 0.0
    %2219 = vmatprep.subr.mxu0 0.0
    %2220 = vmatpush1.msra.mxu0 0.0
    %2221 = vmatprep.subr.mxu0 0.0
    %2222 = vmatpush1.msra.mxu0 0.0
    %2223 = vmatprep.mubr.f32.mxu0 0.0
    %2224 = vmatmul.mubr.f32.gmra.mrb[0].mxu0 %v2157
    %v2225 = vpop.f32.mrb[0].mxu0
    %v2226 = vadd.f32 0.0, %v2225
    %v2227 = vpop.f32.mrb[0].mxu0
    %2228 = vdwg.mxu0
    %2231 = vrot.lane.b32.xlu0 %v2150, 16
    %v2232 = vpop.permute.xlu0 %2231
    %2233 = vrot.lane.b32.xlu0 %v2226, 16
    %v2234 = vpop.permute.xlu0 %2233
    %v2237 = vsel %vm419, %v1820, %v2232
    %v2238 = vsel %vm419, %v1896, %v2234
    %s2239 = scalar_lea.vmem %s8, 32
    %v2240 = vld [vmem:[%s2239] sm:$0xff]
    %v2241 = vld [vmem:[%s2239 + $0x8] sm:$0xff]
    %v2242 = vld [vmem:[%s2239 + $0x10] sm:$0xff]
    %v2243 = vld [vmem:[%s2239 + $0x18] sm:$0xff]
    %s2244 = scalar_lea.vmem [#allocation14], 1
    %v2245 = vld [vmem:[%s2244] sm:$0x1]
    %v2247 = vlaneseq
    %v2248 = vshrl.u32 %v2247, 7
    %v2249 = vsub.s32 0, %v2248
    %v2250 = vrot.slane %v2245, %v2249
    %v2253 = vsel %vm266, %v2237, 0
    %v2256 = vsel %vm266, %v2238, 0
    %2258 = vmatprep.subr.mxu0 0.0
    %2259 = vmatpush1.msra.mxu0 %v2240
    %2260 = vmatprep.subr.mxu0 0.0
    %2261 = vmatpush1.msra.mxu0 %v2241
    %2262 = vmatprep.subr.mxu0 0.0
    %2263 = vmatpush1.msra.mxu0 %v2242
    %2264 = vmatprep.subr.mxu0 0.0
    %2265 = vmatpush1.msra.mxu0 %v2243
    %2266 = vmatprep.subr.mxu0 0.0
    %2267 = vmatpush1.msra.mxu0 0.0
    %2268 = vmatprep.subr.mxu0 0.0
    %2269 = vmatpush1.msra.mxu0 0.0
    %2270 = vmatprep.subr.mxu0 0.0
    %2271 = vmatpush1.msra.mxu0 0.0
    %2272 = vmatprep.subr.mxu0 0.0
    %2273 = vmatpush1.msra.mxu0 0.0
    %2274 = vmatprep.subr.mxu0 0.0
    %2275 = vmatpush1.msra.mxu0 0.0
    %2276 = vmatprep.subr.mxu0 0.0
    %2277 = vmatpush1.msra.mxu0 0.0
    %2278 = vmatprep.subr.mxu0 0.0
    %2279 = vmatpush1.msra.mxu0 0.0
    %2280 = vmatprep.subr.mxu0 0.0
    %2281 = vmatpush1.msra.mxu0 0.0
    %2282 = vmatprep.subr.mxu0 0.0
    %2283 = vmatpush1.msra.mxu0 0.0
    %2284 = vmatprep.subr.mxu0 0.0
    %2285 = vmatpush1.msra.mxu0 0.0
    %2286 = vmatprep.subr.mxu0 0.0
    %2287 = vmatpush1.msra.mxu0 0.0
    %2288 = vmatprep.subr.mxu0 0.0
    %2289 = vmatpush1.msra.mxu0 0.0
    %2290 = vmatprep.subr.mxu0 0.0
    %2291 = vmatpush1.msra.mxu0 0.0
    %2292 = vmatprep.subr.mxu0 0.0
    %2293 = vmatpush1.msra.mxu0 0.0
    %2294 = vmatprep.subr.mxu0 0.0
    %2295 = vmatpush1.msra.mxu0 0.0
    %2296 = vmatprep.subr.mxu0 0.0
    %2297 = vmatpush1.msra.mxu0 0.0
    %2298 = vmatprep.subr.mxu0 0.0
    %2299 = vmatpush1.msra.mxu0 0.0
    %2300 = vmatprep.subr.mxu0 0.0
    %2301 = vmatpush1.msra.mxu0 0.0
    %2302 = vmatprep.subr.mxu0 0.0
    %2303 = vmatpush1.msra.mxu0 0.0
    %2304 = vmatprep.subr.mxu0 0.0
    %2305 = vmatpush1.msra.mxu0 0.0
    %2306 = vmatprep.subr.mxu0 0.0
    %2307 = vmatpush1.msra.mxu0 0.0
    %2308 = vmatprep.subr.mxu0 0.0
    %2309 = vmatpush1.msra.mxu0 0.0
    %2310 = vmatprep.subr.mxu0 0.0
    %2311 = vmatpush1.msra.mxu0 0.0
    %2312 = vmatprep.subr.mxu0 0.0
    %2313 = vmatpush1.msra.mxu0 0.0
    %2314 = vmatprep.subr.mxu0 0.0
    %2315 = vmatpush1.msra.mxu0 0.0
    %2316 = vmatprep.subr.mxu0 0.0
    %2317 = vmatpush1.msra.mxu0 0.0
    %2318 = vmatprep.subr.mxu0 0.0
    %2319 = vmatpush1.msra.mxu0 0.0
    %2320 = vmatprep.subr.mxu0 0.0
    %2321 = vmatpush1.msra.mxu0 0.0
    %2322 = vmatprep.mubr.f32.mxu0 0.0
    %2323 = vmatmul.mubr.f32.gmra.mrb[0].mxu0 %v2253
    %v2324 = vpop.f32.mrb[0].mxu0
    %v2325 = vadd.f32 %v2250, %v2324
    %v2326 = vpop.f32.mrb[0].mxu0
    %2327 = vmatprep.mubr.f32.mxu0 0.0
    %2328 = vmatmul.mubr.f32.gmra.mrb[0].mxu0 %v2256
    %v2329 = vpop.f32.mrb[0].mxu0
    %v2330 = vadd.f32 %v2250, %v2329
    %v2331 = vpop.f32.mrb[0].mxu0
    %2332 = vdwg.mxu0
    %v2333 = vadd.f32 %v1475, %v2325
    %v2334 = vadd.f32 %v1476, %v2330
    %s2335 = scalar_lea.vmem [#allocation16], 1
    %v2336 = vld [vmem:[%s2335] sm:$0x1]
    %s2337 = scalar_lea.vmem [#allocation17], 1
    %v2338 = vld [vmem:[%s2337] sm:$0x1]
    %v2339 = vsel %vm266, %v2333, 0.0
    %2340 = vadd.xlane.f32.xlu0 %v2339
    %v2341 = vpop.xlane.xlu0 %2340
    %v2342 = vsel %vm266, %v2334, 0.0
    %2343 = vadd.xlane.f32.xlu0 %v2342
    %v2344 = vpop.xlane.xlu0 %2343
    %v2345 = vmul.f32 %v2341, %v273
    %v2346 = vmul.f32 %v2344, %v273
    %v2347 = vsub.f32 %v2333, %v2345
    %v2348 = vsub.f32 %v2334, %v2346
    %v2349 = vmul.f32 %v2347, %v2347
    %v2350 = vmul.f32 %v2348, %v2348
    %v2351 = vsel %vm266, %v2349, 0.0
    %2352 = vadd.xlane.f32.xlu0 %v2351
    %v2353 = vpop.xlane.xlu0 %2352
    %v2354 = vsel %vm266, %v2350, 0.0
    %2355 = vadd.xlane.f32.xlu0 %v2354
    %v2356 = vpop.xlane.xlu0 %2355
    %v2357 = vmul.f32 %v2353, %v273
    %v2358 = vmul.f32 %v2356, %v273
    %v2359 = vadd.f32 %v2357, 1e-12
    %v2360 = vadd.f32 %v2358, 1e-12
    %v2361 = vrsqrt.pop %v2359
    %v2362 = vrsqrt.pop %v2360
    %v2363 = vmul.f32 %v2347, %v2361
    %v2364 = vmul.f32 %v2348, %v2362
    %v2366 = vlaneseq
    %v2367 = vshrl.u32 %v2366, 7
    %v2368 = vsub.s32 0, %v2367
    %v2369 = vrot.slane %v2336, %v2368
    %v2371 = vmul.f32 %v2363, %v2369
    %v2372 = vmul.f32 %v2364, %v2369
    %v2374 = vlaneseq
    %v2375 = vshrl.u32 %v2374, 7
    %v2376 = vsub.s32 0, %v2375
    %v2377 = vrot.slane %v2338, %v2376
    %v2379 = vadd.f32 %v2371, %v2377
    %v2380 = vadd.f32 %v2372, %v2377
    %s2381 = scalar_lea.vmem %s12, 32
    %v2382 = vld [vmem:[%s2381] sm:$0xff]
    %v2383 = vld [vmem:[%s2381 + $0x8] sm:$0xff]
    %v2384 = vld [vmem:[%s2381 + $0x10] sm:$0xff]
    %v2385 = vld [vmem:[%s2381 + $0x18] sm:$0xff]
    %s2386 = scalar_lea.vmem [#allocation19], 1
    %v2387 = vld [vmem:[%s2386] sm:$0x1]
    %v2389 = vlaneseq
    %v2390 = vshrl.u32 %v2389, 7
    %v2391 = vsub.s32 0, %v2390
    %v2392 = vrot.slane %v2387, %v2391
    %v2395 = vsel %vm266, %v2379, 0
    %v2398 = vsel %vm266, %v2380, 0
    %2400 = vmatprep.subr.mxu0 0.0
    %2401 = vmatpush1.msra.mxu0 %v2382
    %2402 = vmatprep.subr.mxu0 0.0
    %2403 = vmatpush1.msra.mxu0 %v2383
    %2404 = vmatprep.subr.mxu0 0.0
    %2405 = vmatpush1.msra.mxu0 %v2384
    %2406 = vmatprep.subr.mxu0 0.0
    %2407 = vmatpush1.msra.mxu0 %v2385
    %2408 = vmatprep.subr.mxu0 0.0
    %2409 = vmatpush1.msra.mxu0 0.0
    %2410 = vmatprep.subr.mxu0 0.0
    %2411 = vmatpush1.msra.mxu0 0.0
    %2412 = vmatprep.subr.mxu0 0.0
    %2413 = vmatpush1.msra.mxu0 0.0
    %2414 = vmatprep.subr.mxu0 0.0
    %2415 = vmatpush1.msra.mxu0 0.0
    %2416 = vmatprep.subr.mxu0 0.0
    %2417 = vmatpush1.msra.mxu0 0.0
    %2418 = vmatprep.subr.mxu0 0.0
    %2419 = vmatpush1.msra.mxu0 0.0
    %2420 = vmatprep.subr.mxu0 0.0
    %2421 = vmatpush1.msra.mxu0 0.0
    %2422 = vmatprep.subr.mxu0 0.0
    %2423 = vmatpush1.msra.mxu0 0.0
    %2424 = vmatprep.subr.mxu0 0.0
    %2425 = vmatpush1.msra.mxu0 0.0
    %2426 = vmatprep.subr.mxu0 0.0
    %2427 = vmatpush1.msra.mxu0 0.0
    %2428 = vmatprep.subr.mxu0 0.0
    %2429 = vmatpush1.msra.mxu0 0.0
    %2430 = vmatprep.subr.mxu0 0.0
    %2431 = vmatpush1.msra.mxu0 0.0
    %2432 = vmatprep.subr.mxu0 0.0
    %2433 = vmatpush1.msra.mxu0 0.0
    %2434 = vmatprep.subr.mxu0 0.0
    %2435 = vmatpush1.msra.mxu0 0.0
    %2436 = vmatprep.subr.mxu0 0.0
    %2437 = vmatpush1.msra.mxu0 0.0
    %2438 = vmatprep.subr.mxu0 0.0
    %2439 = vmatpush1.msra.mxu0 0.0
    %2440 = vmatprep.subr.mxu0 0.0
    %2441 = vmatpush1.msra.mxu0 0.0
    %2442 = vmatprep.subr.mxu0 0.0
    %2443 = vmatpush1.msra.mxu0 0.0
    %2444 = vmatprep.subr.mxu0 0.0
    %2445 = vmatpush1.msra.mxu0 0.0
    %2446 = vmatprep.subr.mxu0 0.0
    %2447 = vmatpush1.msra.mxu0 0.0
    %2448 = vmatprep.subr.mxu0 0.0
    %2449 = vmatpush1.msra.mxu0 0.0
    %2450 = vmatprep.subr.mxu0 0.0
    %2451 = vmatpush1.msra.mxu0 0.0
    %2452 = vmatprep.subr.mxu0 0.0
    %2453 = vmatpush1.msra.mxu0 0.0
    %2454 = vmatprep.subr.mxu0 0.0
    %2455 = vmatpush1.msra.mxu0 0.0
    %2456 = vmatprep.subr.mxu0 0.0
    %2457 = vmatpush1.msra.mxu0 0.0
    %2458 = vmatprep.subr.mxu0 0.0
    %2459 = vmatpush1.msra.mxu0 0.0
    %2460 = vmatprep.subr.mxu0 0.0
    %2461 = vmatpush1.msra.mxu0 0.0
    %2462 = vmatprep.subr.mxu0 0.0
    %2463 = vmatpush1.msra.mxu0 0.0
    %2464 = vmatprep.mubr.f32.mxu0 0.0
    %2465 = vmatmul.mubr.f32.gmra.mrb[0].mxu0 %v2395
    %v2466 = vpop.f32.mrb[0].mxu0
    %v2467 = vadd.f32 %v2392, %v2466
    %v2468 = vpop.f32.mrb[0].mxu0
    %2469 = vmatprep.mubr.f32.mxu0 0.0
    %2470 = vmatmul.mubr.f32.gmra.mrb[0].mxu0 %v2398
    %v2471 = vpop.f32.mrb[0].mxu0
    %v2472 = vadd.f32 %v2392, %v2471
    %v2473 = vpop.f32.mrb[0].mxu0
    %2474 = vdwg.mxu0
    %v2475 = vmul.f32 %v2467, %v2467
    %v2476 = vmul.f32 %v2472, %v2472
    %v2477 = vmul.f32 %v2467, %v2475
    %v2478 = vmul.f32 %v2472, %v2476
    %v2479 = vmul.f32 %v2477, 0.044715
    %v2480 = vmul.f32 %v2478, 0.044715
    %v2481 = vadd.f32 %v2467, %v2479
    %v2482 = vadd.f32 %v2472, %v2480
    %v2483 = vmul.f32 %v2481, 0.7978846
    %v2484 = vmul.f32 %v2482, 0.7978846
    %v2485 = vtanh.pop %v2483
    %v2486 = vtanh.pop %v2484
    %v2487 = vadd.f32 %v2485, 1.0
    %v2488 = vadd.f32 %v2486, 1.0
    %v2489 = vmul.f32 %v2487, 0.5
    %v2490 = vmul.f32 %v2488, 0.5
    %v2491 = vmul.f32 %v2467, %v2489
    %v2492 = vmul.f32 %v2472, %v2490
    %s2493 = scalar_lea.vmem %s14, 64
    %v2494 = vld [vmem:[%s2493] sm:$0xff]
    %v2495 = vld [vmem:[%s2493 + $0x8] sm:$0xff]
    %v2496 = vld [vmem:[%s2493 + $0x10] sm:$0xff]
    %v2497 = vld [vmem:[%s2493 + $0x18] sm:$0xff]
    %v2498 = vld [vmem:[%s2493 + $0x20] sm:$0xff]
    %v2499 = vld [vmem:[%s2493 + $0x28] sm:$0xff]
    %v2500 = vld [vmem:[%s2493 + $0x30] sm:$0xff]
    %v2501 = vld [vmem:[%s2493 + $0x38] sm:$0xff]
    %s2502 = scalar_lea.vmem [#allocation20], 1
    %v2503 = vld [vmem:[%s2502] sm:$0x1]
    %v2505 = vlaneseq
    %v2506 = vshrl.u32 %v2505, 7
    %v2507 = vsub.s32 0, %v2506
    %v2508 = vrot.slane %v2503, %v2507
    %v2511 = vsel %vm1349, %v2491, 0
    %v2514 = vsel %vm1349, %v2492, 0
    %2516 = vmatprep.subr.mxu0 0.0
    %2517 = vmatpush1.msra.mxu0 %v2494
    %2518 = vmatprep.subr.mxu0 0.0
    %2519 = vmatpush1.msra.mxu0 %v2495
    %2520 = vmatprep.subr.mxu0 0.0
    %2521 = vmatpush1.msra.mxu0 %v2496
    %2522 = vmatprep.subr.mxu0 0.0
    %2523 = vmatpush1.msra.mxu0 %v2497
    %2524 = vmatprep.subr.mxu0 0.0
    %2525 = vmatpush1.msra.mxu0 %v2498
    %2526 = vmatprep.subr.mxu0 0.0
    %2527 = vmatpush1.msra.mxu0 %v2499
    %2528 = vmatprep.subr.mxu0 0.0
    %2529 = vmatpush1.msra.mxu0 %v2500
    %2530 = vmatprep.subr.mxu0 0.0
    %2531 = vmatpush1.msra.mxu0 %v2501
    %2532 = vmatprep.subr.mxu0 0.0
    %2533 = vmatpush1.msra.mxu0 0.0
    %2534 = vmatprep.subr.mxu0 0.0
    %2535 = vmatpush1.msra.mxu0 0.0
    %2536 = vmatprep.subr.mxu0 0.0
    %2537 = vmatpush1.msra.mxu0 0.0
    %2538 = vmatprep.subr.mxu0 0.0
    %2539 = vmatpush1.msra.mxu0 0.0
    %2540 = vmatprep.subr.mxu0 0.0
    %2541 = vmatpush1.msra.mxu0 0.0
    %2542 = vmatprep.subr.mxu0 0.0
    %2543 = vmatpush1.msra.mxu0 0.0
    %2544 = vmatprep.subr.mxu0 0.0
    %2545 = vmatpush1.msra.mxu0 0.0
    %2546 = vmatprep.subr.mxu0 0.0
    %2547 = vmatpush1.msra.mxu0 0.0
    %2548 = vmatprep.subr.mxu0 0.0
    %2549 = vmatpush1.msra.mxu0 0.0
    %2550 = vmatprep.subr.mxu0 0.0
    %2551 = vmatpush1.msra.mxu0 0.0
    %2552 = vmatprep.subr.mxu0 0.0
    %2553 = vmatpush1.msra.mxu0 0.0
    %2554 = vmatprep.subr.mxu0 0.0
    %2555 = vmatpush1.msra.mxu0 0.0
    %2556 = vmatprep.subr.mxu0 0.0
    %2557 = vmatpush1.msra.mxu0 0.0
    %2558 = vmatprep.subr.mxu0 0.0
    %2559 = vmatpush1.msra.mxu0 0.0
    %2560 = vmatprep.subr.mxu0 0.0
    %2561 = vmatpush1.msra.mxu0 0.0
    %2562 = vmatprep.subr.mxu0 0.0
    %2563 = vmatpush1.msra.mxu0 0.0
    %2564 = vmatprep.subr.mxu0 0.0
    %2565 = vmatpush1.msra.mxu0 0.0
    %2566 = vmatprep.subr.mxu0 0.0
    %2567 = vmatpush1.msra.mxu0 0.0
    %2568 = vmatprep.subr.mxu0 0.0
    %2569 = vmatpush1.msra.mxu0 0.0
    %2570 = vmatprep.subr.mxu0 0.0
    %2571 = vmatpush1.msra.mxu0 0.0
    %2572 = vmatprep.subr.mxu0 0.0
    %2573 = vmatpush1.msra.mxu0 0.0
    %2574 = vmatprep.subr.mxu0 0.0
    %2575 = vmatpush1.msra.mxu0 0.0
    %2576 = vmatprep.subr.mxu0 0.0
    %2577 = vmatpush1.msra.mxu0 0.0
    %2578 = vmatprep.subr.mxu0 0.0
    %2579 = vmatpush1.msra.mxu0 0.0
    %2580 = vmatprep.mubr.f32.mxu0 0.0
    %2581 = vmatmul.mubr.f32.gmra.mrb[0].mxu0 %v2511
    %v2582 = vpop.f32.mrb[0].mxu0
    %v2583 = vadd.f32 %v2508, %v2582
    %v2584 = vpop.f32.mrb[0].mxu0
    %2585 = vmatprep.mubr.f32.mxu0 0.0
    %2586 = vmatmul.mubr.f32.gmra.mrb[0].mxu0 %v2514
    %v2587 = vpop.f32.mrb[0].mxu0
    %v2588 = vadd.f32 %v2508, %v2587
    %v2589 = vpop.f32.mrb[0].mxu0
    %2590 = vdwg.mxu0
    %v2591 = vadd.f32 %v2379, %v2583
    %v2592 = vadd.f32 %v2380, %v2588
    %s2593 = scalar_lea.vmem [#allocation22], 1
    %v2594 = vld [vmem:[%s2593] sm:$0x1]
    %s2595 = scalar_lea.vmem [#allocation23], 1
    %v2596 = vld [vmem:[%s2595] sm:$0x1]
    %v2597 = vsel %vm266, %v2591, 0.0
    %2598 = vadd.xlane.f32.xlu0 %v2597
    %v2599 = vpop.xlane.xlu0 %2598
    %v2600 = vsel %vm266, %v2592, 0.0
    %2601 = vadd.xlane.f32.xlu0 %v2600
    %v2602 = vpop.xlane.xlu0 %2601
    %v2603 = vmul.f32 %v2599, %v273
    %v2604 = vmul.f32 %v2602, %v273
    %v2605 = vsub.f32 %v2591, %v2603
    %v2606 = vsub.f32 %v2592, %v2604
    %v2607 = vmul.f32 %v2605, %v2605
    %v2608 = vmul.f32 %v2606, %v2606
    %v2609 = vsel %vm266, %v2607, 0.0
    %2610 = vadd.xlane.f32.xlu0 %v2609
    %v2611 = vpop.xlane.xlu0 %2610
    %v2612 = vsel %vm266, %v2608, 0.0
    %2613 = vadd.xlane.f32.xlu0 %v2612
    %v2614 = vpop.xlane.xlu0 %2613
    %v2615 = vmul.f32 %v2611, %v273
    %v2616 = vmul.f32 %v2614, %v273
    %v2617 = vadd.f32 %v2615, 1e-12
    %v2618 = vadd.f32 %v2616, 1e-12
    %v2619 = vrsqrt.pop %v2617
    %v2620 = vrsqrt.pop %v2618
    %v2621 = vmul.f32 %v2605, %v2619
    %v2622 = vmul.f32 %v2606, %v2620
    %v2624 = vlaneseq
    %v2625 = vshrl.u32 %v2624, 7
    %v2626 = vsub.s32 0, %v2625
    %v2627 = vrot.slane %v2594, %v2626
    %v2629 = vmul.f32 %v2621, %v2627
    %v2630 = vmul.f32 %v2622, %v2627
    %v2632 = vlaneseq
    %v2633 = vshrl.u32 %v2632, 7
    %v2634 = vsub.s32 0, %v2633
    %v2635 = vrot.slane %v2596, %v2634
    %v2637 = vadd.f32 %v2629, %v2635
    %v2638 = vadd.f32 %v2630, %v2635
    %v2639 = vld [vmem:[#allocation7] sm:$0xff]
    %v2640 = vld [vmem:[#allocation7 + $0x8] sm:$0xff]
    %v2642 = vsel %vm571, %v2639, 0
    %2644 = vmatprep.subr.mxu0 0.0
    %2645 = vmatpush1.msra.mxu0 %v2637
    %2646 = vmatprep.subr.mxu0 0.0
    %2647 = vmatpush1.msra.mxu0 0.0
    %2648 = vmatprep.subr.mxu0 0.0
    %2649 = vmatpush1.msra.mxu0 0.0
    %2650 = vmatprep.subr.mxu0 0.0
    %2651 = vmatpush1.msra.mxu0 0.0
    %2652 = vmatprep.subr.mxu0 0.0
    %2653 = vmatpush1.msra.mxu0 0.0
    %2654 = vmatprep.subr.mxu0 0.0
    %2655 = vmatpush1.msra.mxu0 0.0
    %2656 = vmatprep.subr.mxu0 0.0
    %2657 = vmatpush1.msra.mxu0 0.0
    %2658 = vmatprep.subr.mxu0 0.0
    %2659 = vmatpush1.msra.mxu0 0.0
    %2660 = vmatprep.subr.mxu0 0.0
    %2661 = vmatpush1.msra.mxu0 0.0
    %2662 = vmatprep.subr.mxu0 0.0
    %2663 = vmatpush1.msra.mxu0 0.0
    %2664 = vmatprep.subr.mxu0 0.0
    %2665 = vmatpush1.msra.mxu0 0.0
    %2666 = vmatprep.subr.mxu0 0.0
    %2667 = vmatpush1.msra.mxu0 0.0
    %2668 = vmatprep.subr.mxu0 0.0
    %2669 = vmatpush1.msra.mxu0 0.0
    %2670 = vmatprep.subr.mxu0 0.0
    %2671 = vmatpush1.msra.mxu0 0.0
    %2672 = vmatprep.subr.mxu0 0.0
    %2673 = vmatpush1.msra.mxu0 0.0
    %2674 = vmatprep.subr.mxu0 0.0
    %2675 = vmatpush1.msra.mxu0 0.0
    %2676 = vmatprep.subr.mxu0 0.0
    %2677 = vmatpush1.msra.mxu0 0.0
    %2678 = vmatprep.subr.mxu0 0.0
    %2679 = vmatpush1.msra.mxu0 0.0
    %2680 = vmatprep.subr.mxu0 0.0
    %2681 = vmatpush1.msra.mxu0 0.0
    %2682 = vmatprep.subr.mxu0 0.0
    %2683 = vmatpush1.msra.mxu0 0.0
    %2684 = vmatprep.subr.mxu0 0.0
    %2685 = vmatpush1.msra.mxu0 0.0
    %2686 = vmatprep.subr.mxu0 0.0
    %2687 = vmatpush1.msra.mxu0 0.0
    %2688 = vmatprep.subr.mxu0 0.0
    %2689 = vmatpush1.msra.mxu0 0.0
    %2690 = vmatprep.subr.mxu0 0.0
    %2691 = vmatpush1.msra.mxu0 0.0
    %2692 = vmatprep.subr.mxu0 0.0
    %2693 = vmatpush1.msra.mxu0 0.0
    %2694 = vmatprep.subr.mxu0 0.0
    %2695 = vmatpush1.msra.mxu0 0.0
    %2696 = vmatprep.subr.mxu0 0.0
    %2697 = vmatpush1.msra.mxu0 0.0
    %2698 = vmatprep.subr.mxu0 0.0
    %2699 = vmatpush1.msra.mxu0 0.0
    %2700 = vmatprep.subr.mxu0 0.0
    %2701 = vmatpush1.msra.mxu0 0.0
    %2702 = vmatprep.subr.mxu0 0.0
    %2703 = vmatpush1.msra.mxu0 0.0
    %2704 = vmatprep.subr.mxu0 0.0
    %2705 = vmatpush1.msra.mxu0 0.0
    %2706 = vmatprep.subr.mxu0 0.0
    %2707 = vmatpush1.msra.mxu0 0.0
    %2708 = vmatprep.mubr.f32.mxu0 0.0
    %2709 = vmatmul.mubr.f32.gmra.mrb[0].mxu0 %v2642
    %v2710 = vpop.f32.mrb[0].mxu0
    %v2711 = vadd.f32 0.0, %v2710
    %v2712 = vpop.f32.mrb[0].mxu0
    %2713 = vdwg.mxu0
    %v2715 = vsel %vm571, %v2640, 0
    %2717 = vmatprep.subr.mxu0 0.0
    %2718 = vmatpush1.msra.mxu0 %v2638
    %2719 = vmatprep.subr.mxu0 0.0
    %2720 = vmatpush1.msra.mxu0 0.0
    %2721 = vmatprep.subr.mxu0 0.0
    %2722 = vmatpush1.msra.mxu0 0.0
    %2723 = vmatprep.subr.mxu0 0.0
    %2724 = vmatpush1.msra.mxu0 0.0
    %2725 = vmatprep.subr.mxu0 0.0
    %2726 = vmatpush1.msra.mxu0 0.0
    %2727 = vmatprep.subr.mxu0 0.0
    %2728 = vmatpush1.msra.mxu0 0.0
    %2729 = vmatprep.subr.mxu0 0.0
    %2730 = vmatpush1.msra.mxu0 0.0
    %2731 = vmatprep.subr.mxu0 0.0
    %2732 = vmatpush1.msra.mxu0 0.0
    %2733 = vmatprep.subr.mxu0 0.0
    %2734 = vmatpush1.msra.mxu0 0.0
    %2735 = vmatprep.subr.mxu0 0.0
    %2736 = vmatpush1.msra.mxu0 0.0
    %2737 = vmatprep.subr.mxu0 0.0
    %2738 = vmatpush1.msra.mxu0 0.0
    %2739 = vmatprep.subr.mxu0 0.0
    %2740 = vmatpush1.msra.mxu0 0.0
    %2741 = vmatprep.subr.mxu0 0.0
    %2742 = vmatpush1.msra.mxu0 0.0
    %2743 = vmatprep.subr.mxu0 0.0
    %2744 = vmatpush1.msra.mxu0 0.0
    %2745 = vmatprep.subr.mxu0 0.0
    %2746 = vmatpush1.msra.mxu0 0.0
    %2747 = vmatprep.subr.mxu0 0.0
    %2748 = vmatpush1.msra.mxu0 0.0
    %2749 = vmatprep.subr.mxu0 0.0
    %2750 = vmatpush1.msra.mxu0 0.0
    %2751 = vmatprep.subr.mxu0 0.0
    %2752 = vmatpush1.msra.mxu0 0.0
    %2753 = vmatprep.subr.mxu0 0.0
    %2754 = vmatpush1.msra.mxu0 0.0
    %2755 = vmatprep.subr.mxu0 0.0
    %2756 = vmatpush1.msra.mxu0 0.0
    %2757 = vmatprep.subr.mxu0 0.0
    %2758 = vmatpush1.msra.mxu0 0.0
    %2759 = vmatprep.subr.mxu0 0.0
    %2760 = vmatpush1.msra.mxu0 0.0
    %2761 = vmatprep.subr.mxu0 0.0
    %2762 = vmatpush1.msra.mxu0 0.0
    %2763 = vmatprep.subr.mxu0 0.0
    %2764 = vmatpush1.msra.mxu0 0.0
    %2765 = vmatprep.subr.mxu0 0.0
    %2766 = vmatpush1.msra.mxu0 0.0
    %2767 = vmatprep.subr.mxu0 0.0
    %2768 = vmatpush1.msra.mxu0 0.0
    %2769 = vmatprep.subr.mxu0 0.0
    %2770 = vmatpush1.msra.mxu0 0.0
    %2771 = vmatprep.subr.mxu0 0.0
    %2772 = vmatpush1.msra.mxu0 0.0
    %2773 = vmatprep.subr.mxu0 0.0
    %2774 = vmatpush1.msra.mxu0 0.0
    %2775 = vmatprep.subr.mxu0 0.0
    %2776 = vmatpush1.msra.mxu0 0.0
    %2777 = vmatprep.subr.mxu0 0.0
    %2778 = vmatpush1.msra.mxu0 0.0
    %2779 = vmatprep.subr.mxu0 0.0
    %2780 = vmatpush1.msra.mxu0 0.0
    %2781 = vmatprep.mubr.f32.mxu0 0.0
    %2782 = vmatmul.mubr.f32.gmra.mrb[0].mxu0 %v2715
    %v2783 = vpop.f32.mrb[0].mxu0
    %v2784 = vadd.f32 0.0, %v2783
    %v2785 = vpop.f32.mrb[0].mxu0
    %2786 = vdwg.mxu0
    %2787 = vst.msk [vmem:[#allocation25] sm:$0xff] %vm266, %v2711
    %2788 = vst.msk [vmem:[#allocation25 + $0x8] sm:$0xff] %vm266, %v2784
    %v2789 = vld [vmem:[%s18] sm:$0xff]
    %v2790 = vld [vmem:[%s18 + $0x8] sm:$0xff]
    %v2791 = vld [vmem:[%s18 + $0x10] sm:$0xff]
    %v2792 = vld [vmem:[%s18 + $0x18] sm:$0xff]
    %v2793 = vld [vmem:[%s19] sm:$0x1]
    %v2795 = vlaneseq
    %v2796 = vshrl.u32 %v2795, 7
    %v2797 = vsub.s32 0, %v2796
    %v2798 = vrot.slane %v2793, %v2797
    %v2802 = vrot.slane %v2638, 7
    %vm2803 = vcmask 1041409
    %v2804 = vsel %vm2803, %v2802, %v2637
    %v2805 = vsel %vm266, %v2804, 0
    %2807 = vmatprep.subr.mxu0 0.0
    %2808 = vmatpush1.msra.mxu0 %v2789
    %2809 = vmatprep.subr.mxu0 0.0
    %2810 = vmatpush1.msra.mxu0 %v2790
    %2811 = vmatprep.subr.mxu0 0.0
    %2812 = vmatpush1.msra.mxu0 %v2791
    %2813 = vmatprep.subr.mxu0 0.0
    %2814 = vmatpush1.msra.mxu0 %v2792
    %2815 = vmatprep.subr.mxu0 0.0
    %2816 = vmatpush1.msra.mxu0 0.0
    %2817 = vmatprep.subr.mxu0 0.0
    %2818 = vmatpush1.msra.mxu0 0.0
    %2819 = vmatprep.subr.mxu0 0.0
    %2820 = vmatpush1.msra.mxu0 0.0
    %2821 = vmatprep.subr.mxu0 0.0
    %2822 = vmatpush1.msra.mxu0 0.0
    %2823 = vmatprep.subr.mxu0 0.0
    %2824 = vmatpush1.msra.mxu0 0.0
    %2825 = vmatprep.subr.mxu0 0.0
    %2826 = vmatpush1.msra.mxu0 0.0
    %2827 = vmatprep.subr.mxu0 0.0
    %2828 = vmatpush1.msra.mxu0 0.0
    %2829 = vmatprep.subr.mxu0 0.0
    %2830 = vmatpush1.msra.mxu0 0.0
    %2831 = vmatprep.subr.mxu0 0.0
    %2832 = vmatpush1.msra.mxu0 0.0
    %2833 = vmatprep.subr.mxu0 0.0
    %2834 = vmatpush1.msra.mxu0 0.0
    %2835 = vmatprep.subr.mxu0 0.0
    %2836 = vmatpush1.msra.mxu0 0.0
    %2837 = vmatprep.subr.mxu0 0.0
    %2838 = vmatpush1.msra.mxu0 0.0
    %2839 = vmatprep.subr.mxu0 0.0
    %2840 = vmatpush1.msra.mxu0 0.0
    %2841 = vmatprep.subr.mxu0 0.0
    %2842 = vmatpush1.msra.mxu0 0.0
    %2843 = vmatprep.subr.mxu0 0.0
    %2844 = vmatpush1.msra.mxu0 0.0
    %2845 = vmatprep.subr.mxu0 0.0
    %2846 = vmatpush1.msra.mxu0 0.0
    %2847 = vmatprep.subr.mxu0 0.0
    %2848 = vmatpush1.msra.mxu0 0.0
    %2849 = vmatprep.subr.mxu0 0.0
    %2850 = vmatpush1.msra.mxu0 0.0
    %2851 = vmatprep.subr.mxu0 0.0
    %2852 = vmatpush1.msra.mxu0 0.0
    %2853 = vmatprep.subr.mxu0 0.0
    %2854 = vmatpush1.msra.mxu0 0.0
    %2855 = vmatprep.subr.mxu0 0.0
    %2856 = vmatpush1.msra.mxu0 0.0
    %2857 = vmatprep.subr.mxu0 0.0
    %2858 = vmatpush1.msra.mxu0 0.0
    %2859 = vmatprep.subr.mxu0 0.0
    %2860 = vmatpush1.msra.mxu0 0.0
    %2861 = vmatprep.subr.mxu0 0.0
    %2862 = vmatpush1.msra.mxu0 0.0
    %2863 = vmatprep.subr.mxu0 0.0
    %2864 = vmatpush1.msra.mxu0 0.0
    %2865 = vmatprep.subr.mxu0 0.0
    %2866 = vmatpush1.msra.mxu0 0.0
    %2867 = vmatprep.subr.mxu0 0.0
    %2868 = vmatpush1.msra.mxu0 0.0
    %2869 = vmatprep.subr.mxu0 0.0
    %2870 = vmatpush1.msra.mxu0 0.0
    %2871 = vmatprep.mubr.f32.mxu0 0.0
    %2872 = vmatmul.mubr.f32.gmra.mrb[0].mxu0 %v2805
    %v2873 = vpop.f32.mrb[0].mxu0
    %v2874 = vadd.f32 %v2798, %v2873
    %v2875 = vpop.f32.mrb[0].mxu0
    %2876 = vdwg.mxu0
    %v2877 = vtanh.pop %v2874
    %vm2878 = vcmask 254976
    %2879 = vst.msk [vmem:[#allocation26] sm:$0x3] %vm2878, %v2877
    %v2880 = vld [vmem:[%s20] sm:$0xff]
    %v2881 = vld [vmem:[%s20 + $0x8] sm:$0xff]
    %v2882 = vld [vmem:[%s20 + $0x10] sm:$0xff]
    %v2883 = vld [vmem:[%s20 + $0x18] sm:$0xff]
    %v2884 = vld [vmem:[%s21] sm:$0x1]
    %v2886 = vlaneseq
    %v2887 = vshrl.u32 %v2886, 7
    %v2888 = vsub.s32 0, %v2887
    %v2889 = vrot.slane %v2884, %v2888
    %v2892 = vsel %vm266, %v2877, 0
    %2894 = vmatprep.subr.mxu0 0.0
    %2895 = vmatpush1.msra.mxu0 %v2880
    %2896 = vmatprep.subr.mxu0 0.0
    %2897 = vmatpush1.msra.mxu0 %v2881
    %2898 = vmatprep.subr.mxu0 0.0
    %2899 = vmatpush1.msra.mxu0 %v2882
    %2900 = vmatprep.subr.mxu0 0.0
    %2901 = vmatpush1.msra.mxu0 %v2883
    %2902 = vmatprep.subr.mxu0 0.0
    %2903 = vmatpush1.msra.mxu0 0.0
    %2904 = vmatprep.subr.mxu0 0.0
    %2905 = vmatpush1.msra.mxu0 0.0
    %2906 = vmatprep.subr.mxu0 0.0
    %2907 = vmatpush1.msra.mxu0 0.0
    %2908 = vmatprep.subr.mxu0 0.0
    %2909 = vmatpush1.msra.mxu0 0.0
    %2910 = vmatprep.subr.mxu0 0.0
    %2911 = vmatpush1.msra.mxu0 0.0
    %2912 = vmatprep.subr.mxu0 0.0
    %2913 = vmatpush1.msra.mxu0 0.0
    %2914 = vmatprep.subr.mxu0 0.0
    %2915 = vmatpush1.msra.mxu0 0.0
    %2916 = vmatprep.subr.mxu0 0.0
    %2917 = vmatpush1.msra.mxu0 0.0
    %2918 = vmatprep.subr.mxu0 0.0
    %2919 = vmatpush1.msra.mxu0 0.0
    %2920 = vmatprep.subr.mxu0 0.0
    %2921 = vmatpush1.msra.mxu0 0.0
    %2922 = vmatprep.subr.mxu0 0.0
    %2923 = vmatpush1.msra.mxu0 0.0
    %2924 = vmatprep.subr.mxu0 0.0
    %2925 = vmatpush1.msra.mxu0 0.0
    %2926 = vmatprep.subr.mxu0 0.0
    %2927 = vmatpush1.msra.mxu0 0.0
    %2928 = vmatprep.subr.mxu0 0.0
    %2929 = vmatpush1.msra.mxu0 0.0
    %2930 = vmatprep.subr.mxu0 0.0
    %2931 = vmatpush1.msra.mxu0 0.0
    %2932 = vmatprep.subr.mxu0 0.0
    %2933 = vmatpush1.msra.mxu0 0.0
    %2934 = vmatprep.subr.mxu0 0.0
    %2935 = vmatpush1.msra.mxu0 0.0
    %2936 = vmatprep.subr.mxu0 0.0
    %2937 = vmatpush1.msra.mxu0 0.0
    %2938 = vmatprep.subr.mxu0 0.0
    %2939 = vmatpush1.msra.mxu0 0.0
    %2940 = vmatprep.subr.mxu0 0.0
    %2941 = vmatpush1.msra.mxu0 0.0
    %2942 = vmatprep.subr.mxu0 0.0
    %2943 = vmatpush1.msra.mxu0 0.0
    %2944 = vmatprep.subr.mxu0 0.0
    %2945 = vmatpush1.msra.mxu0 0.0
    %2946 = vmatprep.subr.mxu0 0.0
    %2947 = vmatpush1.msra.mxu0 0.0
    %2948 = vmatprep.subr.mxu0 0.0
    %2949 = vmatpush1.msra.mxu0 0.0
    %2950 = vmatprep.subr.mxu0 0.0
    %2951 = vmatpush1.msra.mxu0 0.0
    %2952 = vmatprep.subr.mxu0 0.0
    %2953 = vmatpush1.msra.mxu0 0.0
    %2954 = vmatprep.subr.mxu0 0.0
    %2955 = vmatpush1.msra.mxu0 0.0
    %2956 = vmatprep.subr.mxu0 0.0
    %2957 = vmatpush1.msra.mxu0 0.0
    %2958 = vmatprep.mubr.f32.mxu0 0.0
    %2959 = vmatmul.mubr.f32.gmra.mrb[0].mxu0 %v2892
    %v2960 = vpop.f32.mrb[0].mxu0
    %v2961 = vadd.f32 %v2889, %v2960
    %v2962 = vpop.f32.mrb[0].mxu0
    %2963 = vdwg.mxu0
    %vm2964 = vcmask 17408
    %2965 = vst.msk [vmem:[#allocation28] sm:$0x3] %vm2964, %v2961
    %v2966 = vsel %vm2964, %v2961, -inf
    %2967 = vmax.xlane.f32.xlu0 %v2966
    %v2968 = vpop.xlane.xlu0 %2967
    %v2969 = vsub.f32 %v2961, %v2968
    %v2970 = vmul.f32 %v2969, 1.442695
    %v2971 = vpow.pop %v2970
    %v2972 = vsel %vm2964, %v2971, 0.0
    %2973 = vadd.xlane.f32.xlu0 %v2972
    %v2974 = vpop.xlane.xlu0 %2973
    %v2975 = vlog2.pop %v2974
    %v2976 = vmul.f32 %v2975, 0.6931472
    %v2977 = vadd.f32 %v2968, %v2976
    %v2978 = vld [vmem:[#allocation8] sm:$0x3]
    %v2979 = vmul.f32 %v2961, %v2978
    %v2980 = vsel %vm2964, %v2979, 0.0
    %2981 = vadd.xlane.f32.xlu0 %v2980
    %v2982 = vpop.xlane.xlu0 %2981
    %v2983 = vsub.f32 %v2977, %v2982
    %vm2984 = vcmask 1041408
    %v2985 = vsel %vm2984, %v2983, 0.0
    %v2986 = vrot.slane %v2985, 4
    %v2987 = vadd.f32 %v2985, %v2986
    %v2988 = vrot.slane %v2987, 2
    %v2989 = vadd.f32 %v2987, %v2988
    %v2990 = vrot.slane %v2989, 1
    %v2991 = vadd.f32 %v2989, %v2990
    %v2992 = vrcp.pop 2.0
    %v2993 = vmul.f32 %v2991, %v2992
    %vm2994 = vcmask 0
    %2995 = vst.msk [vmem:[#allocation29] sm:$0x1] %vm2994, %v2993
    // Predicated region
    $region146: #{tpu_custom_call.1} parent=1 // pred_check
      _
    $region147: #{tpu_custom_call.1} parent=1 // pred_check_branch
      %2997 = sbr.rel (0) target = $region149
    $region148: #{tpu_custom_call.1} parent=1 // pred_region
      %s2999 = ssub.s32 256, 256
      %3000 = vsyncadd [#allocation4], %s2999
      %s3001 = sshll.u32 [#allocation25], 4
      %s3002 = int_to_ptr.vmem [resolvable:$true] %s3001
      %3007 = dma.vmem_to_hbm [thread:$0]  %s3002, 256, %s22, [#allocation4], 128, 128, 8
    $region149: #{tpu_custom_call.1} parent=1 // pred_fallthru
      _
    // Predicated region
    $region150: #{tpu_custom_call.1} parent=1 // pred_check
      _
    $region151: #{tpu_custom_call.1} parent=1 // pred_check_branch
      %3009 = sbr.rel (0) target = $region153
    $region152: #{tpu_custom_call.1} parent=1 // pred_region
      %s3011 = ssub.s32 32, 32
      %3012 = vsyncadd [#allocation27], %s3011
      %s3014 = sshll.u32 [#allocation26], 4
      %s3015 = int_to_ptr.vmem [resolvable:$true] %s3014
      %3017 = dma.vmem_to_hbm [thread:$0]  %s3015, 32, %s23, [#allocation27]
    $region153: #{tpu_custom_call.1} parent=1 // pred_fallthru
      _
    // Predicated region
    $region154: #{tpu_custom_call.1} parent=1 // pred_check
      _
    $region155: #{tpu_custom_call.1} parent=1 // pred_check_branch
      %3019 = sbr.rel (0) target = $region157
    $region156: #{tpu_custom_call.1} parent=1 // pred_region
      %s3021 = ssub.s32 32, 32
      %3022 = vsyncadd [#allocation27], %s3021
      %s3024 = sshll.u32 [#allocation28], 4
      %s3025 = int_to_ptr.vmem [resolvable:$true] %s3024
      %3027 = dma.vmem_to_hbm [thread:$0]  %s3025, 32, %s24, [#allocation27]
    $region157: #{tpu_custom_call.1} parent=1 // pred_fallthru
      _
    // Predicated region
    $region158: #{tpu_custom_call.1} parent=1 // pred_check
      _
    $region159: #{tpu_custom_call.1} parent=1 // pred_check_branch
      %3029 = sbr.rel (0) target = $region161
    $region160: #{tpu_custom_call.1} parent=1 // pred_region
      %s3031 = ssub.s32 16, 16
      %3032 = vsyncadd [#allocation30], %s3031
      %s3034 = sshll.u32 [#allocation29], 4
      %s3035 = int_to_ptr.vmem [resolvable:$true] %s3034
      %3037 = dma.vmem_to_hbm [thread:$0]  %s3035, 16, %s25, [#allocation30]
    $region161: #{tpu_custom_call.1} parent=1 // pred_fallthru
      _
    // Predicated region
    $region162: #{tpu_custom_call.1} parent=1 // pred_check
      _
    $region163: #{tpu_custom_call.1} parent=1 // pred_check_branch
      %3039 = sbr.rel (0) target = $region165
    $region164: #{tpu_custom_call.1} parent=1 // pred_region
      %3040 = dma.done [#allocation4], 256
    $region165: #{tpu_custom_call.1} parent=1 // pred_fallthru
      _
    // Predicated region
    $region166: #{tpu_custom_call.1} parent=1 // pred_check
      _
    $region167: #{tpu_custom_call.1} parent=1 // pred_check_branch
      %3042 = sbr.rel (0) target = $region169
    $region168: #{tpu_custom_call.1} parent=1 // pred_region
      %3043 = dma.done [#allocation27], 32
    $region169: #{tpu_custom_call.1} parent=1 // pred_fallthru
      _
    // Predicated region
    $region170: #{tpu_custom_call.1} parent=1 // pred_check
      _
    $region171: #{tpu_custom_call.1} parent=1 // pred_check_branch
      %3045 = sbr.rel (0) target = $region173
    $region172: #{tpu_custom_call.1} parent=1 // pred_region
      %3046 = dma.done [#allocation27], 32
    $region173: #{tpu_custom_call.1} parent=1 // pred_fallthru
      _
    // Predicated region
    $region174: #{tpu_custom_call.1} parent=1 // pred_check
      _
    $region175: #{tpu_custom_call.1} parent=1 // pred_check_branch
      %3048 = sbr.rel (0) target = $region177
    $region176: #{tpu_custom_call.1} parent=1 // pred_region
      %3049 = dma.done [#allocation30], 16
    $region177: #{tpu_custom_call.1} parent=1 // pred_fallthru
      _
    %3050 = vsyncpa [#allocation3], 1
    %3051 = vsyncpa [#allocation6], 1
    %3052 = vsyncpa [#allocation9], 1
    %3053 = vsyncpa [#allocation12], 1
    %3054 = vsyncpa [#allocation15], 1
    %3055 = vsyncpa [#allocation18], 1
    %3056 = vsyncpa [#allocation21], 1
    %3057 = vsyncpa [#allocation24], 1
    %3058 = vsyncpa [#allocation4], 1
    %3059 = vsyncpa [#allocation27], 1
    %3060 = vsyncpa [#allocation30], 1

</llo_original>
